<compile_context>
chip_gen: v7x
topology: tpu7x:2x2x1
jax: 0.10.0
libtpu: 0.0.40
codegen_flags: <defaults>
</compile_context>

<pallas_src>
import functools

import numpy as np
import jax
import jax.numpy as jnp
from jax.experimental import pallas as pl
from jax.experimental.pallas import tpu as pltpu

_VMEM_LIMIT = 32 * 1024 * 1024  # explicit per-kernel scoped-VMEM budget (safe on v5e/v6e/v7x)


# ----------------------------------------------------------------------------
# small helpers
# ----------------------------------------------------------------------------
def _round_up(x, m):
    return (x + m - 1) // m * m


def _pick_tile(n, target, quantum):
    """Largest multiple of `quantum` that divides n and is <= target."""
    assert n % quantum == 0, (n, quantum)
    t = min(target, n)
    t -= t % quantum
    while n % t:
        t -= quantum
    return t


def _pick_row_tile(H, W, tn, budget=512 * 1024):
    """Row-block height for conv2: th | H, (th*W) % 8 == 0, f32 acc <= budget."""
    cands = [t for t in range(1, H + 1) if H % t == 0 and (t * W) % 8 == 0]
    ok = [t for t in cands if t * W * tn * 4 <= budget]
    if ok:
        return max(ok)
    return min(cands) if cands else H


def _pick_hw_tile(HW, C, budget=8 * 1024 * 1024):
    """HW tile for the residual kernel (multiple of 8 dividing HW, VMEM-bounded)."""
    if HW % 8:
        return HW
    cands = [t for t in range(8, HW + 1, 8) if HW % t == 0]
    ok = [t for t in cands if t * C * 16 <= budget]
    return max(ok) if ok else min(cands)


def _pad_last(a, target):
    pad = target - a.shape[-1]
    if pad == 0:
        return a
    widths = [(0, 0)] * (a.ndim - 1) + [(0, pad)]
    return jnp.pad(a, widths)


def _pad_2d(a, rows, cols):
    return jnp.pad(a, ((0, rows - a.shape[0]), (0, cols - a.shape[1])))


# ----------------------------------------------------------------------------
# Kernel 1: tiled  (X @ W) * scale + bias  [+ ReLU]    (conv1, 1x1 + BN + ReLU)
#   The f32 input is cast to bf16 per tile inside the kernel.
# ----------------------------------------------------------------------------
def _mm_bn_act_kernel(x_ref, w_ref, scale_ref, bias_ref, o_ref, acc_ref, *, relu):
    k = pl.program_id(2)

    @pl.when(k == 0)
    def _():
        acc_ref[...] = jnp.zeros_like(acc_ref)

    acc_ref[...] += jnp.dot(x_ref[...].astype(jnp.bfloat16), w_ref[...],
                            preferred_element_type=jnp.float32)

    @pl.when(k == pl.num_programs(2) - 1)
    def _():
        y = acc_ref[...] * scale_ref[...] + bias_ref[...]
        if relu:
            y = jnp.maximum(y, 0.0)
        o_ref[...] = y.astype(o_ref.dtype)


def matmul_bn_act(x2d, w, scale, bias, *, relu, out_dtype):
    M, K = x2d.shape
    N = w.shape[1]
    Mp = _round_up(M, 8)
    if Mp != M:
        x2d = jnp.pad(x2d, ((0, Mp - M), (0, 0)))
    tm = _pick_tile(Mp, 512, 8)           # divides Mp -> no over-padding of M
    tn = _pick_tile(N, 512, 128)
    tk = _pick_tile(K, 1024, 128)

    cost = pl.CostEstimate(
        flops=2 * Mp * K * N,
        transcendentals=0,
        bytes_accessed=(Mp * K * x2d.dtype.itemsize * (N // tn)
                        + K * N * w.dtype.itemsize * (Mp // tm)
                        + Mp * N * np.dtype(out_dtype).itemsize),
    )
    out = pl.pallas_call(
        functools.partial(_mm_bn_act_kernel, relu=relu),
        out_shape=jax.ShapeDtypeStruct((Mp, N), out_dtype),
        grid=(Mp // tm, N // tn, K // tk),
        in_specs=[
            pl.BlockSpec((tm, tk), lambda i, j, k: (i, k)),
            pl.BlockSpec((tk, tn), lambda i, j, k: (k, j)),
            pl.BlockSpec((1, tn), lambda i, j, k: (0, j)),
            pl.BlockSpec((1, tn), lambda i, j, k: (0, j)),
        ],
        out_specs=pl.BlockSpec((tm, tn), lambda i, j, k: (i, j)),
        scratch_shapes=[pltpu.VMEM((tm, tn), jnp.float32)],
        compiler_params=pltpu.CompilerParams(
            dimension_semantics=("parallel", "parallel", "arbitrary"),
            vmem_limit_bytes=_VMEM_LIMIT),
        cost_estimate=cost,
    )(x2d, w, scale, bias)
    return out[:M] if Mp != M else out


# ----------------------------------------------------------------------------
# Kernel 2: conv3 (1x1) + BN, with SE partial channel sums fused into the
#           epilogue (one extra tiny output; avoids re-reading h3 for the pool).
#   Requires tm | H*W so every M-tile lies inside a single image.
# ----------------------------------------------------------------------------
def _mm_bn_psum_kernel(x_ref, w_ref, scale_ref, bias_ref, o_ref, psum_ref, acc_ref):
    k = pl.program_id(2)

    @pl.when(k == 0)
    def _():
        acc_ref[...] = jnp.zeros_like(acc_ref)

    acc_ref[...] += jnp.dot(x_ref[...].astype(jnp.bfloat16), w_ref[...],
                            preferred_element_type=jnp.float32)

    @pl.when(k == pl.num_programs(2) - 1)
    def _():
        y = acc_ref[...] * scale_ref[...] + bias_ref[...]        # (tm, tn) f32 post-BN
        o_ref[...] = y.astype(o_ref.dtype)
        psum_ref[...] = jnp.sum(y, axis=0)[None, None, :]        # (1, 1, tn)


def matmul_bn_psum(x2d, w, scale, bias, *, tm, out_dtype):
    M, K = x2d.shape
    N = w.shape[1]
    assert M % tm == 0
    tn = _pick_tile(N, 512, 128)
    tk = _pick_tile(K, 1024, 128)
    mt = M // tm

    cost = pl.CostEstimate(
        flops=2 * M * K * N,
        transcendentals=0,
        bytes_accessed=(M * K * x2d.dtype.itemsize * (N // tn)
                        + K * N * w.dtype.itemsize * (M // tm)
                        + M * N * np.dtype(out_dtype).itemsize
                        + mt * N * 4),
    )
    out, psum = pl.pallas_call(
        _mm_bn_psum_kernel,
        out_shape=(jax.ShapeDtypeStruct((M, N), out_dtype),
                   jax.ShapeDtypeStruct((mt, 1, N), jnp.float32)),
        grid=(mt, N // tn, K // tk),
        in_specs=[
            pl.BlockSpec((tm, tk), lambda i, j, k: (i, k)),
            pl.BlockSpec((tk, tn), lambda i, j, k: (k, j)),
            pl.BlockSpec((1, tn), lambda i, j, k: (0, j)),
            pl.BlockSpec((1, tn), lambda i, j, k: (0, j)),
        ],
        out_specs=(pl.BlockSpec((tm, tn), lambda i, j, k: (i, j)),
                   pl.BlockSpec((1, 1, tn), lambda i, j, k: (i, 0, j))),
        scratch_shapes=[pltpu.VMEM((tm, tn), jnp.float32)],
        compiler_params=pltpu.CompilerParams(
            dimension_semantics=("parallel", "parallel", "arbitrary"),
            vmem_limit_bytes=_VMEM_LIMIT),
        cost_estimate=cost,
    )(x2d, w, scale, bias)
    return out, psum


# ----------------------------------------------------------------------------
# Kernel 3: 3x3 conv (stride=1, pad=1) + BN + ReLU, row-tiled with halo.
#   Grid = (B, H/th, N/tn); the full padded image block stays resident across
#   (row, channel) tiles.  The 3 dw taps are packed along K (K = 3*C), so only
#   3 deep matmuls run per tile; the accumulator is a bounded VMEM scratch.
#   Output is emitted flat as (B*H*W, N) so conv3 consumes it directly.
# ----------------------------------------------------------------------------
def _conv3x3_bn_relu_kernel(x_ref, w_ref, scale_ref, bias_ref, o_ref, acc_ref, *, th, W):
    r = pl.program_id(1)
    row0 = r * th
    ck = x_ref.shape[-1]
    for dh in range(3):
        rows = pl.ds(row0 + dh, th)
        lhs = jnp.concatenate(
            [x_ref[0, rows, 0:W, :],
             x_ref[0, rows, 1:W + 1, :],
             x_ref[0, rows, 2:W + 2, :]], axis=-1).reshape(th * W, 3 * ck)
        contrib = jnp.dot(lhs, w_ref[dh], preferred_element_type=jnp.float32)
        if dh == 0:
            acc_ref[...] = contrib
        else:
            acc_ref[...] += contrib
    y = acc_ref[...] * scale_ref[...] + bias_ref[...]
    o_ref[...] = jnp.maximum(y, 0.0).astype(o_ref.dtype)


def conv3x3_bn_relu(x_padded, w_packed, scale, bias, *, out_dtype):
    B, Hp2, Wp2, Ck = x_padded.shape
    H, W = Hp2 - 2, Wp2 - 2
    N = w_packed.shape[-1]
    tn = _pick_tile(N, 256, 128)
    th = _pick_row_tile(H, W, tn)
    rpi = H // th                                  # row blocks per image
    M = B * H * W
    return pl.pallas_call(
        functools.partial(_conv3x3_bn_relu_kernel, th=th, W=W),
        out_shape=jax.ShapeDtypeStruct((M, N), out_dtype),
        grid=(B, rpi, N // tn),
        in_specs=[
            pl.BlockSpec((1, Hp2, Wp2, Ck), lambda b, r, j: (b, 0, 0, 0)),
            pl.BlockSpec((3, 3 * Ck, tn), lambda b, r, j: (0, 0, j)),
            pl.BlockSpec((1, tn), lambda b, r, j: (0, j)),
            pl.BlockSpec((1, tn), lambda b, r, j: (0, j)),
        ],
        out_specs=pl.BlockSpec((th * W, tn), lambda b, r, j: (b * rpi + r, j)),
        scratch_shapes=[pltpu.VMEM((th * W, tn), jnp.float32)],
        compiler_params=pltpu.CompilerParams(
            dimension_semantics=("parallel", "parallel", "arbitrary"),
            vmem_limit_bytes=_VMEM_LIMIT),
    )(x_padded, w_packed, scale, bias)


# ----------------------------------------------------------------------------
# Kernel 4: SE gate from the fused partial sums (tiny, single step, all f32).
# ----------------------------------------------------------------------------
def _se_gate_kernel(psum_ref, w1_ref, w2_ref, gate_ref, *, n_batch, inv_hw):
    mt = psum_ref.shape[0]
    c = psum_ref.shape[-1]
    tpi = mt // n_batch
    pooled = psum_ref[...].reshape(n_batch, tpi, c).sum(axis=1) * inv_hw      # (B, C)
    h = jnp.maximum(jnp.dot(pooled, w1_ref[...],
                            preferred_element_type=jnp.float32), 0.0)
    g = jax.nn.sigmoid(jnp.dot(h, w2_ref[...],
                               preferred_element_type=jnp.float32))
    gate_ref[...] = g[:, None, :]


def se_gate(psum, w1, w2, *, n_batch, hw):
    mt, _, C = psum.shape
    Cr = w1.shape[1]
    return pl.pallas_call(
        functools.partial(_se_gate_kernel, n_batch=n_batch, inv_hw=1.0 / hw),
        out_shape=jax.ShapeDtypeStruct((n_batch, 1, C), jnp.float32),
        grid=(1,),
        in_specs=[
            pl.BlockSpec((mt, 1, C), lambda i: (0, 0, 0)),
            pl.BlockSpec((C, Cr), lambda i: (0, 0)),
            pl.BlockSpec((Cr, C), lambda i: (0, 0)),
        ],
        out_specs=pl.BlockSpec((n_batch, 1, C), lambda i: (0, 0, 0)),
        compiler_params=pltpu.CompilerParams(vmem_limit_bytes=_VMEM_LIMIT),
    )(psum, w1, w2)


# ----------------------------------------------------------------------------
# Kernel 5: SE scale + residual add + final ReLU, tiled over (B, HW).
#   h3 is bf16, identity is read as f32 (cast-free residual), output is bf16.
# ----------------------------------------------------------------------------
def _se_residual_kernel(h3_ref, id_ref, gate_ref, o_ref):
    y = h3_ref[...].astype(jnp.float32) * gate_ref[...] + id_ref[...]
    o_ref[...] = jnp.maximum(y, 0.0).astype(o_ref.dtype)


def se_residual(h3_3d, identity_3d, gate3):
    B, HW, C = h3_3d.shape
    thw = _pick_hw_tile(HW, C)
    return pl.pallas_call(
        _se_residual_kernel,
        out_shape=jax.ShapeDtypeStruct((B, HW, C), jnp.bfloat16),
        grid=(B, HW // thw),
        in_specs=[
            pl.BlockSpec((1, thw, C), lambda b, t: (b, t, 0)),
            pl.BlockSpec((1, thw, C), lambda b, t: (b, t, 0)),
            pl.BlockSpec((1, 1, C), lambda b, t: (b, 0, 0)),
        ],
        out_specs=pl.BlockSpec((1, thw, C), lambda b, t: (b, t, 0)),
        compiler_params=pltpu.CompilerParams(
            dimension_semantics=("parallel", "parallel"),
            vmem_limit_bytes=_VMEM_LIMIT),
    )(h3_3d, identity_3d, gate3)


# ----------------------------------------------------------------------------
# BatchNorm folding (inference mode)
# ----------------------------------------------------------------------------
def fold_bn(gamma, beta, mean, var, eps=1e-5):
    scale = gamma / jnp.sqrt(var + eps)
    bias = beta - mean * scale
    return scale[None, :], bias[None, :]                           # (1, C)


# ----------------------------------------------------------------------------
# Bottleneck forward (downsample=None, stride=1 => in_channel == 4*out_channel)
# ----------------------------------------------------------------------------
def bottleneck_forward(x_nchw, p):
    x = jnp.transpose(x_nchw, (0, 2, 3, 1)).astype(jnp.float32)    # NCHW -> NHWC
    B, H, W, Cin = x.shape
    HW = H * W
    M = B * HW
    Cmid = p["w1"].shape[1]
    C3 = p["w3"].shape[1]
    assert Cin == C3, "stride=1 / downsample=None path requires in_channel == 4*out_channel"
    # TODO(synk): H*W not divisible by 8 (e.g. 7x7 feature maps) needs a fallback tiling.
    assert HW % 8 == 0, "H*W must be a multiple of 8 for this tiling"

    Cin_p = _round_up(Cin, 128)
    Cmid_p = _round_up(Cmid, 128)
    C3_p = _round_up(C3, 128)
    Cr = p["se_w1"].shape[1]
    Cr_p = _round_up(Cr, 128)

    # channel-padded bf16 conv weights; channel-padded f32 folded-BN scale/bias
    w1 = _pad_2d(p["w1"], Cin_p, Cmid_p).astype(jnp.bfloat16)
    w2p = jnp.pad(p["w2_khwio"],
                  ((0, 0), (0, 0), (0, Cmid_p - Cmid), (0, Cmid_p - Cmid))
                  ).astype(jnp.bfloat16).reshape(3, 3 * Cmid_p, Cmid_p)  # dw packed along K
    w3 = _pad_2d(p["w3"], Cmid_p, C3_p).astype(jnp.bfloat16)
    s1, b1 = _pad_last(p["s1"], Cmid_p), _pad_last(p["b1"], Cmid_p)
    s2, b2 = _pad_last(p["s2"], Cmid_p), _pad_last(p["b2"], Cmid_p)
    s3, b3 = _pad_last(p["s3"], C3_p), _pad_last(p["b3"], C3_p)
    se_w1 = _pad_2d(p["se_w1"], C3_p, Cr_p)                        # tiny, keep f32
    se_w2 = _pad_2d(p["se_w2"], Cr_p, C3_p)

    xp = _pad_last(x, Cin_p)                                       # (B,H,W,Cin_p) f32
    identity = xp.reshape(B, HW, Cin_p)                            # residual (f32, cast in-kernel)

    # conv1 (1x1) + bn1 + relu (tiled matmul, f32 -> bf16 cast inside the kernel)
    h1 = matmul_bn_act(xp.reshape(M, Cin_p), w1, s1, b1,
                       relu=True, out_dtype=jnp.bfloat16)

    # conv2 (3x3, stride=1, pad=1) + bn2 + relu: row-tiled, dw taps packed along K
    h1_sp = jnp.pad(h1.reshape(B, H, W, Cmid_p),
                    ((0, 0), (1, 1), (1, 1), (0, 0)))
    h2 = conv3x3_bn_relu(h1_sp, w2p, s2, b2, out_dtype=jnp.bfloat16)   # (M, Cmid_p)

    # conv3 (1x1) + bn3 (no relu), SE pool partial sums fused into the epilogue
    tm3 = _pick_tile(HW, 512, 8)                                    # tm divides H*W
    h3, psum = matmul_bn_psum(h2, w3, s3, b3, tm=tm3, out_dtype=jnp.bfloat16)

    # SE gate from partial sums, then tiled scale + residual + final relu (bf16 out)
    gate3 = se_gate(psum, se_w1, se_w2, n_batch=B, hw=HW)
    out = se_residual(h3.reshape(B, HW, C3_p), identity, gate3)

    out = out.reshape(B, H, W, C3_p)[..., :C3]
    return jnp.transpose(out, (0, 3, 1, 2)).astype(jnp.float32)     # back to NCHW f32


# ----------------------------------------------------------------------------
# Pure-JAX reference (NCHW, f32) for a sanity check
# ----------------------------------------------------------------------------
def reference_forward(x, p):
    def conv(x, w_oihw, stride=1, pad=0):
        return jax.lax.conv_general_dilated(
            x, w_oihw, (stride, stride), [(pad, pad), (pad, pad)],
            dimension_numbers=("NCHW", "OIHW", "NCHW"))

    def bn(x, s, b):
        return x * s[0][None, :, None, None] + b[0][None, :, None, None]

    identity = x
    out = jax.nn.relu(bn(conv(x, p["w1_oihw"]), p["s1"], p["b1"]))
    out = jax.nn.relu(bn(conv(out, p["w2_oihw"], pad=1), p["s2"], p["b2"]))
    out = bn(conv(out, p["w3_oihw"]), p["s3"], p["b3"])
    pooled = jnp.mean(out, axis=(2, 3))                            # (B, C)
    g = jax.nn.sigmoid(jax.nn.relu(pooled @ p["se_w1"]) @ p["se_w2"])
    out = out * g[:, :, None, None] + identity
    return jax.nn.relu(out)


# ----------------------------------------------------------------------------
# Deterministic parameter construction (f32 "PyTorch side" params)
# ----------------------------------------------------------------------------
def make_params(key, in_channel, out_channel, expansion=4, reduction=16):
    c1, c3 = out_channel, out_channel * expansion
    cr = c3 // reduction
    keys = jax.random.split(key, 16)

    def rnd(k, shape, scale=0.1):
        return scale * jax.random.normal(k, shape, dtype=jnp.float32)

    w1_oihw = rnd(keys[0], (c1, in_channel, 1, 1))
    w2_oihw = rnd(keys[1], (c1, c1, 3, 3))
    w3_oihw = rnd(keys[2], (c3, c1, 1, 1))

    w1 = jnp.transpose(w1_oihw[:, :, 0, 0], (1, 0))                 # (Cin, C1)
    w2_khwio = jnp.transpose(w2_oihw, (2, 3, 1, 0))                 # (3,3,C1,C1)
    w3 = jnp.transpose(w3_oihw[:, :, 0, 0], (1, 0))                 # (C1, C3)

    def bn_params(kg, kb, km, kv, c):
        gamma = 1.0 + 0.1 * jax.random.normal(kg, (c,), dtype=jnp.float32)
        beta = 0.1 * jax.random.normal(kb, (c,), dtype=jnp.float32)
        mean = 0.1 * jax.random.normal(km, (c,), dtype=jnp.float32)
        var = 0.5 + jnp.abs(jax.random.normal(kv, (c,), dtype=jnp.float32))
        return fold_bn(gamma, beta, mean, var)

    s1, b1 = bn_params(keys[3], keys[4], keys[5], keys[6], c1)
    s2, b2 = bn_params(keys[7], keys[8], keys[9], keys[10], c1)
    s3, b3 = bn_params(keys[11], keys[12], keys[13], keys[14], c3)

    se_keys = jax.random.split(keys[15], 2)
    se_w1 = rnd(se_keys[0], (c3, cr), scale=0.2)                    # Linear(C3 -> C3/r)
    se_w2 = rnd(se_keys[1], (cr, c3), scale=0.2)                    # Linear(C3/r -> C3)

    return dict(w1=w1, w2_khwio=w2_khwio, w3=w3,
                w1_oihw=w1_oihw, w2_oihw=w2_oihw, w3_oihw=w3_oihw,
                s1=s1, b1=b1, s2=s2, b2=b2, s3=s3, b3=b3,
                se_w1=se_w1, se_w2=se_w2)


if __name__ == "__main__":
    # Small shapes: downsample=None / stride=1 => in_channel == out_channel * 4
    B, H, W = 2, 8, 8
    out_channel = 16
    in_channel = out_channel * 4          # 64

    key = jax.random.PRNGKey(0)
    kx, kp = jax.random.split(key)
    x = jax.random.normal(kx, (B, in_channel, H, W), dtype=jnp.float32)
    params = make_params(kp, in_channel, out_channel)

    fwd = jax.jit(bottleneck_forward)
    out = jax.block_until_ready(fwd(x, params))

    ref = jax.block_until_ready(reference_forward(x, params))
    assert out.shape == ref.shape == (B, in_channel, H, W)
    # bf16 MXU inputs / bf16 inter-stage + output activations vs f32 reference -> loose tol
    assert jnp.allclose(out, ref, rtol=6e-2, atol=1.5e-1), "mismatch vs reference"

    print("KERNEL_OK")
</pallas_src>

<mosaic_0001>
module attributes {stable_mosaic.version = 11 : i64} {
  func.func @_conv3x3_bn_relu_kernel(%arg0: i32, %arg1: i32, %arg2: i32, %arg3: memref<1x10x10x128xbf16, #tpu.memory_space<vmem>>, %arg4: memref<3x384x128xbf16, #tpu.memory_space<vmem>>, %arg5: memref<1x128xf32, #tpu.memory_space<vmem>>, %arg6: memref<1x128xf32, #tpu.memory_space<vmem>>, %arg7: memref<64x128xbf16, #tpu.memory_space<vmem>>, %arg8: memref<64x128xf32, #tpu.memory_space<vmem>>) attributes {dimension_semantics = [#tpu.dimension_semantics<parallel>, #tpu.dimension_semantics<parallel>, #tpu.dimension_semantics<arbitrary>], iteration_bounds = array<i64: 2, 1, 1>, scalar_prefetch = 0 : i64, scratch_operands = 1 : i64, tpu.core_type = #tpu.core_type<tc>, window_params = [{transform_indices = @transform_0, window_bounds = array<i64: 1, 10, 10, 128>}, {transform_indices = @transform_1, window_bounds = array<i64: 3, 384, 128>}, {transform_indices = @transform_2, window_bounds = array<i64: 1, 128>}, {transform_indices = @transform_3, window_bounds = array<i64: 1, 128>}, {transform_indices = @transform_4, window_bounds = array<i64: 64, 128>}]} {
    %c8_i32 = arith.constant 8 : i32
    %0 = arith.muli %arg1, %c8_i32 : i32
    %c0_i32 = arith.constant 0 : i32
    %1 = arith.addi %0, %c0_i32 : i32
    %c0 = arith.constant 0 : index
    %2 = arith.index_cast %1 : i32 to index
    %c0_0 = arith.constant 0 : index
    %c0_1 = arith.constant 0 : index
    %3 = vector.load %arg3[%c0, %2, %c0_0, %c0_1] : memref<1x10x10x128xbf16, #tpu.memory_space<vmem>>, vector<1x8x8x128xbf16>
    %4 = vector.shape_cast %3 : vector<1x8x8x128xbf16> to vector<8x8x128xbf16>
    %c0_2 = arith.constant 0 : index
    %5 = arith.index_cast %1 : i32 to index
    %c1 = arith.constant 1 : index
    %c0_3 = arith.constant 0 : index
    %6 = vector.load %arg3[%c0_2, %5, %c1, %c0_3] : memref<1x10x10x128xbf16, #tpu.memory_space<vmem>>, vector<1x8x8x128xbf16>
    %7 = vector.shape_cast %6 : vector<1x8x8x128xbf16> to vector<8x8x128xbf16>
    %c0_4 = arith.constant 0 : index
    %8 = arith.index_cast %1 : i32 to index
    %c2 = arith.constant 2 : index
    %c0_5 = arith.constant 0 : index
    %9 = vector.load %arg3[%c0_4, %8, %c2, %c0_5] : memref<1x10x10x128xbf16, #tpu.memory_space<vmem>>, vector<1x8x8x128xbf16>
    %10 = vector.shape_cast %9 : vector<1x8x8x128xbf16> to vector<8x8x128xbf16>
    %11 = tpu.concatenate %4, %7, %10 in 2 : vector<8x8x128xbf16>, vector<8x8x128xbf16>, vector<8x8x128xbf16> -> vector<8x8x384xbf16>
    %12 = vector.shape_cast %11 : vector<8x8x384xbf16> to vector<64x384xbf16>
    %c0_6 = arith.constant 0 : index
    %c0_7 = arith.constant 0 : index
    %c0_8 = arith.constant 0 : index
    %13 = vector.load %arg4[%c0_6, %c0_7, %c0_8] : memref<3x384x128xbf16, #tpu.memory_space<vmem>>, vector<1x384x128xbf16>
    %14 = vector.shape_cast %13 : vector<1x384x128xbf16> to vector<384x128xbf16>
    %cst = arith.constant dense<0.000000e+00> : vector<64x128xf32>
    %15 = tpu.matmul %12, %14, %cst {dimension_numbers = #tpu.dot_dimension_numbers<[1], [0], [0], [1], [0, 0, 1, 1], [], []>} : vector<64x384xbf16>, vector<384x128xbf16>, vector<64x128xf32> -> vector<64x128xf32>
    %c0_9 = arith.constant 0 : index
    %c0_10 = arith.constant 0 : index
    %16 = vector.load %arg8[%c0_9, %c0_10] : memref<64x128xf32, #tpu.memory_space<vmem>>, vector<64x128xf32>
    tpu.vector_store %arg8[%c0_9, %c0_10], %15 {strides = array<i32>} : memref<64x128xf32, #tpu.memory_space<vmem>>, vector<64x128xf32>,
    %c1_i32 = arith.constant 1 : i32
    %17 = arith.addi %0, %c1_i32 : i32
    %c0_11 = arith.constant 0 : index
    %18 = arith.index_cast %17 : i32 to index
    %c0_12 = arith.constant 0 : index
    %c0_13 = arith.constant 0 : index
    %19 = vector.load %arg3[%c0_11, %18, %c0_12, %c0_13] : memref<1x10x10x128xbf16, #tpu.memory_space<vmem>>, vector<1x8x8x128xbf16>
    %20 = vector.shape_cast %19 : vector<1x8x8x128xbf16> to vector<8x8x128xbf16>
    %c0_14 = arith.constant 0 : index
    %21 = arith.index_cast %17 : i32 to index
    %c1_15 = arith.constant 1 : index
    %c0_16 = arith.constant 0 : index
    %22 = vector.load %arg3[%c0_14, %21, %c1_15, %c0_16] : memref<1x10x10x128xbf16, #tpu.memory_space<vmem>>, vector<1x8x8x128xbf16>
    %23 = vector.shape_cast %22 : vector<1x8x8x128xbf16> to vector<8x8x128xbf16>
    %c0_17 = arith.constant 0 : index
    %24 = arith.index_cast %17 : i32 to index
    %c2_18 = arith.constant 2 : index
    %c0_19 = arith.constant 0 : index
    %25 = vector.load %arg3[%c0_17, %24, %c2_18, %c0_19] : memref<1x10x10x128xbf16, #tpu.memory_space<vmem>>, vector<1x8x8x128xbf16>
    %26 = vector.shape_cast %25 : vector<1x8x8x128xbf16> to vector<8x8x128xbf16>
    %27 = tpu.concatenate %20, %23, %26 in 2 : vector<8x8x128xbf16>, vector<8x8x128xbf16>, vector<8x8x128xbf16> -> vector<8x8x384xbf16>
    %28 = vector.shape_cast %27 : vector<8x8x384xbf16> to vector<64x384xbf16>
    %c1_20 = arith.constant 1 : index
    %c0_21 = arith.constant 0 : index
    %c0_22 = arith.constant 0 : index
    %29 = vector.load %arg4[%c1_20, %c0_21, %c0_22] : memref<3x384x128xbf16, #tpu.memory_space<vmem>>, vector<1x384x128xbf16>
    %30 = vector.shape_cast %29 : vector<1x384x128xbf16> to vector<384x128xbf16>
    %cst_23 = arith.constant dense<0.000000e+00> : vector<64x128xf32>
    %31 = tpu.matmul %28, %30, %cst_23 {dimension_numbers = #tpu.dot_dimension_numbers<[1], [0], [0], [1], [0, 0, 1, 1], [], []>} : vector<64x384xbf16>, vector<384x128xbf16>, vector<64x128xf32> -> vector<64x128xf32>
    %c0_24 = arith.constant 0 : index
    %c0_25 = arith.constant 0 : index
    %32 = vector.load %arg8[%c0_24, %c0_25] : memref<64x128xf32, #tpu.memory_space<vmem>>, vector<64x128xf32>
    %33 = arith.addf %32, %31 : vector<64x128xf32>
    %c0_26 = arith.constant 0 : index
    %c0_27 = arith.constant 0 : index
    %34 = vector.load %arg8[%c0_26, %c0_27] : memref<64x128xf32, #tpu.memory_space<vmem>>, vector<64x128xf32>
    tpu.vector_store %arg8[%c0_26, %c0_27], %33 {strides = array<i32>} : memref<64x128xf32, #tpu.memory_space<vmem>>, vector<64x128xf32>,
    %c2_i32 = arith.constant 2 : i32
    %35 = arith.addi %0, %c2_i32 : i32
    %c0_28 = arith.constant 0 : index
    %36 = arith.index_cast %35 : i32 to index
    %c0_29 = arith.constant 0 : index
    %c0_30 = arith.constant 0 : index
    %37 = vector.load %arg3[%c0_28, %36, %c0_29, %c0_30] : memref<1x10x10x128xbf16, #tpu.memory_space<vmem>>, vector<1x8x8x128xbf16>
    %38 = vector.shape_cast %37 : vector<1x8x8x128xbf16> to vector<8x8x128xbf16>
    %c0_31 = arith.constant 0 : index
    %39 = arith.index_cast %35 : i32 to index
    %c1_32 = arith.constant 1 : index
    %c0_33 = arith.constant 0 : index
    %40 = vector.load %arg3[%c0_31, %39, %c1_32, %c0_33] : memref<1x10x10x128xbf16, #tpu.memory_space<vmem>>, vector<1x8x8x128xbf16>
    %41 = vector.shape_cast %40 : vector<1x8x8x128xbf16> to vector<8x8x128xbf16>
    %c0_34 = arith.constant 0 : index
    %42 = arith.index_cast %35 : i32 to index
    %c2_35 = arith.constant 2 : index
    %c0_36 = arith.constant 0 : index
    %43 = vector.load %arg3[%c0_34, %42, %c2_35, %c0_36] : memref<1x10x10x128xbf16, #tpu.memory_space<vmem>>, vector<1x8x8x128xbf16>
    %44 = vector.shape_cast %43 : vector<1x8x8x128xbf16> to vector<8x8x128xbf16>
    %45 = tpu.concatenate %38, %41, %44 in 2 : vector<8x8x128xbf16>, vector<8x8x128xbf16>, vector<8x8x128xbf16> -> vector<8x8x384xbf16>
    %46 = vector.shape_cast %45 : vector<8x8x384xbf16> to vector<64x384xbf16>
    %c2_37 = arith.constant 2 : index
    %c0_38 = arith.constant 0 : index
    %c0_39 = arith.constant 0 : index
    %47 = vector.load %arg4[%c2_37, %c0_38, %c0_39] : memref<3x384x128xbf16, #tpu.memory_space<vmem>>, vector<1x384x128xbf16>
    %48 = vector.shape_cast %47 : vector<1x384x128xbf16> to vector<384x128xbf16>
    %cst_40 = arith.constant dense<0.000000e+00> : vector<64x128xf32>
    %49 = tpu.matmul %46, %48, %cst_40 {dimension_numbers = #tpu.dot_dimension_numbers<[1], [0], [0], [1], [0, 0, 1, 1], [], []>} : vector<64x384xbf16>, vector<384x128xbf16>, vector<64x128xf32> -> vector<64x128xf32>
    %c0_41 = arith.constant 0 : index
    %c0_42 = arith.constant 0 : index
    %50 = vector.load %arg8[%c0_41, %c0_42] : memref<64x128xf32, #tpu.memory_space<vmem>>, vector<64x128xf32>
    %51 = arith.addf %50, %49 : vector<64x128xf32>
    %c0_43 = arith.constant 0 : index
    %c0_44 = arith.constant 0 : index
    %52 = vector.load %arg8[%c0_43, %c0_44] : memref<64x128xf32, #tpu.memory_space<vmem>>, vector<64x128xf32>
    tpu.vector_store %arg8[%c0_43, %c0_44], %51 {strides = array<i32>} : memref<64x128xf32, #tpu.memory_space<vmem>>, vector<64x128xf32>,
    %c0_45 = arith.constant 0 : index
    %c0_46 = arith.constant 0 : index
    %53 = vector.load %arg8[%c0_45, %c0_46] : memref<64x128xf32, #tpu.memory_space<vmem>>, vector<64x128xf32>
    %c0_47 = arith.constant 0 : index
    %c0_48 = arith.constant 0 : index
    %54 = vector.load %arg5[%c0_47, %c0_48] : memref<1x128xf32, #tpu.memory_space<vmem>>, vector<1x128xf32>
    %55 = vector.broadcast %54 : vector<1x128xf32> to vector<64x128xf32>
    %56 = arith.mulf %53, %55 : vector<64x128xf32>
    %c0_49 = arith.constant 0 : index
    %c0_50 = arith.constant 0 : index
    %57 = vector.load %arg6[%c0_49, %c0_50] : memref<1x128xf32, #tpu.memory_space<vmem>>, vector<1x128xf32>
    %58 = vector.broadcast %57 : vector<1x128xf32> to vector<64x128xf32>
    %59 = arith.addf %56, %58 : vector<64x128xf32>
    %cst_51 = arith.constant 0.000000e+00 : f32
    %60 = vector.broadcast %cst_51 : f32 to vector<64x128xf32>
    %61 = arith.maximumf %59, %60 : vector<64x128xf32>
    %62 = arith.truncf %61 : vector<64x128xf32> to vector<64x128xbf16>
    %c0_52 = arith.constant 0 : index
    %c0_53 = arith.constant 0 : index
    %63 = vector.load %arg7[%c0_52, %c0_53] : memref<64x128xbf16, #tpu.memory_space<vmem>>, vector<64x128xbf16>
    tpu.vector_store %arg7[%c0_52, %c0_53], %62 {strides = array<i32>} : memref<64x128xbf16, #tpu.memory_space<vmem>>, vector<64x128xbf16>,
    return
  }
  func.func @transform_0(%arg0: i32, %arg1: i32, %arg2: i32) -> (i32, i32, i32, i32) {
    %c0_i32 = arith.constant 0 : i32
    %c0_i32_0 = arith.constant 0 : i32
    %c0_i32_1 = arith.constant 0 : i32
    %c0_i32_2 = arith.constant 0 : i32
    return %arg0, %c0_i32, %c0_i32_0, %c0_i32_1 : i32, i32, i32, i32
  }
  func.func @transform_1(%arg0: i32, %arg1: i32, %arg2: i32) -> (i32, i32, i32) {
    %c0_i32 = arith.constant 0 : i32
    %c0_i32_0 = arith.constant 0 : i32
    %c0_i32_1 = arith.constant 0 : i32
    return %c0_i32, %c0_i32_0, %arg2 : i32, i32, i32
  }
  func.func @transform_2(%arg0: i32, %arg1: i32, %arg2: i32) -> (i32, i32) {
    %c0_i32 = arith.constant 0 : i32
    %c0_i32_0 = arith.constant 0 : i32
    return %c0_i32, %arg2 : i32, i32
  }
  func.func @transform_3(%arg0: i32, %arg1: i32, %arg2: i32) -> (i32, i32) {
    %c0_i32 = arith.constant 0 : i32
    %c0_i32_0 = arith.constant 0 : i32
    return %c0_i32, %arg2 : i32, i32
  }
  func.func @transform_4(%arg0: i32, %arg1: i32, %arg2: i32) -> (i32, i32) {
    %c1_i32 = arith.constant 1 : i32
    %0 = arith.muli %arg0, %c1_i32 : i32
    %1 = arith.addi %0, %arg1 : i32
    %c0_i32 = arith.constant 0 : i32
    return %1, %arg2 : i32, i32
  }
}

module attributes {stable_mosaic.version = 11 : i64} {
  func.func @_mm_bn_act_kernel(%arg0: i32, %arg1: i32, %arg2: i32, %arg3: memref<128x128xf32, #tpu.memory_space<vmem>>, %arg4: memref<128x128xbf16, #tpu.memory_space<vmem>>, %arg5: memref<1x128xf32, #tpu.memory_space<vmem>>, %arg6: memref<1x128xf32, #tpu.memory_space<vmem>>, %arg7: memref<128x128xbf16, #tpu.memory_space<vmem>>, %arg8: memref<128x128xf32, #tpu.memory_space<vmem>>) attributes {dimension_semantics = [#tpu.dimension_semantics<parallel>, #tpu.dimension_semantics<parallel>, #tpu.dimension_semantics<arbitrary>], iteration_bounds = array<i64: 1, 1, 1>, scalar_prefetch = 0 : i64, scratch_operands = 1 : i64, tpu.core_type = #tpu.core_type<tc>, window_params = [{transform_indices = @transform_0, window_bounds = array<i64: 128, 128>}, {transform_indices = @transform_1, window_bounds = array<i64: 128, 128>}, {transform_indices = @transform_2, window_bounds = array<i64: 1, 128>}, {transform_indices = @transform_3, window_bounds = array<i64: 1, 128>}, {transform_indices = @transform_4, window_bounds = array<i64: 128, 128>}]} {
    %c0_i32 = arith.constant 0 : i32
    %0 = arith.cmpi eq, %arg2, %c0_i32 : i32
    %1 = arith.extui %0 : i1 to i32
    %c0_i32_0 = arith.constant 0 : i32
    %2 = arith.cmpi ne, %1, %c0_i32_0 : i32
    scf.if %2 {
      %cst_10 = arith.constant 0.000000e+00 : f32
      %13 = vector.broadcast %cst_10 : f32 to vector<128x128xf32>
      %c0_11 = arith.constant 0 : index
      %c0_12 = arith.constant 0 : index
      %14 = vector.load %arg8[%c0_11, %c0_12] : memref<128x128xf32, #tpu.memory_space<vmem>>, vector<128x128xf32>
      tpu.vector_store %arg8[%c0_11, %c0_12], %13 {strides = array<i32>} : memref<128x128xf32, #tpu.memory_space<vmem>>, vector<128x128xf32>,
    } else {
    }
    %c0 = arith.constant 0 : index
    %c0_1 = arith.constant 0 : index
    %3 = vector.load %arg8[%c0, %c0_1] : memref<128x128xf32, #tpu.memory_space<vmem>>, vector<128x128xf32>
    %c0_2 = arith.constant 0 : index
    %c0_3 = arith.constant 0 : index
    %4 = vector.load %arg3[%c0_2, %c0_3] : memref<128x128xf32, #tpu.memory_space<vmem>>, vector<128x128xf32>
    %5 = arith.truncf %4 : vector<128x128xf32> to vector<128x128xbf16>
    %c0_4 = arith.constant 0 : index
    %c0_5 = arith.constant 0 : index
    %6 = vector.load %arg4[%c0_4, %c0_5] : memref<128x128xbf16, #tpu.memory_space<vmem>>, vector<128x128xbf16>
    %cst = arith.constant dense<0.000000e+00> : vector<128x128xf32>
    %7 = tpu.matmul %5, %6, %cst {dimension_numbers = #tpu.dot_dimension_numbers<[1], [0], [0], [1], [0, 0, 1, 1], [], []>} : vector<128x128xbf16>, vector<128x128xbf16>, vector<128x128xf32> -> vector<128x128xf32>
    %8 = arith.addf %3, %7 : vector<128x128xf32>
    %c0_6 = arith.constant 0 : index
    %c0_7 = arith.constant 0 : index
    %9 = vector.load %arg8[%c0_6, %c0_7] : memref<128x128xf32, #tpu.memory_space<vmem>>, vector<128x128xf32>
    tpu.vector_store %arg8[%c0_6, %c0_7], %8 {strides = array<i32>} : memref<128x128xf32, #tpu.memory_space<vmem>>, vector<128x128xf32>,
    %c0_i32_8 = arith.constant 0 : i32
    %10 = arith.cmpi eq, %arg2, %c0_i32_8 : i32
    %11 = arith.extui %10 : i1 to i32
    %c0_i32_9 = arith.constant 0 : i32
    %12 = arith.cmpi ne, %11, %c0_i32_9 : i32
    scf.if %12 {
      %c0_10 = arith.constant 0 : index
      %c0_11 = arith.constant 0 : index
      %13 = vector.load %arg8[%c0_10, %c0_11] : memref<128x128xf32, #tpu.memory_space<vmem>>, vector<128x128xf32>
      %c0_12 = arith.constant 0 : index
      %c0_13 = arith.constant 0 : index
      %14 = vector.load %arg5[%c0_12, %c0_13] : memref<1x128xf32, #tpu.memory_space<vmem>>, vector<1x128xf32>
      %15 = vector.broadcast %14 : vector<1x128xf32> to vector<128x128xf32>
      %16 = arith.mulf %13, %15 : vector<128x128xf32>
      %c0_14 = arith.constant 0 : index
      %c0_15 = arith.constant 0 : index
      %17 = vector.load %arg6[%c0_14, %c0_15] : memref<1x128xf32, #tpu.memory_space<vmem>>, vector<1x128xf32>
      %18 = vector.broadcast %17 : vector<1x128xf32> to vector<128x128xf32>
      %19 = arith.addf %16, %18 : vector<128x128xf32>
      %cst_16 = arith.constant 0.000000e+00 : f32
      %20 = vector.broadcast %cst_16 : f32 to vector<128x128xf32>
      %21 = arith.maximumf %19, %20 : vector<128x128xf32>
      %22 = arith.truncf %21 : vector<128x128xf32> to vector<128x128xbf16>
      %c0_17 = arith.constant 0 : index
      %c0_18 = arith.constant 0 : index
      %23 = vector.load %arg7[%c0_17, %c0_18] : memref<128x128xbf16, #tpu.memory_space<vmem>>, vector<128x128xbf16>
      tpu.vector_store %arg7[%c0_17, %c0_18], %22 {strides = array<i32>} : memref<128x128xbf16, #tpu.memory_space<vmem>>, vector<128x128xbf16>,
    } else {
    }
    return
  }
  func.func @transform_0(%arg0: i32, %arg1: i32, %arg2: i32) -> (i32, i32) {
    %c0_i32 = arith.constant 0 : i32
    return %arg0, %arg2 : i32, i32
  }
  func.func @transform_1(%arg0: i32, %arg1: i32, %arg2: i32) -> (i32, i32) {
    %c0_i32 = arith.constant 0 : i32
    return %arg2, %arg1 : i32, i32
  }
  func.func @transform_2(%arg0: i32, %arg1: i32, %arg2: i32) -> (i32, i32) {
    %c0_i32 = arith.constant 0 : i32
    %c0_i32_0 = arith.constant 0 : i32
    return %c0_i32, %arg1 : i32, i32
  }
  func.func @transform_3(%arg0: i32, %arg1: i32, %arg2: i32) -> (i32, i32) {
    %c0_i32 = arith.constant 0 : i32
    %c0_i32_0 = arith.constant 0 : i32
    return %c0_i32, %arg1 : i32, i32
  }
  func.func @transform_4(%arg0: i32, %arg1: i32, %arg2: i32) -> (i32, i32) {
    %c0_i32 = arith.constant 0 : i32
    return %arg0, %arg1 : i32, i32
  }
}

module attributes {stable_mosaic.version = 11 : i64} {
  func.func @_mm_bn_psum_kernel(%arg0: i32, %arg1: i32, %arg2: i32, %arg3: memref<64x128xbf16, #tpu.memory_space<vmem>>, %arg4: memref<128x128xbf16, #tpu.memory_space<vmem>>, %arg5: memref<1x128xf32, #tpu.memory_space<vmem>>, %arg6: memref<1x128xf32, #tpu.memory_space<vmem>>, %arg7: memref<64x128xbf16, #tpu.memory_space<vmem>>, %arg8: memref<1x1x128xf32, #tpu.memory_space<vmem>>, %arg9: memref<64x128xf32, #tpu.memory_space<vmem>>) attributes {dimension_semantics = [#tpu.dimension_semantics<parallel>, #tpu.dimension_semantics<parallel>, #tpu.dimension_semantics<arbitrary>], iteration_bounds = array<i64: 2, 1, 1>, scalar_prefetch = 0 : i64, scratch_operands = 1 : i64, tpu.core_type = #tpu.core_type<tc>, window_params = [{transform_indices = @transform_0, window_bounds = array<i64: 64, 128>}, {transform_indices = @transform_1, window_bounds = array<i64: 128, 128>}, {transform_indices = @transform_2, window_bounds = array<i64: 1, 128>}, {transform_indices = @transform_3, window_bounds = array<i64: 1, 128>}, {transform_indices = @transform_4, window_bounds = array<i64: 64, 128>}, {transform_indices = @transform_5, window_bounds = array<i64: 1, 1, 128>}]} {
    %c0_i32 = arith.constant 0 : i32
    %0 = arith.cmpi eq, %arg2, %c0_i32 : i32
    %1 = arith.extui %0 : i1 to i32
    %c0_i32_0 = arith.constant 0 : i32
    %2 = arith.cmpi ne, %1, %c0_i32_0 : i32
    scf.if %2 {
      %cst_10 = arith.constant 0.000000e+00 : f32
      %12 = vector.broadcast %cst_10 : f32 to vector<64x128xf32>
      %c0_11 = arith.constant 0 : index
      %c0_12 = arith.constant 0 : index
      %13 = vector.load %arg9[%c0_11, %c0_12] : memref<64x128xf32, #tpu.memory_space<vmem>>, vector<64x128xf32>
      tpu.vector_store %arg9[%c0_11, %c0_12], %12 {strides = array<i32>} : memref<64x128xf32, #tpu.memory_space<vmem>>, vector<64x128xf32>,
    } else {
    }
    %c0 = arith.constant 0 : index
    %c0_1 = arith.constant 0 : index
    %3 = vector.load %arg9[%c0, %c0_1] : memref<64x128xf32, #tpu.memory_space<vmem>>, vector<64x128xf32>
    %c0_2 = arith.constant 0 : index
    %c0_3 = arith.constant 0 : index
    %4 = vector.load %arg3[%c0_2, %c0_3] : memref<64x128xbf16, #tpu.memory_space<vmem>>, vector<64x128xbf16>
    %c0_4 = arith.constant 0 : index
    %c0_5 = arith.constant 0 : index
    %5 = vector.load %arg4[%c0_4, %c0_5] : memref<128x128xbf16, #tpu.memory_space<vmem>>, vector<128x128xbf16>
    %cst = arith.constant dense<0.000000e+00> : vector<64x128xf32>
    %6 = tpu.matmul %4, %5, %cst {dimension_numbers = #tpu.dot_dimension_numbers<[1], [0], [0], [1], [0, 0, 1, 1], [], []>} : vector<64x128xbf16>, vector<128x128xbf16>, vector<64x128xf32> -> vector<64x128xf32>
    %7 = arith.addf %3, %6 : vector<64x128xf32>
    %c0_6 = arith.constant 0 : index
    %c0_7 = arith.constant 0 : index
    %8 = vector.load %arg9[%c0_6, %c0_7] : memref<64x128xf32, #tpu.memory_space<vmem>>, vector<64x128xf32>
    tpu.vector_store %arg9[%c0_6, %c0_7], %7 {strides = array<i32>} : memref<64x128xf32, #tpu.memory_space<vmem>>, vector<64x128xf32>,
    %c0_i32_8 = arith.constant 0 : i32
    %9 = arith.cmpi eq, %arg2, %c0_i32_8 : i32
    %10 = arith.extui %9 : i1 to i32
    %c0_i32_9 = arith.constant 0 : i32
    %11 = arith.cmpi ne, %10, %c0_i32_9 : i32
    scf.if %11 {
      %c0_10 = arith.constant 0 : index
      %c0_11 = arith.constant 0 : index
      %12 = vector.load %arg9[%c0_10, %c0_11] : memref<64x128xf32, #tpu.memory_space<vmem>>, vector<64x128xf32>
      %c0_12 = arith.constant 0 : index
      %c0_13 = arith.constant 0 : index
      %13 = vector.load %arg5[%c0_12, %c0_13] : memref<1x128xf32, #tpu.memory_space<vmem>>, vector<1x128xf32>
      %14 = vector.broadcast %13 : vector<1x128xf32> to vector<64x128xf32>
      %15 = arith.mulf %12, %14 : vector<64x128xf32>
      %c0_14 = arith.constant 0 : index
      %c0_15 = arith.constant 0 : index
      %16 = vector.load %arg6[%c0_14, %c0_15] : memref<1x128xf32, #tpu.memory_space<vmem>>, vector<1x128xf32>
      %17 = vector.broadcast %16 : vector<1x128xf32> to vector<64x128xf32>
      %18 = arith.addf %15, %17 : vector<64x128xf32>
      %19 = arith.truncf %18 : vector<64x128xf32> to vector<64x128xbf16>
      %c0_16 = arith.constant 0 : index
      %c0_17 = arith.constant 0 : index
      %20 = vector.load %arg7[%c0_16, %c0_17] : memref<64x128xbf16, #tpu.memory_space<vmem>>, vector<64x128xbf16>
      tpu.vector_store %arg7[%c0_16, %c0_17], %19 {strides = array<i32>} : memref<64x128xbf16, #tpu.memory_space<vmem>>, vector<64x128xbf16>,
      %cst_18 = arith.constant dense<0.000000e+00> : vector<128xf32>
      %21 = vector.multi_reduction <add>, %18, %cst_18 [0] : vector<64x128xf32> to vector<128xf32>
      %22 = vector.shape_cast %21 : vector<128xf32> to vector<1x1x128xf32>
      %c0_19 = arith.constant 0 : index
      %c0_20 = arith.constant 0 : index
      %c0_21 = arith.constant 0 : index
      %23 = vector.load %arg8[%c0_19, %c0_20, %c0_21] : memref<1x1x128xf32, #tpu.memory_space<vmem>>, vector<1x1x128xf32>
      tpu.vector_store %arg8[%c0_19, %c0_20, %c0_21], %22 {strides = array<i32>} : memref<1x1x128xf32, #tpu.memory_space<vmem>>, vector<1x1x128xf32>,
    } else {
    }
    return
  }
  func.func @transform_0(%arg0: i32, %arg1: i32, %arg2: i32) -> (i32, i32) {
    %c0_i32 = arith.constant 0 : i32
    return %arg0, %arg2 : i32, i32
  }
  func.func @transform_1(%arg0: i32, %arg1: i32, %arg2: i32) -> (i32, i32) {
    %c0_i32 = arith.constant 0 : i32
    return %arg2, %arg1 : i32, i32
  }
  func.func @transform_2(%arg0: i32, %arg1: i32, %arg2: i32) -> (i32, i32) {
    %c0_i32 = arith.constant 0 : i32
    %c0_i32_0 = arith.constant 0 : i32
    return %c0_i32, %arg1 : i32, i32
  }
  func.func @transform_3(%arg0: i32, %arg1: i32, %arg2: i32) -> (i32, i32) {
    %c0_i32 = arith.constant 0 : i32
    %c0_i32_0 = arith.constant 0 : i32
    return %c0_i32, %arg1 : i32, i32
  }
  func.func @transform_4(%arg0: i32, %arg1: i32, %arg2: i32) -> (i32, i32) {
    %c0_i32 = arith.constant 0 : i32
    return %arg0, %arg1 : i32, i32
  }
  func.func @transform_5(%arg0: i32, %arg1: i32, %arg2: i32) -> (i32, i32, i32) {
    %c0_i32 = arith.constant 0 : i32
    %c0_i32_0 = arith.constant 0 : i32
    return %arg0, %c0_i32, %arg1 : i32, i32, i32
  }
}

module attributes {stable_mosaic.version = 11 : i64} {
  func.func @_se_gate_kernel(%arg0: i32, %arg1: memref<2x1x128xf32, #tpu.memory_space<vmem>>, %arg2: memref<128x128xf32, #tpu.memory_space<vmem>>, %arg3: memref<128x128xf32, #tpu.memory_space<vmem>>, %arg4: memref<2x1x128xf32, #tpu.memory_space<vmem>>) attributes {dimension_semantics = [#tpu.dimension_semantics<arbitrary>], iteration_bounds = array<i64: 1>, scalar_prefetch = 0 : i64, scratch_operands = 0 : i64, tpu.core_type = #tpu.core_type<tc>, window_params = [{pipeline_mode = #tpu.pipeline_mode<synchronous>, transform_indices = @transform_0, window_bounds = array<i64: 2, 1, 128>}, {pipeline_mode = #tpu.pipeline_mode<synchronous>, transform_indices = @transform_1, window_bounds = array<i64: 128, 128>}, {pipeline_mode = #tpu.pipeline_mode<synchronous>, transform_indices = @transform_2, window_bounds = array<i64: 128, 128>}, {pipeline_mode = #tpu.pipeline_mode<synchronous>, transform_indices = @transform_3, window_bounds = array<i64: 2, 1, 128>}]} {
    %c0 = arith.constant 0 : index
    %c0_0 = arith.constant 0 : index
    %c0_1 = arith.constant 0 : index
    %0 = vector.load %arg1[%c0, %c0_0, %c0_1] : memref<2x1x128xf32, #tpu.memory_space<vmem>>, vector<2x1x128xf32>
    %cst = arith.constant dense<0.000000e+00> : vector<2x128xf32>
    %1 = vector.multi_reduction <add>, %0, %cst [1] : vector<2x1x128xf32> to vector<2x128xf32>
    %cst_2 = arith.constant 1.562500e-02 : f32
    %2 = vector.broadcast %cst_2 : f32 to vector<2x128xf32>
    %3 = arith.mulf %1, %2 : vector<2x128xf32>
    %c0_3 = arith.constant 0 : index
    %c0_4 = arith.constant 0 : index
    %4 = vector.load %arg2[%c0_3, %c0_4] : memref<128x128xf32, #tpu.memory_space<vmem>>, vector<128x128xf32>
    %cst_5 = arith.constant dense<0.000000e+00> : vector<2x128xf32>
    %5 = tpu.matmul %3, %4, %cst_5 {dimension_numbers = #tpu.dot_dimension_numbers<[1], [0], [0], [1], [0, 0, 1, 1], [], []>} : vector<2x128xf32>, vector<128x128xf32>, vector<2x128xf32> -> vector<2x128xf32>
    %cst_6 = arith.constant 0.000000e+00 : f32
    %6 = vector.broadcast %cst_6 : f32 to vector<2x128xf32>
    %7 = arith.maximumf %5, %6 : vector<2x128xf32>
    %c0_7 = arith.constant 0 : index
    %c0_8 = arith.constant 0 : index
    %8 = vector.load %arg3[%c0_7, %c0_8] : memref<128x128xf32, #tpu.memory_space<vmem>>, vector<128x128xf32>
    %cst_9 = arith.constant dense<0.000000e+00> : vector<2x128xf32>
    %9 = tpu.matmul %7, %8, %cst_9 {dimension_numbers = #tpu.dot_dimension_numbers<[1], [0], [0], [1], [0, 0, 1, 1], [], []>} : vector<2x128xf32>, vector<128x128xf32>, vector<2x128xf32> -> vector<2x128xf32>
    %10 = arith.negf %9 : vector<2x128xf32>
    %11 = math.exp %10 : vector<2x128xf32>
    %cst_10 = arith.constant 1.000000e+00 : f32
    %12 = vector.broadcast %cst_10 : f32 to vector<2x128xf32>
    %13 = arith.addf %12, %11 : vector<2x128xf32>
    %14 = arith.divf %12, %13 : vector<2x128xf32>
    %15 = vector.shape_cast %14 : vector<2x128xf32> to vector<2x1x128xf32>
    %c0_11 = arith.constant 0 : index
    %c0_12 = arith.constant 0 : index
    %c0_13 = arith.constant 0 : index
    %16 = vector.load %arg4[%c0_11, %c0_12, %c0_13] : memref<2x1x128xf32, #tpu.memory_space<vmem>>, vector<2x1x128xf32>
    tpu.vector_store %arg4[%c0_11, %c0_12, %c0_13], %15 {strides = array<i32>} : memref<2x1x128xf32, #tpu.memory_space<vmem>>, vector<2x1x128xf32>,
    return
  }
  func.func @transform_0(%arg0: i32) -> (i32, i32, i32) {
    %c0_i32 = arith.constant 0 : i32
    %c0_i32_0 = arith.constant 0 : i32
    %c0_i32_1 = arith.constant 0 : i32
    %c0_i32_2 = arith.constant 0 : i32
    return %c0_i32, %c0_i32_0, %c0_i32_1 : i32, i32, i32
  }
  func.func @transform_1(%arg0: i32) -> (i32, i32) {
    %c0_i32 = arith.constant 0 : i32
    %c0_i32_0 = arith.constant 0 : i32
    %c0_i32_1 = arith.constant 0 : i32
    return %c0_i32, %c0_i32_0 : i32, i32
  }
  func.func @transform_2(%arg0: i32) -> (i32, i32) {
    %c0_i32 = arith.constant 0 : i32
    %c0_i32_0 = arith.constant 0 : i32
    %c0_i32_1 = arith.constant 0 : i32
    return %c0_i32, %c0_i32_0 : i32, i32
  }
  func.func @transform_3(%arg0: i32) -> (i32, i32, i32) {
    %c0_i32 = arith.constant 0 : i32
    %c0_i32_0 = arith.constant 0 : i32
    %c0_i32_1 = arith.constant 0 : i32
    %c0_i32_2 = arith.constant 0 : i32
    return %c0_i32, %c0_i32_0, %c0_i32_1 : i32, i32, i32
  }
}

module attributes {stable_mosaic.version = 11 : i64} {
  func.func @_se_residual_kernel(%arg0: i32, %arg1: i32, %arg2: memref<1x64x128xbf16, #tpu.memory_space<vmem>>, %arg3: memref<1x64x128xf32, #tpu.memory_space<vmem>>, %arg4: memref<1x1x128xf32, #tpu.memory_space<vmem>>, %arg5: memref<1x64x128xbf16, #tpu.memory_space<vmem>>) attributes {dimension_semantics = [#tpu.dimension_semantics<parallel>, #tpu.dimension_semantics<parallel>], iteration_bounds = array<i64: 2, 1>, scalar_prefetch = 0 : i64, scratch_operands = 0 : i64, tpu.core_type = #tpu.core_type<tc>, window_params = [{transform_indices = @transform_0, window_bounds = array<i64: 1, 64, 128>}, {transform_indices = @transform_1, window_bounds = array<i64: 1, 64, 128>}, {transform_indices = @transform_2, window_bounds = array<i64: 1, 1, 128>}, {transform_indices = @transform_3, window_bounds = array<i64: 1, 64, 128>}]} {
    %c0 = arith.constant 0 : index
    %c0_0 = arith.constant 0 : index
    %c0_1 = arith.constant 0 : index
    %0 = vector.load %arg2[%c0, %c0_0, %c0_1] : memref<1x64x128xbf16, #tpu.memory_space<vmem>>, vector<1x64x128xbf16>
    %1 = arith.extf %0 : vector<1x64x128xbf16> to vector<1x64x128xf32>
    %c0_2 = arith.constant 0 : index
    %c0_3 = arith.constant 0 : index
    %c0_4 = arith.constant 0 : index
    %2 = vector.load %arg4[%c0_2, %c0_3, %c0_4] : memref<1x1x128xf32, #tpu.memory_space<vmem>>, vector<1x1x128xf32>
    %3 = vector.broadcast %2 : vector<1x1x128xf32> to vector<1x64x128xf32>
    %4 = arith.mulf %1, %3 : vector<1x64x128xf32>
    %c0_5 = arith.constant 0 : index
    %c0_6 = arith.constant 0 : index
    %c0_7 = arith.constant 0 : index
    %5 = vector.load %arg3[%c0_5, %c0_6, %c0_7] : memref<1x64x128xf32, #tpu.memory_space<vmem>>, vector<1x64x128xf32>
    %6 = arith.addf %4, %5 : vector<1x64x128xf32>
    %cst = arith.constant 0.000000e+00 : f32
    %7 = vector.broadcast %cst : f32 to vector<1x64x128xf32>
    %8 = arith.maximumf %6, %7 : vector<1x64x128xf32>
    %9 = arith.truncf %8 : vector<1x64x128xf32> to vector<1x64x128xbf16>
    %c0_8 = arith.constant 0 : index
    %c0_9 = arith.constant 0 : index
    %c0_10 = arith.constant 0 : index
    %10 = vector.load %arg5[%c0_8, %c0_9, %c0_10] : memref<1x64x128xbf16, #tpu.memory_space<vmem>>, vector<1x64x128xbf16>
    tpu.vector_store %arg5[%c0_8, %c0_9, %c0_10], %9 {strides = array<i32>} : memref<1x64x128xbf16, #tpu.memory_space<vmem>>, vector<1x64x128xbf16>,
    return
  }
  func.func @transform_0(%arg0: i32, %arg1: i32) -> (i32, i32, i32) {
    %c0_i32 = arith.constant 0 : i32
    %c0_i32_0 = arith.constant 0 : i32
    return %arg0, %arg1, %c0_i32 : i32, i32, i32
  }
  func.func @transform_1(%arg0: i32, %arg1: i32) -> (i32, i32, i32) {
    %c0_i32 = arith.constant 0 : i32
    %c0_i32_0 = arith.constant 0 : i32
    return %arg0, %arg1, %c0_i32 : i32, i32, i32
  }
  func.func @transform_2(%arg0: i32, %arg1: i32) -> (i32, i32, i32) {
    %c0_i32 = arith.constant 0 : i32
    %c0_i32_0 = arith.constant 0 : i32
    %c0_i32_1 = arith.constant 0 : i32
    return %arg0, %c0_i32, %c0_i32_0 : i32, i32, i32
  }
  func.func @transform_3(%arg0: i32, %arg1: i32) -> (i32, i32, i32) {
    %c0_i32 = arith.constant 0 : i32
    %c0_i32_0 = arith.constant 0 : i32
    return %arg0, %arg1, %c0_i32 : i32, i32, i32
  }
}

</mosaic_0001>

<llo_original>
// kernel: bottleneck_forward.7
$region0: #{bottleneck_forward.7}
  #allocation0 [shape = 'u32[]', space=smem, size = 0x4, offset = 0x4, fixed_abs, tag = 'smem constant byte address 0x4 - core index']
  #allocation1 [shape = 'u32[144,128]{1,0:T(1,128)}', space=vmem, size = 0x12000, scoped, tag = 'internal scratch']
  #allocation2 [shape = 'f32[64,128]{1,0:T(8,128)}', space=vmem, size = 0x8000, scoped, tag = 'scratch operand']
  %s0 = inlined_call_operand.vmem [shape: bf16[128,128], index: 0, kind: input, shape index: {}]
  %s1 = inlined_call_operand.vmem [shape: bf16[128,128], index: 1, kind: input, shape index: {}]
  %s2 = inlined_call_operand.vmem [shape: f32[1,128], index: 2, kind: input, shape index: {}]
  %s3 = inlined_call_operand.vmem [shape: f32[1,128], index: 3, kind: input, shape index: {}]
  %s4 = inlined_call_operand.vmem [shape: bf16[128,128], index: 4, kind: output, shape index: {0}]
  %s5 = inlined_call_operand.vmem [shape: f32[2,1,128], index: 5, kind: output, shape index: {1}]
  %6 = xla_tuple %s4, %s5
  %s7 = sld [smem:[#allocation0]]
  $region65: #{bottleneck_forward.7} parent=0
    _
  %s9 = ssub.s32 1, %s7
  %s10 = scalar_select 0, %s9, %s7
  loop: start=0, step=1, limit=4
  $region2: #{bottleneck_forward.7} parent=0 // loop_pre_header
    _
  $region3: #{bottleneck_forward.7} parent=0 // loop_header
    %s12 = sphi 0, %s16
    %p13 = scmp.ge.s32.totalorder %s12, 4
    %s19 = sphi 0, %s38
    %s20 = sphi 0, %s34
    %s21 = sphi 0, %s30
    %s22 = sphi 0, %s19
    %s23 = sphi 0, %s20
    %s24 = sphi 0, %s21
    %s25 = sphi 0, %s22
    %s26 = sphi 0, %s23
    %s27 = sphi 0, %s24
    %s43 = sphi 0, %s45
    %s46 = sphi 0, %s43
    %s47 = sphi 0, %s46
    %s63 = sphi 0, %s47
    %s71 = sphi 0, %s73
    %s74 = sphi 0, %s71
    %s75 = sphi 0, %s74
    %s91 = sphi 0, %s75
    %s97 = sphi 0, %s99
    %s100 = sphi 0, %s97
    %s101 = sphi 0, %s100
    %s117 = sphi 0, %s101
    %s123 = sphi 0, %s125
    %s126 = sphi 0, %s123
    %s127 = sphi 0, %s126
    %s143 = sphi 0, %s127
    %s151 = sphi 0, %s153
    %s154 = sphi 0, %s151
    %s155 = sphi 0, %s154
    %s171 = sphi 0, %s155
    %s179 = sphi 0, %s181
    %s182 = sphi 0, %s179
    %s183 = sphi 0, %s182
    %s199 = sphi 0, %s183
  $region4: #{bottleneck_forward.7} parent=0 // loop_header_branch
    %15 = sbr.rel (%p13) target = $region8
  $region5: #{bottleneck_forward.7} parent=0 // loop_body
    %s17 = ssub.s32 %s12, 1
    %s18 = ssub.s32 %s12, 2
    %s28 = sadd.s32 1, %s21
    %p29 = scmp.ge.s32.totalorder %s28, 1
    %s30 = scalar_select %p29, 0, %s28
    %s31 = sadd.s32 1, %s20
    %s32 = scalar_select %p29, %s31, %s20
    %p33 = scmp.ge.s32.totalorder %s32, 1
    %s34 = scalar_select %p33, 0, %s32
    %s35 = sadd.s32 1, %s19
    %s36 = scalar_select %p33, %s35, %s19
    %p37 = scmp.ge.s32.totalorder %s36, 2
    %s38 = scalar_select %p37, 0, %s36
    %s39 = ssub.s32 %s19, %s38
    %s40 = ssub.s32 %s21, %s30
    %s41 = sor.u32 %s39, %s40
    %p42 = scmp.eq.s32.totalorder %s41, 0
    %s44 = sadd.s32 %s43, 1
    %s45 = scalar_select %p42, %s43, %s44
    %p48 = pneg %p42
    %p49 = scmp.eq.s32.totalorder %s12, 1
    %p50 = por %p48, %p49
    %p51 = scmp.ne.s32.totalorder %s43, %s46
    %p52 = scmp.eq.s32.totalorder %s12, 0
    %p53 = por %p51, %p52
    %p54 = scmp.ne.s32.totalorder %s43, %s46
    %p55 = scmp.eq.s32.totalorder %s17, 1
    %p56 = por %p54, %p55
    %p57 = scmp.ne.s32.totalorder %s46, %s47
    %p58 = scmp.eq.s32.totalorder %s17, 0
    %p59 = por %p57, %p58
    %p60 = scmp.ne.s32.totalorder %s46, %s47
    %p61 = scmp.eq.s32.totalorder %s18, 1
    %p62 = por %p60, %p61
    %p64 = scmp.ne.s32.totalorder %s47, %s63
    %p65 = scmp.eq.s32.totalorder %s18, 0
    %p66 = por %p64, %p65
    %s67 = ssub.s32 %s21, %s30
    %s68 = ssub.s32 %s20, %s34
    %s69 = sor.u32 %s67, %s68
    %p70 = scmp.eq.s32.totalorder %s69, 0
    %s72 = sadd.s32 %s71, 1
    %s73 = scalar_select %p70, %s71, %s72
    %p76 = pneg %p70
    %p77 = scmp.eq.s32.totalorder %s12, 1
    %p78 = por %p76, %p77
    %p79 = scmp.ne.s32.totalorder %s71, %s74
    %p80 = scmp.eq.s32.totalorder %s12, 0
    %p81 = por %p79, %p80
    %p82 = scmp.ne.s32.totalorder %s71, %s74
    %p83 = scmp.eq.s32.totalorder %s17, 1
    %p84 = por %p82, %p83
    %p85 = scmp.ne.s32.totalorder %s74, %s75
    %p86 = scmp.eq.s32.totalorder %s17, 0
    %p87 = por %p85, %p86
    %p88 = scmp.ne.s32.totalorder %s74, %s75
    %p89 = scmp.eq.s32.totalorder %s18, 1
    %p90 = por %p88, %p89
    %p92 = scmp.ne.s32.totalorder %s75, %s91
    %p93 = scmp.eq.s32.totalorder %s18, 0
    %p94 = por %p92, %p93
    %s95 = ssub.s32 %s20, %s34
    %p96 = scmp.eq.s32.totalorder %s95, 0
    %s98 = sadd.s32 %s97, 1
    %s99 = scalar_select %p96, %s97, %s98
    %p102 = pneg %p96
    %p103 = scmp.eq.s32.totalorder %s12, 1
    %p104 = por %p102, %p103
    %p105 = scmp.ne.s32.totalorder %s97, %s100
    %p106 = scmp.eq.s32.totalorder %s12, 0
    %p107 = por %p105, %p106
    %p108 = scmp.ne.s32.totalorder %s97, %s100
    %p109 = scmp.eq.s32.totalorder %s17, 1
    %p110 = por %p108, %p109
    %p111 = scmp.ne.s32.totalorder %s100, %s101
    %p112 = scmp.eq.s32.totalorder %s17, 0
    %p113 = por %p111, %p112
    %p114 = scmp.ne.s32.totalorder %s100, %s101
    %p115 = scmp.eq.s32.totalorder %s18, 1
    %p116 = por %p114, %p115
    %p118 = scmp.ne.s32.totalorder %s101, %s117
    %p119 = scmp.eq.s32.totalorder %s18, 0
    %p120 = por %p118, %p119
    %s121 = ssub.s32 %s20, %s34
    %p122 = scmp.eq.s32.totalorder %s121, 0
    %s124 = sadd.s32 %s123, 1
    %s125 = scalar_select %p122, %s123, %s124
    %p128 = pneg %p122
    %p129 = scmp.eq.s32.totalorder %s12, 1
    %p130 = por %p128, %p129
    %p131 = scmp.ne.s32.totalorder %s123, %s126
    %p132 = scmp.eq.s32.totalorder %s12, 0
    %p133 = por %p131, %p132
    %p134 = scmp.ne.s32.totalorder %s123, %s126
    %p135 = scmp.eq.s32.totalorder %s17, 1
    %p136 = por %p134, %p135
    %p137 = scmp.ne.s32.totalorder %s126, %s127
    %p138 = scmp.eq.s32.totalorder %s17, 0
    %p139 = por %p137, %p138
    %p140 = scmp.ne.s32.totalorder %s126, %s127
    %p141 = scmp.eq.s32.totalorder %s18, 1
    %p142 = por %p140, %p141
    %p144 = scmp.ne.s32.totalorder %s127, %s143
    %p145 = scmp.eq.s32.totalorder %s18, 0
    %p146 = por %p144, %p145
    %s147 = ssub.s32 %s19, %s38
    %s148 = ssub.s32 %s20, %s34
    %s149 = sor.u32 %s147, %s148
    %p150 = scmp.eq.s32.totalorder %s149, 0
    %s152 = sadd.s32 %s151, 1
    %s153 = scalar_select %p150, %s151, %s152
    %p156 = pneg %p150
    %p157 = scmp.eq.s32.totalorder %s12, 1
    %p158 = por %p156, %p157
    %p159 = scmp.ne.s32.totalorder %s151, %s154
    %p160 = scmp.eq.s32.totalorder %s12, 0
    %p161 = por %p159, %p160
    %p162 = scmp.ne.s32.totalorder %s151, %s154
    %p163 = scmp.eq.s32.totalorder %s17, 1
    %p164 = por %p162, %p163
    %p165 = scmp.ne.s32.totalorder %s154, %s155
    %p166 = scmp.eq.s32.totalorder %s17, 0
    %p167 = por %p165, %p166
    %p168 = scmp.ne.s32.totalorder %s154, %s155
    %p169 = scmp.eq.s32.totalorder %s18, 1
    %p170 = por %p168, %p169
    %p172 = scmp.ne.s32.totalorder %s155, %s171
    %p173 = scmp.eq.s32.totalorder %s18, 0
    %p174 = por %p172, %p173
    %s175 = ssub.s32 %s19, %s38
    %s176 = ssub.s32 %s20, %s34
    %s177 = sor.u32 %s175, %s176
    %p178 = scmp.eq.s32.totalorder %s177, 0
    %s180 = sadd.s32 %s179, 1
    %s181 = scalar_select %p178, %s179, %s180
    %p184 = pneg %p178
    %p185 = scmp.eq.s32.totalorder %s12, 1
    %p186 = por %p184, %p185
    %p187 = scmp.ne.s32.totalorder %s179, %s182
    %p188 = scmp.eq.s32.totalorder %s12, 0
    %p189 = por %p187, %p188
    %p190 = scmp.ne.s32.totalorder %s179, %s182
    %p191 = scmp.eq.s32.totalorder %s17, 1
    %p192 = por %p190, %p191
    %p193 = scmp.ne.s32.totalorder %s182, %s183
    %p194 = scmp.eq.s32.totalorder %s17, 0
    %p195 = por %p193, %p194
    %p196 = scmp.ne.s32.totalorder %s182, %s183
    %p197 = scmp.eq.s32.totalorder %s18, 1
    %p198 = por %p196, %p197
    %p200 = scmp.ne.s32.totalorder %s183, %s199
    %p201 = scmp.eq.s32.totalorder %s18, 0
    %p202 = por %p200, %p201
    %p203 = scmp.le.s32.totalorder 1, %s12
    %p204 = scmp.lt.s32.totalorder %s12, 3
    %p205 = pnand %p203, %p204
    %p206 = pneg %p205
    // Predicated region
    $region9: #{bottleneck_forward.7} parent=5 // pred_check
      _
    $region10: #{bottleneck_forward.7} parent=5 // pred_check_branch
      %208 = sbr.rel (%p205) target = $region12
    $region11: #{bottleneck_forward.7} parent=5 // pred_region
      %s209 = ssub.s32 %s12, 1
      // Predicated region
      $region13: #{bottleneck_forward.7} parent=11 // pred_check
        %p210 = pneg %p87
      $region14: #{bottleneck_forward.7} parent=11 // pred_check_branch
        %212 = sbr.rel (%p210) target = $region16
      $region15: #{bottleneck_forward.7} parent=11 // pred_region
        %s213 = smul.u32 16, %s24
        %p214 = scmp.lt.s32.totalorder %s213, 15
        %s215 = scalar_select %p214, %s213, 15
        %p216 = scmp.lt.s32.totalorder %s23, 0
        %s217 = scalar_select %p216, %s23, 0
        %s218 = sadd.s32 %s217, %s215
        %s219 = smul.addr %s218, 4
        %s220 = scalar_lea.vmem %s1, %s219
        %s221 = smul.u32 16, %s24
      $region16: #{bottleneck_forward.7} parent=11 // pred_fallthru
        _
      // Predicated region
      $region17: #{bottleneck_forward.7} parent=11 // pred_check
        %p222 = pneg %p113
      $region18: #{bottleneck_forward.7} parent=11 // pred_check_branch
        %224 = sbr.rel (%p222) target = $region20
      $region19: #{bottleneck_forward.7} parent=11 // pred_region
        %p225 = scmp.lt.s32.totalorder %s23, 0
        %s226 = scalar_select %p225, %s23, 0
        %s227 = scalar_lea.vmem %s2, %s226
      $region20: #{bottleneck_forward.7} parent=11 // pred_fallthru
        _
      // Predicated region
      $region21: #{bottleneck_forward.7} parent=11 // pred_check
        %p228 = pneg %p139
      $region22: #{bottleneck_forward.7} parent=11 // pred_check_branch
        %230 = sbr.rel (%p228) target = $region24
      $region23: #{bottleneck_forward.7} parent=11 // pred_region
        %p231 = scmp.lt.s32.totalorder %s23, 0
        %s232 = scalar_select %p231, %s23, 0
        %s233 = scalar_lea.vmem %s3, %s232
      $region24: #{bottleneck_forward.7} parent=11 // pred_fallthru
        _
    $region12: #{bottleneck_forward.7} parent=5 // pred_fallthru
      _
    %p234 = scmp.lt.s32.totalorder %s12, 2
    // Predicated region
    $region25: #{bottleneck_forward.7} parent=5 // pred_check
      %p235 = pneg %p234
    $region26: #{bottleneck_forward.7} parent=5 // pred_check_branch
      %237 = sbr.rel (%p235) target = $region28
    $region27: #{bottleneck_forward.7} parent=5 // pred_region
      // Predicated region
      $region29: #{bottleneck_forward.7} parent=27 // pred_check
        %p238 = pneg %p53
      $region30: #{bottleneck_forward.7} parent=27 // pred_check_branch
        %240 = sbr.rel (%p238) target = $region32
      $region31: #{bottleneck_forward.7} parent=27 // pred_region
        %s241 = smul.u32 8, %s19
        %p242 = scmp.lt.s32.totalorder %s241, 15
        %s243 = scalar_select %p242, %s241, 15
        %p244 = scmp.lt.s32.totalorder %s21, 0
        %s245 = scalar_select %p244, %s21, 0
        %s246 = sadd.s32 %s245, %s243
        %s247 = smul.addr %s246, 4
        %s248 = scalar_lea.vmem %s0, %s247
        %s249 = smul.u32 8, %s19
      $region32: #{bottleneck_forward.7} parent=27 // pred_fallthru
        _
    $region28: #{bottleneck_forward.7} parent=5 // pred_fallthru
      _
    %p250 = scmp.le.s32.totalorder 1, %s12
    %p251 = scmp.lt.s32.totalorder %s12, 3
    %p252 = pnand %p250, %p251
    %p253 = pneg %p252
    // Predicated region
    $region33: #{bottleneck_forward.7} parent=5 // pred_check
      _
    $region34: #{bottleneck_forward.7} parent=5 // pred_check_branch
      %255 = sbr.rel (%p252) target = $region36
    $region35: #{bottleneck_forward.7} parent=5 // pred_region
      %s256 = ssub.s32 %s12, 1
      %s257 = smul.u32 8, %s22
      %p258 = scmp.lt.s32.totalorder %s257, 15
      %s259 = scalar_select %p258, %s257, 15
      %p260 = scmp.lt.s32.totalorder %s24, 0
      %s261 = scalar_select %p260, %s24, 0
      %s262 = sadd.s32 %s261, %s259
      %s263 = smul.addr %s262, 4
      %s264 = scalar_lea.vmem %s0, %s263
      %p265 = pneg %p59
      %p266 = pneg %p56
      %s267 = smul.u32 16, %s24
      %p268 = scmp.lt.s32.totalorder %s267, 15
      %s269 = scalar_select %p268, %s267, 15
      %p270 = scmp.lt.s32.totalorder %s23, 0
      %s271 = scalar_select %p270, %s23, 0
      %s272 = sadd.s32 %s271, %s269
      %s273 = smul.addr %s272, 4
      %s274 = scalar_lea.vmem %s1, %s273
      %p275 = pneg %p87
      %p276 = pneg %p84
      %p277 = scmp.lt.s32.totalorder %s23, 0
      %s278 = scalar_select %p277, %s23, 0
      %s279 = scalar_lea.vmem %s2, %s278
      %p280 = pneg %p113
      %p281 = pneg %p110
      %p282 = scmp.lt.s32.totalorder %s23, 0
      %s283 = scalar_select %p282, %s23, 0
      %s284 = scalar_lea.vmem %s3, %s283
      %p285 = pneg %p139
      %p286 = pneg %p136
      %p287 = pneg %p167
      %p288 = pneg %p164
      %s289 = smul.u32 8, %s22
      %p290 = scmp.lt.s32.totalorder %s289, 15
      %s291 = scalar_select %p290, %s289, 15
      %p292 = scmp.lt.s32.totalorder %s23, 0
      %s293 = scalar_select %p292, %s23, 0
      %s294 = sadd.s32 %s293, %s291
      %s295 = smul.addr %s294, 4
      %s296 = scalar_lea.vmem %s4, %s295
      %p297 = pneg %p195
      %p298 = pneg %p192
      %p299 = scmp.lt.s32.totalorder %s22, 1
      %s300 = scalar_select %p299, %s22, 1
      %p301 = scmp.lt.s32.totalorder %s23, 0
      %s302 = scalar_select %p301, %s23, 0
      %s303 = sadd.s32 %s302, %s300
      %s304 = scalar_lea.vmem %s5, %s303
      %s305 = smul.u32 8, %s22
      %p306 = scmp.lt.s32.totalorder %s305, 15
      %s307 = scalar_select %p306, %s305, 15
      %p308 = scmp.lt.s32.totalorder %s24, 0
      %s309 = scalar_select %p308, %s24, 0
      %s310 = sadd.s32 %s309, %s307
      %s311 = smul.addr %s310, 4
      %s312 = scalar_lea.vmem %s0, %s311
      %s313 = smul.u32 8, %s22
      %s314 = smul.u32 16, %s24
      %p315 = scmp.lt.s32.totalorder %s314, 15
      %s316 = scalar_select %p315, %s314, 15
      %p317 = scmp.lt.s32.totalorder %s23, 0
      %s318 = scalar_select %p317, %s23, 0
      %s319 = sadd.s32 %s318, %s316
      %s320 = smul.addr %s319, 4
      %s321 = scalar_lea.vmem %s1, %s320
      %s322 = smul.u32 16, %s24
      %p323 = scmp.lt.s32.totalorder %s23, 0
      %s324 = scalar_select %p323, %s23, 0
      %s325 = scalar_lea.vmem %s2, %s324
      %p326 = scmp.lt.s32.totalorder %s23, 0
      %s327 = scalar_select %p326, %s23, 0
      %s328 = scalar_lea.vmem %s3, %s327
      %s329 = smul.u32 8, %s22
      %p330 = scmp.lt.s32.totalorder %s329, 15
      %s331 = scalar_select %p330, %s329, 15
      %p332 = scmp.lt.s32.totalorder %s23, 0
      %s333 = scalar_select %p332, %s23, 0
      %s334 = sadd.s32 %s333, %s331
      %s335 = smul.addr %s334, 4
      %s336 = scalar_lea.vmem %s4, %s335
      %s337 = smul.u32 8, %s22
      %p338 = scmp.lt.s32.totalorder %s22, 1
      %s339 = scalar_select %p338, %s22, 1
      %p340 = scmp.lt.s32.totalorder %s23, 0
      %s341 = scalar_select %p340, %s23, 0
      %s342 = sadd.s32 %s341, %s339
      %s343 = scalar_lea.vmem %s5, %s342
      %p345 = scmp.eq.s32.totalorder %s24, 0
      // Predicated region
      $region37: #{bottleneck_forward.7} parent=35 // pred_check
        %p346 = pneg %p345
      $region38: #{bottleneck_forward.7} parent=35 // pred_check_branch
        %348 = sbr.rel (%p346) target = $region40
      $region39: #{bottleneck_forward.7} parent=35 // pred_region
        %349 = vst [vmem:[#allocation2] sm:$0xff] 0.0
        %350 = vst [vmem:[#allocation2 + $0x8] sm:$0xff] 0.0
        %351 = vst [vmem:[#allocation2 + $0x10] sm:$0xff] 0.0
        %352 = vst [vmem:[#allocation2 + $0x18] sm:$0xff] 0.0
        %353 = vst [vmem:[#allocation2 + $0x20] sm:$0xff] 0.0
        %354 = vst [vmem:[#allocation2 + $0x28] sm:$0xff] 0.0
        %355 = vst [vmem:[#allocation2 + $0x30] sm:$0xff] 0.0
        %356 = vst [vmem:[#allocation2 + $0x38] sm:$0xff] 0.0
      $region40: #{bottleneck_forward.7} parent=35 // pred_fallthru
        _
      %v357 = vld [vmem:[#allocation2] sm:$0xff]
      %v358 = vld [vmem:[#allocation2 + $0x8] sm:$0xff]
      %v359 = vld [vmem:[#allocation2 + $0x10] sm:$0xff]
      %v360 = vld [vmem:[#allocation2 + $0x18] sm:$0xff]
      %v361 = vld [vmem:[#allocation2 + $0x20] sm:$0xff]
      %v362 = vld [vmem:[#allocation2 + $0x28] sm:$0xff]
      %v363 = vld [vmem:[#allocation2 + $0x30] sm:$0xff]
      %v364 = vld [vmem:[#allocation2 + $0x38] sm:$0xff]
      %v365 = vld [vmem:[%s312] sm:$0xf]
      %v366 = vld [vmem:[%s312 + $0x4] sm:$0xf]
      %v367 = vld [vmem:[%s312 + $0x8] sm:$0xf]
      %v368 = vld [vmem:[%s312 + $0xc] sm:$0xf]
      %v369 = vld [vmem:[%s312 + $0x10] sm:$0xf]
      %v370 = vld [vmem:[%s312 + $0x14] sm:$0xf]
      %v371 = vld [vmem:[%s312 + $0x18] sm:$0xf]
      %v372 = vld [vmem:[%s312 + $0x1c] sm:$0xf]
      %v373 = vld [vmem:[%s321] sm:$0xf]
      %v374 = vld [vmem:[%s321 + $0x4] sm:$0xf]
      %v375 = vld [vmem:[%s321 + $0x8] sm:$0xf]
      %v376 = vld [vmem:[%s321 + $0xc] sm:$0xf]
      %v377 = vld [vmem:[%s321 + $0x10] sm:$0xf]
      %v378 = vld [vmem:[%s321 + $0x14] sm:$0xf]
      %v379 = vld [vmem:[%s321 + $0x18] sm:$0xf]
      %v380 = vld [vmem:[%s321 + $0x1c] sm:$0xf]
      %v381 = vld [vmem:[%s321 + $0x20] sm:$0xf]
      %v382 = vld [vmem:[%s321 + $0x24] sm:$0xf]
      %v383 = vld [vmem:[%s321 + $0x28] sm:$0xf]
      %v384 = vld [vmem:[%s321 + $0x2c] sm:$0xf]
      %v385 = vld [vmem:[%s321 + $0x30] sm:$0xf]
      %v386 = vld [vmem:[%s321 + $0x34] sm:$0xf]
      %v387 = vld [vmem:[%s321 + $0x38] sm:$0xf]
      %v388 = vld [vmem:[%s321 + $0x3c] sm:$0xf]
      %v397 = vunpack.c.l.b16 %v365
      %v398 = vunpack.c.l.b16 %v366
      %v399 = vunpack.c.l.b16 %v367
      %v400 = vunpack.c.l.b16 %v368
      %v401 = vunpack.c.l.b16 %v369
      %v402 = vunpack.c.l.b16 %v370
      %v403 = vunpack.c.l.b16 %v371
      %v404 = vunpack.c.l.b16 %v372
      %v405 = vpack.c.b16 %v398, %v397
      %v406 = vpack.c.b16 %v400, %v399
      %v407 = vpack.c.b16 %v402, %v401
      %v408 = vpack.c.b16 %v404, %v403
      %v429 = vunpack.c.l.b16 %v373
      %v430 = vunpack.c.l.b16 %v374
      %v431 = vunpack.c.l.b16 %v375
      %v432 = vunpack.c.l.b16 %v376
      %v433 = vunpack.c.l.b16 %v377
      %v434 = vunpack.c.l.b16 %v378
      %v435 = vunpack.c.l.b16 %v379
      %v436 = vunpack.c.l.b16 %v380
      %v437 = vunpack.c.l.b16 %v381
      %v438 = vunpack.c.l.b16 %v382
      %v439 = vunpack.c.l.b16 %v383
      %v440 = vunpack.c.l.b16 %v384
      %v441 = vunpack.c.l.b16 %v385
      %v442 = vunpack.c.l.b16 %v386
      %v443 = vunpack.c.l.b16 %v387
      %v444 = vunpack.c.l.b16 %v388
      %v445 = vpack.c.b16 %v430, %v429
      %v446 = vpack.c.b16 %v432, %v431
      %v447 = vpack.c.b16 %v434, %v433
      %v448 = vpack.c.b16 %v436, %v435
      %v449 = vpack.c.b16 %v438, %v437
      %v450 = vpack.c.b16 %v440, %v439
      %v451 = vpack.c.b16 %v442, %v441
      %v452 = vpack.c.b16 %v444, %v443
      %461 = vmatprep.subr.bf16.mxu0 0
      %462 = vmatpush1.bf16.msra.mxu0 %v445
      %463 = vmatprep.subr.bf16.mxu0 0
      %464 = vmatpush1.bf16.msra.mxu0 %v446
      %465 = vmatprep.subr.bf16.mxu0 0
      %466 = vmatpush1.bf16.msra.mxu0 %v447
      %467 = vmatprep.subr.bf16.mxu0 0
      %468 = vmatpush1.bf16.msra.mxu0 %v448
      %469 = vmatprep.subr.bf16.mxu0 0
      %470 = vmatpush1.bf16.msra.mxu0 %v449
      %471 = vmatprep.subr.bf16.mxu0 0
      %472 = vmatpush1.bf16.msra.mxu0 %v450
      %473 = vmatprep.subr.bf16.mxu0 0
      %474 = vmatpush1.bf16.msra.mxu0 %v451
      %475 = vmatprep.subr.bf16.mxu0 0
      %476 = vmatpush1.bf16.msra.mxu0 %v452
      %477 = vmatprep.subr.bf16.mxu0 0
      %478 = vmatpush1.bf16.msra.mxu0 0
      %479 = vmatprep.subr.bf16.mxu0 0
      %480 = vmatpush1.bf16.msra.mxu0 0
      %481 = vmatprep.subr.bf16.mxu0 0
      %482 = vmatpush1.bf16.msra.mxu0 0
      %483 = vmatprep.subr.bf16.mxu0 0
      %484 = vmatpush1.bf16.msra.mxu0 0
      %485 = vmatprep.subr.bf16.mxu0 0
      %486 = vmatpush1.bf16.msra.mxu0 0
      %487 = vmatprep.subr.bf16.mxu0 0
      %488 = vmatpush1.bf16.msra.mxu0 0
      %489 = vmatprep.subr.bf16.mxu0 0
      %490 = vmatpush1.bf16.msra.mxu0 0
      %491 = vmatprep.subr.bf16.mxu0 0
      %492 = vmatpush1.bf16.msra.mxu0 0
      %493 = vmatprep.mubr.bf16.mxu0 0
      %494 = vmatmul.mubr.bf16.gmra.mrb[0].mxu0 %v405
      %v495 = vpop.f32.mrb[0].mxu0
      %v496 = vadd.f32 0.0, %v495
      %v497 = vpop.f32.mrb[0].mxu0
      %v498 = vpop.f32.mrb[0].mxu0
      %v499 = vadd.f32 0.0, %v498
      %v500 = vpop.f32.mrb[0].mxu0
      %501 = vmatprep.mubr.bf16.mxu0 0
      %502 = vmatmul.mubr.bf16.gmra.mrb[0].mxu0 %v406
      %v503 = vpop.f32.mrb[0].mxu0
      %v504 = vadd.f32 0.0, %v503
      %v505 = vpop.f32.mrb[0].mxu0
      %v506 = vpop.f32.mrb[0].mxu0
      %v507 = vadd.f32 0.0, %v506
      %v508 = vpop.f32.mrb[0].mxu0
      %509 = vmatprep.mubr.bf16.mxu0 0
      %510 = vmatmul.mubr.bf16.gmra.mrb[0].mxu0 %v407
      %v511 = vpop.f32.mrb[0].mxu0
      %v512 = vadd.f32 0.0, %v511
      %v513 = vpop.f32.mrb[0].mxu0
      %v514 = vpop.f32.mrb[0].mxu0
      %v515 = vadd.f32 0.0, %v514
      %v516 = vpop.f32.mrb[0].mxu0
      %517 = vmatprep.mubr.bf16.mxu0 0
      %518 = vmatmul.mubr.bf16.gmra.mrb[0].mxu0 %v408
      %v519 = vpop.f32.mrb[0].mxu0
      %v520 = vadd.f32 0.0, %v519
      %v521 = vpop.f32.mrb[0].mxu0
      %v522 = vpop.f32.mrb[0].mxu0
      %v523 = vadd.f32 0.0, %v522
      %v524 = vpop.f32.mrb[0].mxu0
      %525 = vdwg.mxu0
      %v526 = vadd.f32 %v357, %v496
      %v527 = vadd.f32 %v358, %v499
      %v528 = vadd.f32 %v359, %v504
      %v529 = vadd.f32 %v360, %v507
      %v530 = vadd.f32 %v361, %v512
      %v531 = vadd.f32 %v362, %v515
      %v532 = vadd.f32 %v363, %v520
      %v533 = vadd.f32 %v364, %v523
      %534 = vst [vmem:[#allocation2] sm:$0xff] %v526
      %535 = vst [vmem:[#allocation2 + $0x8] sm:$0xff] %v527
      %536 = vst [vmem:[#allocation2 + $0x10] sm:$0xff] %v528
      %537 = vst [vmem:[#allocation2 + $0x18] sm:$0xff] %v529
      %538 = vst [vmem:[#allocation2 + $0x20] sm:$0xff] %v530
      %539 = vst [vmem:[#allocation2 + $0x28] sm:$0xff] %v531
      %540 = vst [vmem:[#allocation2 + $0x30] sm:$0xff] %v532
      %541 = vst [vmem:[#allocation2 + $0x38] sm:$0xff] %v533
      // Predicated region
      $region41: #{bottleneck_forward.7} parent=35 // pred_check
        %p542 = pneg %p345
      $region42: #{bottleneck_forward.7} parent=35 // pred_check_branch
        %544 = sbr.rel (%p542) target = $region44
      $region43: #{bottleneck_forward.7} parent=35 // pred_region
        %v545 = vld [vmem:[#allocation2] sm:$0xff]
        %v546 = vld [vmem:[#allocation2 + $0x8] sm:$0xff]
        %v547 = vld [vmem:[#allocation2 + $0x10] sm:$0xff]
        %v548 = vld [vmem:[#allocation2 + $0x18] sm:$0xff]
        %v549 = vld [vmem:[#allocation2 + $0x20] sm:$0xff]
        %v550 = vld [vmem:[#allocation2 + $0x28] sm:$0xff]
        %v551 = vld [vmem:[#allocation2 + $0x30] sm:$0xff]
        %v552 = vld [vmem:[#allocation2 + $0x38] sm:$0xff]
        %v553 = vld [vmem:[%s325] sm:$0x1]
        %v555 = vlaneseq
        %v556 = vshrl.u32 %v555, 7
        %v557 = vsub.s32 0, %v556
        %v558 = vrot.slane %v553, %v557
        %v560 = vmul.f32 %v545, %v558
        %v561 = vmul.f32 %v546, %v558
        %v562 = vmul.f32 %v547, %v558
        %v563 = vmul.f32 %v548, %v558
        %v564 = vmul.f32 %v549, %v558
        %v565 = vmul.f32 %v550, %v558
        %v566 = vmul.f32 %v551, %v558
        %v567 = vmul.f32 %v552, %v558
        %v568 = vld [vmem:[%s328] sm:$0x1]
        %v570 = vlaneseq
        %v571 = vshrl.u32 %v570, 7
        %v572 = vsub.s32 0, %v571
        %v573 = vrot.slane %v568, %v572
        %v575 = vadd.f32 %v560, %v573
        %v576 = vadd.f32 %v561, %v573
        %v577 = vadd.f32 %v562, %v573
        %v578 = vadd.f32 %v563, %v573
        %v579 = vadd.f32 %v564, %v573
        %v580 = vadd.f32 %v565, %v573
        %v581 = vadd.f32 %v566, %v573
        %v582 = vadd.f32 %v567, %v573
        %v583 = vpack.c.bf16 %v576, %v575
        %v584 = vpack.c.bf16 %v578, %v577
        %v585 = vpack.c.bf16 %v580, %v579
        %v586 = vpack.c.bf16 %v582, %v581
        %v591 = vunpack.c.l.b16 %v583
        %v592 = vunpack.c.h.b16 %v583
        %v593 = vunpack.c.l.b16 %v584
        %v594 = vunpack.c.h.b16 %v584
        %v595 = vunpack.c.l.b16 %v585
        %v596 = vunpack.c.h.b16 %v585
        %v597 = vunpack.c.l.b16 %v586
        %v598 = vunpack.c.h.b16 %v586
        %v599 = vpack.c.b16 %v591, %v591
        %v600 = vpack.c.b16 %v592, %v592
        %v601 = vpack.c.b16 %v593, %v593
        %v602 = vpack.c.b16 %v594, %v594
        %v603 = vpack.c.b16 %v595, %v595
        %v604 = vpack.c.b16 %v596, %v596
        %v605 = vpack.c.b16 %v597, %v597
        %v606 = vpack.c.b16 %v598, %v598
        %615 = vst [vmem:[%s336] sm:$0xf] %v599
        %616 = vst [vmem:[%s336 + $0x4] sm:$0xf] %v600
        %617 = vst [vmem:[%s336 + $0x8] sm:$0xf] %v601
        %618 = vst [vmem:[%s336 + $0xc] sm:$0xf] %v602
        %619 = vst [vmem:[%s336 + $0x10] sm:$0xf] %v603
        %620 = vst [vmem:[%s336 + $0x14] sm:$0xf] %v604
        %621 = vst [vmem:[%s336 + $0x18] sm:$0xf] %v605
        %622 = vst [vmem:[%s336 + $0x1c] sm:$0xf] %v606
        %v623 = vadd.f32 %v575, %v576
        %v624 = vadd.f32 %v623, %v577
        %v625 = vadd.f32 %v624, %v578
        %v626 = vadd.f32 %v625, %v579
        %v627 = vadd.f32 %v626, %v580
        %v628 = vadd.f32 %v627, %v581
        %v629 = vadd.f32 %v628, %v582
        %v630 = vrot.slane %v629, 4
        %v631 = vadd.f32 %v629, %v630
        %v632 = vrot.slane %v631, 2
        %v633 = vadd.f32 %v631, %v632
        %v634 = vrot.slane %v633, 1
        %v635 = vadd.f32 %v633, %v634
        %636 = vst [vmem:[%s343] sm:$0x1] %v635
      $region44: #{bottleneck_forward.7} parent=35 // pred_fallthru
        _
      %s637 = smul.u32 8, %s22
      %p638 = scmp.lt.s32.totalorder %s637, 15
      %s639 = scalar_select %p638, %s637, 15
      %p640 = scmp.lt.s32.totalorder %s23, 0
      %s641 = scalar_select %p640, %s23, 0
      %s642 = sadd.s32 %s641, %s639
      %s643 = smul.addr %s642, 4
      %s644 = scalar_lea.vmem %s4, %s643
      %p645 = scmp.lt.s32.totalorder %s22, 1
      %s646 = scalar_select %p645, %s22, 1
      %p647 = scmp.lt.s32.totalorder %s23, 0
      %s648 = scalar_select %p647, %s23, 0
      %s649 = sadd.s32 %s648, %s646
      %s650 = scalar_lea.vmem %s5, %s649
      // Predicated region
      $region45: #{bottleneck_forward.7} parent=35 // pred_check
        %p651 = pneg %p164
      $region46: #{bottleneck_forward.7} parent=35 // pred_check_branch
        %653 = sbr.rel (%p651) target = $region48
      $region47: #{bottleneck_forward.7} parent=35 // pred_region
        %s654 = smul.u32 8, %s22
      $region48: #{bottleneck_forward.7} parent=35 // pred_fallthru
        _
      // Predicated region
      $region49: #{bottleneck_forward.7} parent=35 // pred_check
        %p655 = pneg %p192
      $region50: #{bottleneck_forward.7} parent=35 // pred_check_branch
        %657 = sbr.rel (%p655) target = $region52
      $region51: #{bottleneck_forward.7} parent=35 // pred_region
        _
      $region52: #{bottleneck_forward.7} parent=35 // pred_fallthru
        _
    $region36: #{bottleneck_forward.7} parent=5 // pred_fallthru
      _
    %p658 = scmp.le.s32.totalorder 2, %s12
    // Predicated region
    $region53: #{bottleneck_forward.7} parent=5 // pred_check
      %p659 = pneg %p658
    $region54: #{bottleneck_forward.7} parent=5 // pred_check_branch
      %661 = sbr.rel (%p659) target = $region56
    $region55: #{bottleneck_forward.7} parent=5 // pred_region
      %s662 = ssub.s32 %s12, 2
      // Predicated region
      $region57: #{bottleneck_forward.7} parent=55 // pred_check
        %p663 = pneg %p170
      $region58: #{bottleneck_forward.7} parent=55 // pred_check_branch
        %665 = sbr.rel (%p663) target = $region60
      $region59: #{bottleneck_forward.7} parent=55 // pred_region
        %s666 = smul.u32 8, %s25
        %p667 = scmp.lt.s32.totalorder %s666, 15
        %s668 = scalar_select %p667, %s666, 15
        %p669 = scmp.lt.s32.totalorder %s26, 0
        %s670 = scalar_select %p669, %s26, 0
        %s671 = sadd.s32 %s670, %s668
        %s672 = smul.addr %s671, 4
        %s673 = scalar_lea.vmem %s4, %s672
      $region60: #{bottleneck_forward.7} parent=55 // pred_fallthru
        _
      // Predicated region
      $region61: #{bottleneck_forward.7} parent=55 // pred_check
        %p674 = pneg %p198
      $region62: #{bottleneck_forward.7} parent=55 // pred_check_branch
        %676 = sbr.rel (%p674) target = $region64
      $region63: #{bottleneck_forward.7} parent=55 // pred_region
        %p677 = scmp.lt.s32.totalorder %s25, 1
        %s678 = scalar_select %p677, %s25, 1
        %p679 = scmp.lt.s32.totalorder %s26, 0
        %s680 = scalar_select %p679, %s26, 0
        %s681 = sadd.s32 %s680, %s678
        %s682 = scalar_lea.vmem %s5, %s681
      $region64: #{bottleneck_forward.7} parent=55 // pred_fallthru
        _
    $region56: #{bottleneck_forward.7} parent=5 // pred_fallthru
      _
  $region6: #{bottleneck_forward.7} parent=0 // loop_footer
    %s16 = sadd.s32 1, %s12
  $region7: #{bottleneck_forward.7} parent=0 // loop_footer_branch
    %11 = sbr.rel target = $region3
  $region8: #{bottleneck_forward.7} parent=0 // loop_exit
    _

// kernel: bottleneck_forward.5
$region0: #{bottleneck_forward.5}
  #allocation0 [shape = 'u32[]', space=smem, size = 0x4, offset = 0x4, fixed_abs, tag = 'smem constant byte address 0x4 - core index']
  #allocation1 [shape = 'u32[144,128]{1,0:T(1,128)}', space=vmem, size = 0x12000, scoped, tag = 'internal scratch']
  #allocation2 [shape = 'f32[128,128]{1,0:T(8,128)}', space=vmem, size = 0x10000, scoped, tag = 'scratch operand']
  %s0 = inlined_call_operand.vmem [shape: f32[128,128], index: 0, kind: input, shape index: {}]
  %s1 = inlined_call_operand.vmem [shape: bf16[128,128], index: 1, kind: input, shape index: {}]
  %s2 = inlined_call_operand.vmem [shape: f32[1,128], index: 2, kind: input, shape index: {}]
  %s3 = inlined_call_operand.vmem [shape: f32[1,128], index: 3, kind: input, shape index: {}]
  %s4 = inlined_call_operand.vmem [shape: bf16[128,128], index: 4, kind: output, shape index: {}]
  %s5 = sld [smem:[#allocation0]]
  $region34: #{bottleneck_forward.5} parent=0
    _
  %s7 = ssub.s32 1, %s5
  %s8 = scalar_select 0, %s7, %s5
  // Predicated region
  $region2: #{bottleneck_forward.5} parent=0 // pred_check
    _
  $region3: #{bottleneck_forward.5} parent=0 // pred_check_branch
    %10 = sbr.rel (0) target = $region5
  $region4: #{bottleneck_forward.5} parent=0 // pred_region
    _
  $region5: #{bottleneck_forward.5} parent=0 // pred_fallthru
    _
  // Predicated region
  $region6: #{bottleneck_forward.5} parent=0 // pred_check
    _
  $region7: #{bottleneck_forward.5} parent=0 // pred_check_branch
    %12 = sbr.rel (0) target = $region9
  $region8: #{bottleneck_forward.5} parent=0 // pred_region
    _
  $region9: #{bottleneck_forward.5} parent=0 // pred_fallthru
    _
  // Predicated region
  $region10: #{bottleneck_forward.5} parent=0 // pred_check
    _
  $region11: #{bottleneck_forward.5} parent=0 // pred_check_branch
    %14 = sbr.rel (0) target = $region13
  $region12: #{bottleneck_forward.5} parent=0 // pred_region
    _
  $region13: #{bottleneck_forward.5} parent=0 // pred_fallthru
    _
  // Predicated region
  $region14: #{bottleneck_forward.5} parent=0 // pred_check
    _
  $region15: #{bottleneck_forward.5} parent=0 // pred_check_branch
    %16 = sbr.rel (0) target = $region17
  $region16: #{bottleneck_forward.5} parent=0 // pred_region
    _
  $region17: #{bottleneck_forward.5} parent=0 // pred_fallthru
    _
  %p18 = scmp.eq.s32.totalorder 0, 0
  // Predicated region
  $region18: #{bottleneck_forward.5} parent=0 // pred_check
    %p19 = pneg %p18
  $region19: #{bottleneck_forward.5} parent=0 // pred_check_branch
    %21 = sbr.rel (%p19) target = $region21
  $region20: #{bottleneck_forward.5} parent=0 // pred_region
    %22 = vst [vmem:[#allocation2] sm:$0xff] 0.0
    %23 = vst [vmem:[#allocation2 + $0x8] sm:$0xff] 0.0
    %24 = vst [vmem:[#allocation2 + $0x10] sm:$0xff] 0.0
    %25 = vst [vmem:[#allocation2 + $0x18] sm:$0xff] 0.0
    %26 = vst [vmem:[#allocation2 + $0x20] sm:$0xff] 0.0
    %27 = vst [vmem:[#allocation2 + $0x28] sm:$0xff] 0.0
    %28 = vst [vmem:[#allocation2 + $0x30] sm:$0xff] 0.0
    %29 = vst [vmem:[#allocation2 + $0x38] sm:$0xff] 0.0
    %30 = vst [vmem:[#allocation2 + $0x40] sm:$0xff] 0.0
    %31 = vst [vmem:[#allocation2 + $0x48] sm:$0xff] 0.0
    %32 = vst [vmem:[#allocation2 + $0x50] sm:$0xff] 0.0
    %33 = vst [vmem:[#allocation2 + $0x58] sm:$0xff] 0.0
    %34 = vst [vmem:[#allocation2 + $0x60] sm:$0xff] 0.0
    %35 = vst [vmem:[#allocation2 + $0x68] sm:$0xff] 0.0
    %36 = vst [vmem:[#allocation2 + $0x70] sm:$0xff] 0.0
    %37 = vst [vmem:[#allocation2 + $0x78] sm:$0xff] 0.0
  $region21: #{bottleneck_forward.5} parent=0 // pred_fallthru
    _
  %v38 = vld [vmem:[#allocation2] sm:$0xff]
  %v39 = vld [vmem:[#allocation2 + $0x8] sm:$0xff]
  %v40 = vld [vmem:[#allocation2 + $0x10] sm:$0xff]
  %v41 = vld [vmem:[#allocation2 + $0x18] sm:$0xff]
  %v42 = vld [vmem:[#allocation2 + $0x20] sm:$0xff]
  %v43 = vld [vmem:[#allocation2 + $0x28] sm:$0xff]
  %v44 = vld [vmem:[#allocation2 + $0x30] sm:$0xff]
  %v45 = vld [vmem:[#allocation2 + $0x38] sm:$0xff]
  %v46 = vld [vmem:[#allocation2 + $0x40] sm:$0xff]
  %v47 = vld [vmem:[#allocation2 + $0x48] sm:$0xff]
  %v48 = vld [vmem:[#allocation2 + $0x50] sm:$0xff]
  %v49 = vld [vmem:[#allocation2 + $0x58] sm:$0xff]
  %v50 = vld [vmem:[#allocation2 + $0x60] sm:$0xff]
  %v51 = vld [vmem:[#allocation2 + $0x68] sm:$0xff]
  %v52 = vld [vmem:[#allocation2 + $0x70] sm:$0xff]
  %v53 = vld [vmem:[#allocation2 + $0x78] sm:$0xff]
  %v54 = vld [vmem:[%s0] sm:$0xff]
  %v55 = vld [vmem:[%s0 + $0x8] sm:$0xff]
  %v56 = vld [vmem:[%s0 + $0x10] sm:$0xff]
  %v57 = vld [vmem:[%s0 + $0x18] sm:$0xff]
  %v58 = vld [vmem:[%s0 + $0x20] sm:$0xff]
  %v59 = vld [vmem:[%s0 + $0x28] sm:$0xff]
  %v60 = vld [vmem:[%s0 + $0x30] sm:$0xff]
  %v61 = vld [vmem:[%s0 + $0x38] sm:$0xff]
  %v62 = vld [vmem:[%s0 + $0x40] sm:$0xff]
  %v63 = vld [vmem:[%s0 + $0x48] sm:$0xff]
  %v64 = vld [vmem:[%s0 + $0x50] sm:$0xff]
  %v65 = vld [vmem:[%s0 + $0x58] sm:$0xff]
  %v66 = vld [vmem:[%s0 + $0x60] sm:$0xff]
  %v67 = vld [vmem:[%s0 + $0x68] sm:$0xff]
  %v68 = vld [vmem:[%s0 + $0x70] sm:$0xff]
  %v69 = vld [vmem:[%s0 + $0x78] sm:$0xff]
  %v70 = vpack.c.bf16 %v55, %v54
  %v71 = vpack.c.bf16 %v57, %v56
  %v72 = vpack.c.bf16 %v59, %v58
  %v73 = vpack.c.bf16 %v61, %v60
  %v74 = vpack.c.bf16 %v63, %v62
  %v75 = vpack.c.bf16 %v65, %v64
  %v76 = vpack.c.bf16 %v67, %v66
  %v77 = vpack.c.bf16 %v69, %v68
  %v78 = vld [vmem:[%s1] sm:$0xf]
  %v79 = vld [vmem:[%s1 + $0x4] sm:$0xf]
  %v80 = vld [vmem:[%s1 + $0x8] sm:$0xf]
  %v81 = vld [vmem:[%s1 + $0xc] sm:$0xf]
  %v82 = vld [vmem:[%s1 + $0x10] sm:$0xf]
  %v83 = vld [vmem:[%s1 + $0x14] sm:$0xf]
  %v84 = vld [vmem:[%s1 + $0x18] sm:$0xf]
  %v85 = vld [vmem:[%s1 + $0x1c] sm:$0xf]
  %v86 = vld [vmem:[%s1 + $0x20] sm:$0xf]
  %v87 = vld [vmem:[%s1 + $0x24] sm:$0xf]
  %v88 = vld [vmem:[%s1 + $0x28] sm:$0xf]
  %v89 = vld [vmem:[%s1 + $0x2c] sm:$0xf]
  %v90 = vld [vmem:[%s1 + $0x30] sm:$0xf]
  %v91 = vld [vmem:[%s1 + $0x34] sm:$0xf]
  %v92 = vld [vmem:[%s1 + $0x38] sm:$0xf]
  %v93 = vld [vmem:[%s1 + $0x3c] sm:$0xf]
  %v110 = vunpack.c.l.b16 %v78
  %v111 = vunpack.c.l.b16 %v79
  %v112 = vunpack.c.l.b16 %v80
  %v113 = vunpack.c.l.b16 %v81
  %v114 = vunpack.c.l.b16 %v82
  %v115 = vunpack.c.l.b16 %v83
  %v116 = vunpack.c.l.b16 %v84
  %v117 = vunpack.c.l.b16 %v85
  %v118 = vunpack.c.l.b16 %v86
  %v119 = vunpack.c.l.b16 %v87
  %v120 = vunpack.c.l.b16 %v88
  %v121 = vunpack.c.l.b16 %v89
  %v122 = vunpack.c.l.b16 %v90
  %v123 = vunpack.c.l.b16 %v91
  %v124 = vunpack.c.l.b16 %v92
  %v125 = vunpack.c.l.b16 %v93
  %v126 = vpack.c.b16 %v111, %v110
  %v127 = vpack.c.b16 %v113, %v112
  %v128 = vpack.c.b16 %v115, %v114
  %v129 = vpack.c.b16 %v117, %v116
  %v130 = vpack.c.b16 %v119, %v118
  %v131 = vpack.c.b16 %v121, %v120
  %v132 = vpack.c.b16 %v123, %v122
  %v133 = vpack.c.b16 %v125, %v124
  %142 = vmatprep.subr.bf16.mxu0 0
  %143 = vmatpush1.bf16.msra.mxu0 %v126
  %144 = vmatprep.subr.bf16.mxu0 0
  %145 = vmatpush1.bf16.msra.mxu0 %v127
  %146 = vmatprep.subr.bf16.mxu0 0
  %147 = vmatpush1.bf16.msra.mxu0 %v128
  %148 = vmatprep.subr.bf16.mxu0 0
  %149 = vmatpush1.bf16.msra.mxu0 %v129
  %150 = vmatprep.subr.bf16.mxu0 0
  %151 = vmatpush1.bf16.msra.mxu0 %v130
  %152 = vmatprep.subr.bf16.mxu0 0
  %153 = vmatpush1.bf16.msra.mxu0 %v131
  %154 = vmatprep.subr.bf16.mxu0 0
  %155 = vmatpush1.bf16.msra.mxu0 %v132
  %156 = vmatprep.subr.bf16.mxu0 0
  %157 = vmatpush1.bf16.msra.mxu0 %v133
  %158 = vmatprep.subr.bf16.mxu0 0
  %159 = vmatpush1.bf16.msra.mxu0 0
  %160 = vmatprep.subr.bf16.mxu0 0
  %161 = vmatpush1.bf16.msra.mxu0 0
  %162 = vmatprep.subr.bf16.mxu0 0
  %163 = vmatpush1.bf16.msra.mxu0 0
  %164 = vmatprep.subr.bf16.mxu0 0
  %165 = vmatpush1.bf16.msra.mxu0 0
  %166 = vmatprep.subr.bf16.mxu0 0
  %167 = vmatpush1.bf16.msra.mxu0 0
  %168 = vmatprep.subr.bf16.mxu0 0
  %169 = vmatpush1.bf16.msra.mxu0 0
  %170 = vmatprep.subr.bf16.mxu0 0
  %171 = vmatpush1.bf16.msra.mxu0 0
  %172 = vmatprep.subr.bf16.mxu0 0
  %173 = vmatpush1.bf16.msra.mxu0 0
  %174 = vmatprep.mubr.bf16.mxu0 0
  %175 = vmatmul.mubr.bf16.gmra.mrb[0].mxu0 %v70
  %v176 = vpop.f32.mrb[0].mxu0
  %v177 = vadd.f32 0.0, %v176
  %v178 = vpop.f32.mrb[0].mxu0
  %v179 = vpop.f32.mrb[0].mxu0
  %v180 = vadd.f32 0.0, %v179
  %v181 = vpop.f32.mrb[0].mxu0
  %182 = vmatprep.mubr.bf16.mxu0 0
  %183 = vmatmul.mubr.bf16.gmra.mrb[0].mxu0 %v71
  %v184 = vpop.f32.mrb[0].mxu0
  %v185 = vadd.f32 0.0, %v184
  %v186 = vpop.f32.mrb[0].mxu0
  %v187 = vpop.f32.mrb[0].mxu0
  %v188 = vadd.f32 0.0, %v187
  %v189 = vpop.f32.mrb[0].mxu0
  %190 = vmatprep.mubr.bf16.mxu0 0
  %191 = vmatmul.mubr.bf16.gmra.mrb[0].mxu0 %v72
  %v192 = vpop.f32.mrb[0].mxu0
  %v193 = vadd.f32 0.0, %v192
  %v194 = vpop.f32.mrb[0].mxu0
  %v195 = vpop.f32.mrb[0].mxu0
  %v196 = vadd.f32 0.0, %v195
  %v197 = vpop.f32.mrb[0].mxu0
  %198 = vmatprep.mubr.bf16.mxu0 0
  %199 = vmatmul.mubr.bf16.gmra.mrb[0].mxu0 %v73
  %v200 = vpop.f32.mrb[0].mxu0
  %v201 = vadd.f32 0.0, %v200
  %v202 = vpop.f32.mrb[0].mxu0
  %v203 = vpop.f32.mrb[0].mxu0
  %v204 = vadd.f32 0.0, %v203
  %v205 = vpop.f32.mrb[0].mxu0
  %206 = vmatprep.mubr.bf16.mxu0 0
  %207 = vmatmul.mubr.bf16.gmra.mrb[0].mxu0 %v74
  %v208 = vpop.f32.mrb[0].mxu0
  %v209 = vadd.f32 0.0, %v208
  %v210 = vpop.f32.mrb[0].mxu0
  %v211 = vpop.f32.mrb[0].mxu0
  %v212 = vadd.f32 0.0, %v211
  %v213 = vpop.f32.mrb[0].mxu0
  %214 = vmatprep.mubr.bf16.mxu0 0
  %215 = vmatmul.mubr.bf16.gmra.mrb[0].mxu0 %v75
  %v216 = vpop.f32.mrb[0].mxu0
  %v217 = vadd.f32 0.0, %v216
  %v218 = vpop.f32.mrb[0].mxu0
  %v219 = vpop.f32.mrb[0].mxu0
  %v220 = vadd.f32 0.0, %v219
  %v221 = vpop.f32.mrb[0].mxu0
  %222 = vmatprep.mubr.bf16.mxu0 0
  %223 = vmatmul.mubr.bf16.gmra.mrb[0].mxu0 %v76
  %v224 = vpop.f32.mrb[0].mxu0
  %v225 = vadd.f32 0.0, %v224
  %v226 = vpop.f32.mrb[0].mxu0
  %v227 = vpop.f32.mrb[0].mxu0
  %v228 = vadd.f32 0.0, %v227
  %v229 = vpop.f32.mrb[0].mxu0
  %230 = vmatprep.mubr.bf16.mxu0 0
  %231 = vmatmul.mubr.bf16.gmra.mrb[0].mxu0 %v77
  %v232 = vpop.f32.mrb[0].mxu0
  %v233 = vadd.f32 0.0, %v232
  %v234 = vpop.f32.mrb[0].mxu0
  %v235 = vpop.f32.mrb[0].mxu0
  %v236 = vadd.f32 0.0, %v235
  %v237 = vpop.f32.mrb[0].mxu0
  %238 = vdwg.mxu0
  %v239 = vadd.f32 %v38, %v177
  %v240 = vadd.f32 %v39, %v180
  %v241 = vadd.f32 %v40, %v185
  %v242 = vadd.f32 %v41, %v188
  %v243 = vadd.f32 %v42, %v193
  %v244 = vadd.f32 %v43, %v196
  %v245 = vadd.f32 %v44, %v201
  %v246 = vadd.f32 %v45, %v204
  %v247 = vadd.f32 %v46, %v209
  %v248 = vadd.f32 %v47, %v212
  %v249 = vadd.f32 %v48, %v217
  %v250 = vadd.f32 %v49, %v220
  %v251 = vadd.f32 %v50, %v225
  %v252 = vadd.f32 %v51, %v228
  %v253 = vadd.f32 %v52, %v233
  %v254 = vadd.f32 %v53, %v236
  %255 = vst [vmem:[#allocation2] sm:$0xff] %v239
  %256 = vst [vmem:[#allocation2 + $0x8] sm:$0xff] %v240
  %257 = vst [vmem:[#allocation2 + $0x10] sm:$0xff] %v241
  %258 = vst [vmem:[#allocation2 + $0x18] sm:$0xff] %v242
  %259 = vst [vmem:[#allocation2 + $0x20] sm:$0xff] %v243
  %260 = vst [vmem:[#allocation2 + $0x28] sm:$0xff] %v244
  %261 = vst [vmem:[#allocation2 + $0x30] sm:$0xff] %v245
  %262 = vst [vmem:[#allocation2 + $0x38] sm:$0xff] %v246
  %263 = vst [vmem:[#allocation2 + $0x40] sm:$0xff] %v247
  %264 = vst [vmem:[#allocation2 + $0x48] sm:$0xff] %v248
  %265 = vst [vmem:[#allocation2 + $0x50] sm:$0xff] %v249
  %266 = vst [vmem:[#allocation2 + $0x58] sm:$0xff] %v250
  %267 = vst [vmem:[#allocation2 + $0x60] sm:$0xff] %v251
  %268 = vst [vmem:[#allocation2 + $0x68] sm:$0xff] %v252
  %269 = vst [vmem:[#allocation2 + $0x70] sm:$0xff] %v253
  %270 = vst [vmem:[#allocation2 + $0x78] sm:$0xff] %v254
  // Predicated region
  $region22: #{bottleneck_forward.5} parent=0 // pred_check
    %p271 = pneg %p18
  $region23: #{bottleneck_forward.5} parent=0 // pred_check_branch
    %273 = sbr.rel (%p271) target = $region25
  $region24: #{bottleneck_forward.5} parent=0 // pred_region
    %v274 = vld [vmem:[#allocation2] sm:$0xff]
    %v275 = vld [vmem:[#allocation2 + $0x8] sm:$0xff]
    %v276 = vld [vmem:[#allocation2 + $0x10] sm:$0xff]
    %v277 = vld [vmem:[#allocation2 + $0x18] sm:$0xff]
    %v278 = vld [vmem:[#allocation2 + $0x20] sm:$0xff]
    %v279 = vld [vmem:[#allocation2 + $0x28] sm:$0xff]
    %v280 = vld [vmem:[#allocation2 + $0x30] sm:$0xff]
    %v281 = vld [vmem:[#allocation2 + $0x38] sm:$0xff]
    %v282 = vld [vmem:[#allocation2 + $0x40] sm:$0xff]
    %v283 = vld [vmem:[#allocation2 + $0x48] sm:$0xff]
    %v284 = vld [vmem:[#allocation2 + $0x50] sm:$0xff]
    %v285 = vld [vmem:[#allocation2 + $0x58] sm:$0xff]
    %v286 = vld [vmem:[#allocation2 + $0x60] sm:$0xff]
    %v287 = vld [vmem:[#allocation2 + $0x68] sm:$0xff]
    %v288 = vld [vmem:[#allocation2 + $0x70] sm:$0xff]
    %v289 = vld [vmem:[#allocation2 + $0x78] sm:$0xff]
    %v290 = vld [vmem:[%s2] sm:$0x1]
    %v292 = vlaneseq
    %v293 = vshrl.u32 %v292, 7
    %v294 = vsub.s32 0, %v293
    %v295 = vrot.slane %v290, %v294
    %v297 = vmul.f32 %v274, %v295
    %v298 = vmul.f32 %v275, %v295
    %v299 = vmul.f32 %v276, %v295
    %v300 = vmul.f32 %v277, %v295
    %v301 = vmul.f32 %v278, %v295
    %v302 = vmul.f32 %v279, %v295
    %v303 = vmul.f32 %v280, %v295
    %v304 = vmul.f32 %v281, %v295
    %v305 = vmul.f32 %v282, %v295
    %v306 = vmul.f32 %v283, %v295
    %v307 = vmul.f32 %v284, %v295
    %v308 = vmul.f32 %v285, %v295
    %v309 = vmul.f32 %v286, %v295
    %v310 = vmul.f32 %v287, %v295
    %v311 = vmul.f32 %v288, %v295
    %v312 = vmul.f32 %v289, %v295
    %v313 = vld [vmem:[%s3] sm:$0x1]
    %v315 = vlaneseq
    %v316 = vshrl.u32 %v315, 7
    %v317 = vsub.s32 0, %v316
    %v318 = vrot.slane %v313, %v317
    %v320 = vadd.f32 %v297, %v318
    %v321 = vadd.f32 %v298, %v318
    %v322 = vadd.f32 %v299, %v318
    %v323 = vadd.f32 %v300, %v318
    %v324 = vadd.f32 %v301, %v318
    %v325 = vadd.f32 %v302, %v318
    %v326 = vadd.f32 %v303, %v318
    %v327 = vadd.f32 %v304, %v318
    %v328 = vadd.f32 %v305, %v318
    %v329 = vadd.f32 %v306, %v318
    %v330 = vadd.f32 %v307, %v318
    %v331 = vadd.f32 %v308, %v318
    %v332 = vadd.f32 %v309, %v318
    %v333 = vadd.f32 %v310, %v318
    %v334 = vadd.f32 %v311, %v318
    %v335 = vadd.f32 %v312, %v318
    %v336 = vmax.f32 %v320, 0.0
    %v337 = vmax.f32 %v321, 0.0
    %v338 = vmax.f32 %v322, 0.0
    %v339 = vmax.f32 %v323, 0.0
    %v340 = vmax.f32 %v324, 0.0
    %v341 = vmax.f32 %v325, 0.0
    %v342 = vmax.f32 %v326, 0.0
    %v343 = vmax.f32 %v327, 0.0
    %v344 = vmax.f32 %v328, 0.0
    %v345 = vmax.f32 %v329, 0.0
    %v346 = vmax.f32 %v330, 0.0
    %v347 = vmax.f32 %v331, 0.0
    %v348 = vmax.f32 %v332, 0.0
    %v349 = vmax.f32 %v333, 0.0
    %v350 = vmax.f32 %v334, 0.0
    %v351 = vmax.f32 %v335, 0.0
    %v352 = vpack.c.bf16 %v337, %v336
    %v353 = vpack.c.bf16 %v339, %v338
    %v354 = vpack.c.bf16 %v341, %v340
    %v355 = vpack.c.bf16 %v343, %v342
    %v356 = vpack.c.bf16 %v345, %v344
    %v357 = vpack.c.bf16 %v347, %v346
    %v358 = vpack.c.bf16 %v349, %v348
    %v359 = vpack.c.bf16 %v351, %v350
    %v368 = vunpack.c.l.b16 %v352
    %v369 = vunpack.c.h.b16 %v352
    %v370 = vunpack.c.l.b16 %v353
    %v371 = vunpack.c.h.b16 %v353
    %v372 = vunpack.c.l.b16 %v354
    %v373 = vunpack.c.h.b16 %v354
    %v374 = vunpack.c.l.b16 %v355
    %v375 = vunpack.c.h.b16 %v355
    %v376 = vunpack.c.l.b16 %v356
    %v377 = vunpack.c.h.b16 %v356
    %v378 = vunpack.c.l.b16 %v357
    %v379 = vunpack.c.h.b16 %v357
    %v380 = vunpack.c.l.b16 %v358
    %v381 = vunpack.c.h.b16 %v358
    %v382 = vunpack.c.l.b16 %v359
    %v383 = vunpack.c.h.b16 %v359
    %v384 = vpack.c.b16 %v368, %v368
    %v385 = vpack.c.b16 %v369, %v369
    %v386 = vpack.c.b16 %v370, %v370
    %v387 = vpack.c.b16 %v371, %v371
    %v388 = vpack.c.b16 %v372, %v372
    %v389 = vpack.c.b16 %v373, %v373
    %v390 = vpack.c.b16 %v374, %v374
    %v391 = vpack.c.b16 %v375, %v375
    %v392 = vpack.c.b16 %v376, %v376
    %v393 = vpack.c.b16 %v377, %v377
    %v394 = vpack.c.b16 %v378, %v378
    %v395 = vpack.c.b16 %v379, %v379
    %v396 = vpack.c.b16 %v380, %v380
    %v397 = vpack.c.b16 %v381, %v381
    %v398 = vpack.c.b16 %v382, %v382
    %v399 = vpack.c.b16 %v383, %v383
    %416 = vst [vmem:[%s4] sm:$0xf] %v384
    %417 = vst [vmem:[%s4 + $0x4] sm:$0xf] %v385
    %418 = vst [vmem:[%s4 + $0x8] sm:$0xf] %v386
    %419 = vst [vmem:[%s4 + $0xc] sm:$0xf] %v387
    %420 = vst [vmem:[%s4 + $0x10] sm:$0xf] %v388
    %421 = vst [vmem:[%s4 + $0x14] sm:$0xf] %v389
    %422 = vst [vmem:[%s4 + $0x18] sm:$0xf] %v390
    %423 = vst [vmem:[%s4 + $0x1c] sm:$0xf] %v391
    %424 = vst [vmem:[%s4 + $0x20] sm:$0xf] %v392
    %425 = vst [vmem:[%s4 + $0x24] sm:$0xf] %v393
    %426 = vst [vmem:[%s4 + $0x28] sm:$0xf] %v394
    %427 = vst [vmem:[%s4 + $0x2c] sm:$0xf] %v395
    %428 = vst [vmem:[%s4 + $0x30] sm:$0xf] %v396
    %429 = vst [vmem:[%s4 + $0x34] sm:$0xf] %v397
    %430 = vst [vmem:[%s4 + $0x38] sm:$0xf] %v398
    %431 = vst [vmem:[%s4 + $0x3c] sm:$0xf] %v399
  $region25: #{bottleneck_forward.5} parent=0 // pred_fallthru
    _
  // Predicated region
  $region26: #{bottleneck_forward.5} parent=0 // pred_check
    _
  $region27: #{bottleneck_forward.5} parent=0 // pred_check_branch
    %433 = sbr.rel (0) target = $region29
  $region28: #{bottleneck_forward.5} parent=0 // pred_region
    _
  $region29: #{bottleneck_forward.5} parent=0 // pred_fallthru
    _
  // Predicated region
  $region30: #{bottleneck_forward.5} parent=0 // pred_check
    _
  $region31: #{bottleneck_forward.5} parent=0 // pred_check_branch
    %435 = sbr.rel (0) target = $region33
  $region32: #{bottleneck_forward.5} parent=0 // pred_region
    _
  $region33: #{bottleneck_forward.5} parent=0 // pred_fallthru
    _

// kernel: bottleneck_forward.8
$region0: #{bottleneck_forward.8}
  #allocation0 [shape = 'u32[]', space=smem, size = 0x4, offset = 0x4, fixed_abs, tag = 'smem constant byte address 0x4 - core index']
  #allocation1 [shape = 'u32[144,128]{1,0:T(1,128)}', space=vmem, size = 0x12000, scoped, tag = 'internal scratch']
  %s0 = inlined_call_operand.vmem [shape: f32[2,1,128], index: 0, kind: input, shape index: {}]
  %s1 = inlined_call_operand.vmem [shape: f32[128,128], index: 1, kind: input, shape index: {}]
  %s2 = inlined_call_operand.vmem [shape: f32[128,128], index: 2, kind: input, shape index: {}]
  %s3 = inlined_call_operand.vmem [shape: f32[2,1,128], index: 3, kind: output, shape index: {}]
  %s4 = sld [smem:[#allocation0]]
  $region22: #{bottleneck_forward.8} parent=0
    _
  %s6 = ssub.s32 1, %s4
  %s7 = scalar_select 0, %s6, %s4
  // Predicated region
  $region2: #{bottleneck_forward.8} parent=0 // pred_check
    _
  $region3: #{bottleneck_forward.8} parent=0 // pred_check_branch
    %9 = sbr.rel (0) target = $region5
  $region4: #{bottleneck_forward.8} parent=0 // pred_region
    _
  $region5: #{bottleneck_forward.8} parent=0 // pred_fallthru
    _
  // Predicated region
  $region6: #{bottleneck_forward.8} parent=0 // pred_check
    _
  $region7: #{bottleneck_forward.8} parent=0 // pred_check_branch
    %11 = sbr.rel (0) target = $region9
  $region8: #{bottleneck_forward.8} parent=0 // pred_region
    _
  $region9: #{bottleneck_forward.8} parent=0 // pred_fallthru
    _
  // Predicated region
  $region10: #{bottleneck_forward.8} parent=0 // pred_check
    _
  $region11: #{bottleneck_forward.8} parent=0 // pred_check_branch
    %13 = sbr.rel (0) target = $region13
  $region12: #{bottleneck_forward.8} parent=0 // pred_region
    _
  $region13: #{bottleneck_forward.8} parent=0 // pred_fallthru
    _
  %v14 = vld [vmem:[%s0] sm:$0x1]
  %v15 = vld [vmem:[%s0 + $0x1] sm:$0x1]
  %v16 = vadd.f32 %v14, 0.0
  %v17 = vadd.f32 %v15, 0.0
  %v18 = vmul.f32 %v16, 0.015625
  %v19 = vmul.f32 %v17, 0.015625
  %v20 = vld [vmem:[%s1] sm:$0xff]
  %v21 = vld [vmem:[%s1 + $0x8] sm:$0xff]
  %v22 = vld [vmem:[%s1 + $0x10] sm:$0xff]
  %v23 = vld [vmem:[%s1 + $0x18] sm:$0xff]
  %v24 = vld [vmem:[%s1 + $0x20] sm:$0xff]
  %v25 = vld [vmem:[%s1 + $0x28] sm:$0xff]
  %v26 = vld [vmem:[%s1 + $0x30] sm:$0xff]
  %v27 = vld [vmem:[%s1 + $0x38] sm:$0xff]
  %v28 = vld [vmem:[%s1 + $0x40] sm:$0xff]
  %v29 = vld [vmem:[%s1 + $0x48] sm:$0xff]
  %v30 = vld [vmem:[%s1 + $0x50] sm:$0xff]
  %v31 = vld [vmem:[%s1 + $0x58] sm:$0xff]
  %v32 = vld [vmem:[%s1 + $0x60] sm:$0xff]
  %v33 = vld [vmem:[%s1 + $0x68] sm:$0xff]
  %v34 = vld [vmem:[%s1 + $0x70] sm:$0xff]
  %v35 = vld [vmem:[%s1 + $0x78] sm:$0xff]
  %v38 = vcombine.low %v18, %v19
  %v40 = vunpack.c.l.s4 1966171168
  %v41 = vunpack.c.0.s8 %v40
  %v42 = vlaneseq
  %v43 = vshrl.u32 %v42, 7
  %v44 = vsub.s32 %v41, %v43
  %v45 = vrot.slane %v38, %v44
  %v47 = vunpack.c.l.s4 1966171168
  %v48 = vunpack.c.0.s8 %v47
  %v49 = vlaneseq
  %v50 = vshrl.u32 %v49, 7
  %v51 = vsub.s32 %v48, %v50
  %v52 = vrot.slane %v45, %v51
  %54 = vmatprep.subr.mxu0 0.0
  %55 = vmatpush1.msra.mxu0 %v20
  %56 = vmatprep.subr.mxu0 0.0
  %57 = vmatpush1.msra.mxu0 %v21
  %58 = vmatprep.subr.mxu0 0.0
  %59 = vmatpush1.msra.mxu0 %v22
  %60 = vmatprep.subr.mxu0 0.0
  %61 = vmatpush1.msra.mxu0 %v23
  %62 = vmatprep.subr.mxu0 0.0
  %63 = vmatpush1.msra.mxu0 %v24
  %64 = vmatprep.subr.mxu0 0.0
  %65 = vmatpush1.msra.mxu0 %v25
  %66 = vmatprep.subr.mxu0 0.0
  %67 = vmatpush1.msra.mxu0 %v26
  %68 = vmatprep.subr.mxu0 0.0
  %69 = vmatpush1.msra.mxu0 %v27
  %70 = vmatprep.subr.mxu0 0.0
  %71 = vmatpush1.msra.mxu0 %v28
  %72 = vmatprep.subr.mxu0 0.0
  %73 = vmatpush1.msra.mxu0 %v29
  %74 = vmatprep.subr.mxu0 0.0
  %75 = vmatpush1.msra.mxu0 %v30
  %76 = vmatprep.subr.mxu0 0.0
  %77 = vmatpush1.msra.mxu0 %v31
  %78 = vmatprep.subr.mxu0 0.0
  %79 = vmatpush1.msra.mxu0 %v32
  %80 = vmatprep.subr.mxu0 0.0
  %81 = vmatpush1.msra.mxu0 %v33
  %82 = vmatprep.subr.mxu0 0.0
  %83 = vmatpush1.msra.mxu0 %v34
  %84 = vmatprep.subr.mxu0 0.0
  %85 = vmatpush1.msra.mxu0 %v35
  %86 = vmatprep.subr.mxu0 0.0
  %87 = vmatpush1.msra.mxu0 0.0
  %88 = vmatprep.subr.mxu0 0.0
  %89 = vmatpush1.msra.mxu0 0.0
  %90 = vmatprep.subr.mxu0 0.0
  %91 = vmatpush1.msra.mxu0 0.0
  %92 = vmatprep.subr.mxu0 0.0
  %93 = vmatpush1.msra.mxu0 0.0
  %94 = vmatprep.subr.mxu0 0.0
  %95 = vmatpush1.msra.mxu0 0.0
  %96 = vmatprep.subr.mxu0 0.0
  %97 = vmatpush1.msra.mxu0 0.0
  %98 = vmatprep.subr.mxu0 0.0
  %99 = vmatpush1.msra.mxu0 0.0
  %100 = vmatprep.subr.mxu0 0.0
  %101 = vmatpush1.msra.mxu0 0.0
  %102 = vmatprep.subr.mxu0 0.0
  %103 = vmatpush1.msra.mxu0 0.0
  %104 = vmatprep.subr.mxu0 0.0
  %105 = vmatpush1.msra.mxu0 0.0
  %106 = vmatprep.subr.mxu0 0.0
  %107 = vmatpush1.msra.mxu0 0.0
  %108 = vmatprep.subr.mxu0 0.0
  %109 = vmatpush1.msra.mxu0 0.0
  %110 = vmatprep.subr.mxu0 0.0
  %111 = vmatpush1.msra.mxu0 0.0
  %112 = vmatprep.subr.mxu0 0.0
  %113 = vmatpush1.msra.mxu0 0.0
  %114 = vmatprep.subr.mxu0 0.0
  %115 = vmatpush1.msra.mxu0 0.0
  %116 = vmatprep.subr.mxu0 0.0
  %117 = vmatpush1.msra.mxu0 0.0
  %118 = vmatprep.mubr.f32.mxu0 0.0
  %119 = vmatmul.mubr.f32.gmra.mrb[0].mxu0 %v52
  %v120 = vpop.f32.mrb[0].mxu0
  %v121 = vadd.f32 0.0, %v120
  %v122 = vpop.f32.mrb[0].mxu0
  %123 = vdwg.mxu0
  %v124 = vmax.f32 %v121, 0.0
  %v125 = vld [vmem:[%s2] sm:$0xff]
  %v126 = vld [vmem:[%s2 + $0x8] sm:$0xff]
  %v127 = vld [vmem:[%s2 + $0x10] sm:$0xff]
  %v128 = vld [vmem:[%s2 + $0x18] sm:$0xff]
  %v129 = vld [vmem:[%s2 + $0x20] sm:$0xff]
  %v130 = vld [vmem:[%s2 + $0x28] sm:$0xff]
  %v131 = vld [vmem:[%s2 + $0x30] sm:$0xff]
  %v132 = vld [vmem:[%s2 + $0x38] sm:$0xff]
  %v133 = vld [vmem:[%s2 + $0x40] sm:$0xff]
  %v134 = vld [vmem:[%s2 + $0x48] sm:$0xff]
  %v135 = vld [vmem:[%s2 + $0x50] sm:$0xff]
  %v136 = vld [vmem:[%s2 + $0x58] sm:$0xff]
  %v137 = vld [vmem:[%s2 + $0x60] sm:$0xff]
  %v138 = vld [vmem:[%s2 + $0x68] sm:$0xff]
  %v139 = vld [vmem:[%s2 + $0x70] sm:$0xff]
  %v140 = vld [vmem:[%s2 + $0x78] sm:$0xff]
  %141 = vmatprep.subr.mxu0 0.0
  %142 = vmatpush1.msra.mxu0 %v125
  %143 = vmatprep.subr.mxu0 0.0
  %144 = vmatpush1.msra.mxu0 %v126
  %145 = vmatprep.subr.mxu0 0.0
  %146 = vmatpush1.msra.mxu0 %v127
  %147 = vmatprep.subr.mxu0 0.0
  %148 = vmatpush1.msra.mxu0 %v128
  %149 = vmatprep.subr.mxu0 0.0
  %150 = vmatpush1.msra.mxu0 %v129
  %151 = vmatprep.subr.mxu0 0.0
  %152 = vmatpush1.msra.mxu0 %v130
  %153 = vmatprep.subr.mxu0 0.0
  %154 = vmatpush1.msra.mxu0 %v131
  %155 = vmatprep.subr.mxu0 0.0
  %156 = vmatpush1.msra.mxu0 %v132
  %157 = vmatprep.subr.mxu0 0.0
  %158 = vmatpush1.msra.mxu0 %v133
  %159 = vmatprep.subr.mxu0 0.0
  %160 = vmatpush1.msra.mxu0 %v134
  %161 = vmatprep.subr.mxu0 0.0
  %162 = vmatpush1.msra.mxu0 %v135
  %163 = vmatprep.subr.mxu0 0.0
  %164 = vmatpush1.msra.mxu0 %v136
  %165 = vmatprep.subr.mxu0 0.0
  %166 = vmatpush1.msra.mxu0 %v137
  %167 = vmatprep.subr.mxu0 0.0
  %168 = vmatpush1.msra.mxu0 %v138
  %169 = vmatprep.subr.mxu0 0.0
  %170 = vmatpush1.msra.mxu0 %v139
  %171 = vmatprep.subr.mxu0 0.0
  %172 = vmatpush1.msra.mxu0 %v140
  %173 = vmatprep.subr.mxu0 0.0
  %174 = vmatpush1.msra.mxu0 0.0
  %175 = vmatprep.subr.mxu0 0.0
  %176 = vmatpush1.msra.mxu0 0.0
  %177 = vmatprep.subr.mxu0 0.0
  %178 = vmatpush1.msra.mxu0 0.0
  %179 = vmatprep.subr.mxu0 0.0
  %180 = vmatpush1.msra.mxu0 0.0
  %181 = vmatprep.subr.mxu0 0.0
  %182 = vmatpush1.msra.mxu0 0.0
  %183 = vmatprep.subr.mxu0 0.0
  %184 = vmatpush1.msra.mxu0 0.0
  %185 = vmatprep.subr.mxu0 0.0
  %186 = vmatpush1.msra.mxu0 0.0
  %187 = vmatprep.subr.mxu0 0.0
  %188 = vmatpush1.msra.mxu0 0.0
  %189 = vmatprep.subr.mxu0 0.0
  %190 = vmatpush1.msra.mxu0 0.0
  %191 = vmatprep.subr.mxu0 0.0
  %192 = vmatpush1.msra.mxu0 0.0
  %193 = vmatprep.subr.mxu0 0.0
  %194 = vmatpush1.msra.mxu0 0.0
  %195 = vmatprep.subr.mxu0 0.0
  %196 = vmatpush1.msra.mxu0 0.0
  %197 = vmatprep.subr.mxu0 0.0
  %198 = vmatpush1.msra.mxu0 0.0
  %199 = vmatprep.subr.mxu0 0.0
  %200 = vmatpush1.msra.mxu0 0.0
  %201 = vmatprep.subr.mxu0 0.0
  %202 = vmatpush1.msra.mxu0 0.0
  %203 = vmatprep.subr.mxu0 0.0
  %204 = vmatpush1.msra.mxu0 0.0
  %205 = vmatprep.mubr.f32.mxu0 0.0
  %206 = vmatmul.mubr.f32.gmra.mrb[0].mxu0 %v124
  %v207 = vpop.f32.mrb[0].mxu0
  %v208 = vadd.f32 0.0, %v207
  %v209 = vpop.f32.mrb[0].mxu0
  %210 = vdwg.mxu0
  %v211 = vxor.u32 %v208, 2147483648
  %v212 = vmul.f32 %v211, 1.442695
  %v213 = vpow.pop %v212
  %v214 = vadd.f32 %v213, 1.0
  %v215 = vrcp.pop %v214
  %v216 = vmul.f32 1.0, %v215
  %v219 = vunpack.c.l.s4 1966171168
  %v220 = vunpack.c.0.s8 %v219
  %v221 = vlaneseq
  %v222 = vshrl.u32 %v221, 7
  %v223 = vsub.s32 %v220, %v222
  %v224 = vrot.slane %v216, %v223
  %v225 = vcombine.high %v224, %v224
  %v227 = vunpack.c.l.s4 1966171168
  %v228 = vunpack.c.0.s8 %v227
  %v229 = vlaneseq
  %v230 = vshrl.u32 %v229, 7
  %v231 = vsub.s32 %v228, %v230
  %v232 = vrot.slane %v224, %v231
  %v234 = vunpack.c.l.s4 1966171168
  %v235 = vunpack.c.0.s8 %v234
  %v236 = vlaneseq
  %v237 = vshrl.u32 %v236, 7
  %v238 = vsub.s32 %v235, %v237
  %v239 = vrot.slane %v225, %v238
  %242 = vst [vmem:[%s3] sm:$0x1] %v232
  %243 = vst [vmem:[%s3 + $0x1] sm:$0x1] %v239
  // Predicated region
  $region14: #{bottleneck_forward.8} parent=0 // pred_check
    _
  $region15: #{bottleneck_forward.8} parent=0 // pred_check_branch
    %245 = sbr.rel (0) target = $region17
  $region16: #{bottleneck_forward.8} parent=0 // pred_region
    _
  $region17: #{bottleneck_forward.8} parent=0 // pred_fallthru
    _
  // Predicated region
  $region18: #{bottleneck_forward.8} parent=0 // pred_check
    _
  $region19: #{bottleneck_forward.8} parent=0 // pred_check_branch
    %247 = sbr.rel (0) target = $region21
  $region20: #{bottleneck_forward.8} parent=0 // pred_region
    _
  $region21: #{bottleneck_forward.8} parent=0 // pred_fallthru
    _

// kernel: bottleneck_forward.6
$region0: #{bottleneck_forward.6}
  #allocation0 [shape = 'u32[]', space=smem, size = 0x4, offset = 0x4, fixed_abs, tag = 'smem constant byte address 0x4 - core index']
  #allocation1 [shape = 'u32[144,128]{1,0:T(1,128)}', space=vmem, size = 0x12000, scoped, tag = 'internal scratch']
  #allocation2 [shape = 'f32[64,128]{1,0:T(8,128)}', space=vmem, size = 0x8000, scoped, tag = 'scratch operand']
  %s0 = inlined_call_operand.vmem [shape: bf16[2,10,10,128], index: 0, kind: input, shape index: {}]
  %s1 = inlined_call_operand.vmem [shape: bf16[3,384,128], index: 1, kind: input, shape index: {}]
  %s2 = inlined_call_operand.vmem [shape: f32[1,128], index: 2, kind: input, shape index: {}]
  %s3 = inlined_call_operand.vmem [shape: f32[1,128], index: 3, kind: input, shape index: {}]
  %s4 = inlined_call_operand.vmem [shape: bf16[128,128], index: 4, kind: output, shape index: {}]
  %s5 = sld [smem:[#allocation0]]
  $region49: #{bottleneck_forward.6} parent=0
    _
  %s7 = ssub.s32 1, %s5
  %s8 = scalar_select 0, %s7, %s5
  loop: start=0, step=1, limit=4
  $region2: #{bottleneck_forward.6} parent=0 // loop_pre_header
    _
  $region3: #{bottleneck_forward.6} parent=0 // loop_header
    %s10 = sphi 0, %s14
    %p11 = scmp.ge.s32.totalorder %s10, 4
    %s17 = sphi 0, %s36
    %s18 = sphi 0, %s32
    %s19 = sphi 0, %s28
    %s20 = sphi 0, %s17
    %s21 = sphi 0, %s18
    %s22 = sphi 0, %s19
    %s23 = sphi 0, %s20
    %s24 = sphi 0, %s21
    %s25 = sphi 0, %s22
    %s39 = sphi 0, %s41
    %s42 = sphi 0, %s39
    %s43 = sphi 0, %s42
    %s59 = sphi 0, %s43
    %s65 = sphi 0, %s67
    %s68 = sphi 0, %s65
    %s69 = sphi 0, %s68
    %s85 = sphi 0, %s69
    %s91 = sphi 0, %s93
    %s94 = sphi 0, %s91
    %s95 = sphi 0, %s94
    %s111 = sphi 0, %s95
    %s117 = sphi 0, %s119
    %s120 = sphi 0, %s117
    %s121 = sphi 0, %s120
    %s137 = sphi 0, %s121
    %s147 = sphi 0, %s149
    %s150 = sphi 0, %s147
    %s151 = sphi 0, %s150
    %s167 = sphi 0, %s151
  $region4: #{bottleneck_forward.6} parent=0 // loop_header_branch
    %13 = sbr.rel (%p11) target = $region8
  $region5: #{bottleneck_forward.6} parent=0 // loop_body
    %s15 = ssub.s32 %s10, 1
    %s16 = ssub.s32 %s10, 2
    %s26 = sadd.s32 1, %s19
    %p27 = scmp.ge.s32.totalorder %s26, 1
    %s28 = scalar_select %p27, 0, %s26
    %s29 = sadd.s32 1, %s18
    %s30 = scalar_select %p27, %s29, %s18
    %p31 = scmp.ge.s32.totalorder %s30, 1
    %s32 = scalar_select %p31, 0, %s30
    %s33 = sadd.s32 1, %s17
    %s34 = scalar_select %p31, %s33, %s17
    %p35 = scmp.ge.s32.totalorder %s34, 2
    %s36 = scalar_select %p35, 0, %s34
    %s37 = ssub.s32 %s17, %s36
    %p38 = scmp.eq.s32.totalorder %s37, 0
    %s40 = sadd.s32 %s39, 1
    %s41 = scalar_select %p38, %s39, %s40
    %p44 = pneg %p38
    %p45 = scmp.eq.s32.totalorder %s10, 1
    %p46 = por %p44, %p45
    %p47 = scmp.ne.s32.totalorder %s39, %s42
    %p48 = scmp.eq.s32.totalorder %s10, 0
    %p49 = por %p47, %p48
    %p50 = scmp.ne.s32.totalorder %s39, %s42
    %p51 = scmp.eq.s32.totalorder %s15, 1
    %p52 = por %p50, %p51
    %p53 = scmp.ne.s32.totalorder %s42, %s43
    %p54 = scmp.eq.s32.totalorder %s15, 0
    %p55 = por %p53, %p54
    %p56 = scmp.ne.s32.totalorder %s42, %s43
    %p57 = scmp.eq.s32.totalorder %s16, 1
    %p58 = por %p56, %p57
    %p60 = scmp.ne.s32.totalorder %s43, %s59
    %p61 = scmp.eq.s32.totalorder %s16, 0
    %p62 = por %p60, %p61
    %s63 = ssub.s32 %s19, %s28
    %p64 = scmp.eq.s32.totalorder %s63, 0
    %s66 = sadd.s32 %s65, 1
    %s67 = scalar_select %p64, %s65, %s66
    %p70 = pneg %p64
    %p71 = scmp.eq.s32.totalorder %s10, 1
    %p72 = por %p70, %p71
    %p73 = scmp.ne.s32.totalorder %s65, %s68
    %p74 = scmp.eq.s32.totalorder %s10, 0
    %p75 = por %p73, %p74
    %p76 = scmp.ne.s32.totalorder %s65, %s68
    %p77 = scmp.eq.s32.totalorder %s15, 1
    %p78 = por %p76, %p77
    %p79 = scmp.ne.s32.totalorder %s68, %s69
    %p80 = scmp.eq.s32.totalorder %s15, 0
    %p81 = por %p79, %p80
    %p82 = scmp.ne.s32.totalorder %s68, %s69
    %p83 = scmp.eq.s32.totalorder %s16, 1
    %p84 = por %p82, %p83
    %p86 = scmp.ne.s32.totalorder %s69, %s85
    %p87 = scmp.eq.s32.totalorder %s16, 0
    %p88 = por %p86, %p87
    %s89 = ssub.s32 %s19, %s28
    %p90 = scmp.eq.s32.totalorder %s89, 0
    %s92 = sadd.s32 %s91, 1
    %s93 = scalar_select %p90, %s91, %s92
    %p96 = pneg %p90
    %p97 = scmp.eq.s32.totalorder %s10, 1
    %p98 = por %p96, %p97
    %p99 = scmp.ne.s32.totalorder %s91, %s94
    %p100 = scmp.eq.s32.totalorder %s10, 0
    %p101 = por %p99, %p100
    %p102 = scmp.ne.s32.totalorder %s91, %s94
    %p103 = scmp.eq.s32.totalorder %s15, 1
    %p104 = por %p102, %p103
    %p105 = scmp.ne.s32.totalorder %s94, %s95
    %p106 = scmp.eq.s32.totalorder %s15, 0
    %p107 = por %p105, %p106
    %p108 = scmp.ne.s32.totalorder %s94, %s95
    %p109 = scmp.eq.s32.totalorder %s16, 1
    %p110 = por %p108, %p109
    %p112 = scmp.ne.s32.totalorder %s95, %s111
    %p113 = scmp.eq.s32.totalorder %s16, 0
    %p114 = por %p112, %p113
    %s115 = ssub.s32 %s19, %s28
    %p116 = scmp.eq.s32.totalorder %s115, 0
    %s118 = sadd.s32 %s117, 1
    %s119 = scalar_select %p116, %s117, %s118
    %p122 = pneg %p116
    %p123 = scmp.eq.s32.totalorder %s10, 1
    %p124 = por %p122, %p123
    %p125 = scmp.ne.s32.totalorder %s117, %s120
    %p126 = scmp.eq.s32.totalorder %s10, 0
    %p127 = por %p125, %p126
    %p128 = scmp.ne.s32.totalorder %s117, %s120
    %p129 = scmp.eq.s32.totalorder %s15, 1
    %p130 = por %p128, %p129
    %p131 = scmp.ne.s32.totalorder %s120, %s121
    %p132 = scmp.eq.s32.totalorder %s15, 0
    %p133 = por %p131, %p132
    %p134 = scmp.ne.s32.totalorder %s120, %s121
    %p135 = scmp.eq.s32.totalorder %s16, 1
    %p136 = por %p134, %p135
    %p138 = scmp.ne.s32.totalorder %s121, %s137
    %p139 = scmp.eq.s32.totalorder %s16, 0
    %p140 = por %p138, %p139
    %s141 = sadd.s32 %s17, %s18
    %s142 = sadd.s32 %s36, %s32
    %s143 = ssub.s32 %s141, %s142
    %s144 = ssub.s32 %s19, %s28
    %s145 = sor.u32 %s143, %s144
    %p146 = scmp.eq.s32.totalorder %s145, 0
    %s148 = sadd.s32 %s147, 1
    %s149 = scalar_select %p146, %s147, %s148
    %p152 = pneg %p146
    %p153 = scmp.eq.s32.totalorder %s10, 1
    %p154 = por %p152, %p153
    %p155 = scmp.ne.s32.totalorder %s147, %s150
    %p156 = scmp.eq.s32.totalorder %s10, 0
    %p157 = por %p155, %p156
    %p158 = scmp.ne.s32.totalorder %s147, %s150
    %p159 = scmp.eq.s32.totalorder %s15, 1
    %p160 = por %p158, %p159
    %p161 = scmp.ne.s32.totalorder %s150, %s151
    %p162 = scmp.eq.s32.totalorder %s15, 0
    %p163 = por %p161, %p162
    %p164 = scmp.ne.s32.totalorder %s150, %s151
    %p165 = scmp.eq.s32.totalorder %s16, 1
    %p166 = por %p164, %p165
    %p168 = scmp.ne.s32.totalorder %s151, %s167
    %p169 = scmp.eq.s32.totalorder %s16, 0
    %p170 = por %p168, %p169
    %p171 = scmp.le.s32.totalorder 1, %s10
    %p172 = scmp.lt.s32.totalorder %s10, 3
    %p173 = pnand %p171, %p172
    %p174 = pneg %p173
    // Predicated region
    $region9: #{bottleneck_forward.6} parent=5 // pred_check
      _
    $region10: #{bottleneck_forward.6} parent=5 // pred_check_branch
      %176 = sbr.rel (%p173) target = $region12
    $region11: #{bottleneck_forward.6} parent=5 // pred_region
      %s177 = ssub.s32 %s10, 1
      // Predicated region
      $region13: #{bottleneck_forward.6} parent=11 // pred_check
        %p178 = pneg %p81
      $region14: #{bottleneck_forward.6} parent=11 // pred_check_branch
        %180 = sbr.rel (%p178) target = $region16
      $region15: #{bottleneck_forward.6} parent=11 // pred_region
        %p181 = scmp.lt.s32.totalorder %s22, 0
        %s182 = scalar_select %p181, %s22, 0
        %s183 = smul.addr %s182, 4
        %s184 = scalar_lea.vmem %s1, %s183
      $region16: #{bottleneck_forward.6} parent=11 // pred_fallthru
        _
      // Predicated region
      $region17: #{bottleneck_forward.6} parent=11 // pred_check
        %p185 = pneg %p107
      $region18: #{bottleneck_forward.6} parent=11 // pred_check_branch
        %187 = sbr.rel (%p185) target = $region20
      $region19: #{bottleneck_forward.6} parent=11 // pred_region
        %p188 = scmp.lt.s32.totalorder %s22, 0
        %s189 = scalar_select %p188, %s22, 0
        %s190 = scalar_lea.vmem %s2, %s189
      $region20: #{bottleneck_forward.6} parent=11 // pred_fallthru
        _
      // Predicated region
      $region21: #{bottleneck_forward.6} parent=11 // pred_check
        %p191 = pneg %p133
      $region22: #{bottleneck_forward.6} parent=11 // pred_check_branch
        %193 = sbr.rel (%p191) target = $region24
      $region23: #{bottleneck_forward.6} parent=11 // pred_region
        %p194 = scmp.lt.s32.totalorder %s22, 0
        %s195 = scalar_select %p194, %s22, 0
        %s196 = scalar_lea.vmem %s3, %s195
      $region24: #{bottleneck_forward.6} parent=11 // pred_fallthru
        _
    $region12: #{bottleneck_forward.6} parent=5 // pred_fallthru
      _
    %p197 = scmp.lt.s32.totalorder %s10, 2
    // Predicated region
    $region25: #{bottleneck_forward.6} parent=5 // pred_check
      %p198 = pneg %p197
    $region26: #{bottleneck_forward.6} parent=5 // pred_check_branch
      %200 = sbr.rel (%p198) target = $region28
    $region27: #{bottleneck_forward.6} parent=5 // pred_region
      // Predicated region
      $region29: #{bottleneck_forward.6} parent=27 // pred_check
        %p201 = pneg %p49
      $region30: #{bottleneck_forward.6} parent=27 // pred_check_branch
        %203 = sbr.rel (%p201) target = $region32
      $region31: #{bottleneck_forward.6} parent=27 // pred_region
        %p204 = scmp.lt.s32.totalorder %s17, 1
        %s205 = scalar_select %p204, %s17, 1
        %s206 = smul.addr %s205, 20
        %s207 = smul.addr %s206, 4
        %s208 = scalar_lea.vmem %s0, %s207
      $region32: #{bottleneck_forward.6} parent=27 // pred_fallthru
        _
    $region28: #{bottleneck_forward.6} parent=5 // pred_fallthru
      _
    %p209 = scmp.le.s32.totalorder 1, %s10
    %p210 = scmp.lt.s32.totalorder %s10, 3
    %p211 = pnand %p209, %p210
    %p212 = pneg %p211
    // Predicated region
    $region33: #{bottleneck_forward.6} parent=5 // pred_check
      _
    $region34: #{bottleneck_forward.6} parent=5 // pred_check_branch
      %214 = sbr.rel (%p211) target = $region36
    $region35: #{bottleneck_forward.6} parent=5 // pred_region
      %s215 = ssub.s32 %s10, 1
      %p216 = scmp.lt.s32.totalorder %s20, 1
      %s217 = scalar_select %p216, %s20, 1
      %s218 = smul.addr %s217, 20
      %s219 = smul.addr %s218, 4
      %s220 = scalar_lea.vmem %s0, %s219
      %p221 = pneg %p55
      %p222 = pneg %p52
      %p223 = scmp.lt.s32.totalorder %s22, 0
      %s224 = scalar_select %p223, %s22, 0
      %s225 = smul.addr %s224, 4
      %s226 = scalar_lea.vmem %s1, %s225
      %p227 = pneg %p81
      %p228 = pneg %p78
      %p229 = scmp.lt.s32.totalorder %s22, 0
      %s230 = scalar_select %p229, %s22, 0
      %s231 = scalar_lea.vmem %s2, %s230
      %p232 = pneg %p107
      %p233 = pneg %p104
      %p234 = scmp.lt.s32.totalorder %s22, 0
      %s235 = scalar_select %p234, %s22, 0
      %s236 = scalar_lea.vmem %s3, %s235
      %p237 = pneg %p133
      %p238 = pneg %p130
      %p239 = pneg %p163
      %p240 = pneg %p160
      %s241 = sadd.s32 %s20, %s21
      %s242 = smul.u32 8, %s241
      %p243 = scmp.lt.s32.totalorder %s242, 15
      %s244 = scalar_select %p243, %s242, 15
      %p245 = scmp.lt.s32.totalorder %s22, 0
      %s246 = scalar_select %p245, %s22, 0
      %s247 = sadd.s32 %s246, %s244
      %s248 = smul.addr %s247, 4
      %s249 = scalar_lea.vmem %s4, %s248
      %p250 = scmp.lt.s32.totalorder %s20, 1
      %s251 = scalar_select %p250, %s20, 1
      %s252 = smul.addr %s251, 20
      %s253 = smul.addr %s252, 4
      %s254 = scalar_lea.vmem %s0, %s253
      %p255 = scmp.lt.s32.totalorder %s22, 0
      %s256 = scalar_select %p255, %s22, 0
      %s257 = smul.addr %s256, 4
      %s258 = scalar_lea.vmem %s1, %s257
      %p259 = scmp.lt.s32.totalorder %s22, 0
      %s260 = scalar_select %p259, %s22, 0
      %s261 = scalar_lea.vmem %s2, %s260
      %p262 = scmp.lt.s32.totalorder %s22, 0
      %s263 = scalar_select %p262, %s22, 0
      %s264 = scalar_lea.vmem %s3, %s263
      %s265 = sadd.s32 %s20, %s21
      %s266 = smul.u32 8, %s265
      %p267 = scmp.lt.s32.totalorder %s266, 15
      %s268 = scalar_select %p267, %s266, 15
      %p269 = scmp.lt.s32.totalorder %s22, 0
      %s270 = scalar_select %p269, %s22, 0
      %s271 = sadd.s32 %s270, %s268
      %s272 = smul.addr %s271, 4
      %s273 = scalar_lea.vmem %s4, %s272
      %s274 = sadd.s32 %s20, %s21
      %s275 = smul.u32 8, %s274
      %s277 = smul.u32 %s21, 8
      %s278 = smul.u32 %s277, 2
      %s279 = smul.addr %s278, 4
      %s280 = scalar_lea.vmem %s254, %s279
      %v281 = vld [vmem:[%s280] sm:$0xf]
      %v282 = vld [vmem:[%s280 + $0x8] sm:$0xf]
      %v283 = vld [vmem:[%s280 + $0x10] sm:$0xf]
      %v284 = vld [vmem:[%s280 + $0x18] sm:$0xf]
      %v285 = vld [vmem:[%s280 + $0x20] sm:$0xf]
      %v286 = vld [vmem:[%s280 + $0x28] sm:$0xf]
      %v287 = vld [vmem:[%s280 + $0x30] sm:$0xf]
      %v288 = vld [vmem:[%s280 + $0x38] sm:$0xf]
      %v289 = vld [vmem:[%s280 + $0x4] sm:$0x1]
      %v290 = vld [vmem:[%s280 + $0xc] sm:$0x1]
      %v291 = vld [vmem:[%s280 + $0x14] sm:$0x1]
      %v292 = vld [vmem:[%s280 + $0x1c] sm:$0x1]
      %v293 = vld [vmem:[%s280 + $0x24] sm:$0x1]
      %v294 = vld [vmem:[%s280 + $0x2c] sm:$0x1]
      %v295 = vld [vmem:[%s280 + $0x34] sm:$0x1]
      %v296 = vld [vmem:[%s280 + $0x3c] sm:$0x1]
      %v297 = vld [vmem:[%s280] sm:$0xe]
      %v298 = vld [vmem:[%s280 + $0x8] sm:$0xe]
      %v299 = vld [vmem:[%s280 + $0x10] sm:$0xe]
      %v300 = vld [vmem:[%s280 + $0x18] sm:$0xe]
      %v301 = vld [vmem:[%s280 + $0x20] sm:$0xe]
      %v302 = vld [vmem:[%s280 + $0x28] sm:$0xe]
      %v303 = vld [vmem:[%s280 + $0x30] sm:$0xe]
      %v304 = vld [vmem:[%s280 + $0x38] sm:$0xe]
      %v321 = vunpack.c.l.b16 %v281
      %v322 = vunpack.c.l.b16 %v289
      %v323 = vunpack.c.l.b16 %v282
      %v324 = vunpack.c.l.b16 %v290
      %v325 = vunpack.c.l.b16 %v283
      %v326 = vunpack.c.l.b16 %v291
      %v327 = vunpack.c.l.b16 %v284
      %v328 = vunpack.c.l.b16 %v292
      %v329 = vunpack.c.l.b16 %v285
      %v330 = vunpack.c.l.b16 %v293
      %v331 = vunpack.c.l.b16 %v286
      %v332 = vunpack.c.l.b16 %v294
      %v333 = vunpack.c.l.b16 %v287
      %v334 = vunpack.c.l.b16 %v295
      %v335 = vunpack.c.l.b16 %v288
      %v336 = vunpack.c.l.b16 %v296
      %v337 = vpack.c.b16 %v322, %v321
      %v338 = vpack.c.b16 %v324, %v323
      %v339 = vpack.c.b16 %v326, %v325
      %v340 = vpack.c.b16 %v328, %v327
      %v341 = vpack.c.b16 %v330, %v329
      %v342 = vpack.c.b16 %v332, %v331
      %v343 = vpack.c.b16 %v334, %v333
      %v344 = vpack.c.b16 %v336, %v335
      %v346 = vshrl.u32 %v337, 16
      %v348 = vshll.u32 %v337, 16
      %v350 = vrot.slane %v348, 1
      %v351 = vor.u32 %v346, %v350
      %v353 = vshrl.u32 %v338, 16
      %v355 = vshll.u32 %v338, 16
      %v357 = vrot.slane %v355, 1
      %v358 = vor.u32 %v353, %v357
      %v360 = vshrl.u32 %v339, 16
      %v362 = vshll.u32 %v339, 16
      %v364 = vrot.slane %v362, 1
      %v365 = vor.u32 %v360, %v364
      %v367 = vshrl.u32 %v340, 16
      %v369 = vshll.u32 %v340, 16
      %v371 = vrot.slane %v369, 1
      %v372 = vor.u32 %v367, %v371
      %v374 = vshrl.u32 %v341, 16
      %v376 = vshll.u32 %v341, 16
      %v378 = vrot.slane %v376, 1
      %v379 = vor.u32 %v374, %v378
      %v381 = vshrl.u32 %v342, 16
      %v383 = vshll.u32 %v342, 16
      %v385 = vrot.slane %v383, 1
      %v386 = vor.u32 %v381, %v385
      %v388 = vshrl.u32 %v343, 16
      %v390 = vshll.u32 %v343, 16
      %v392 = vrot.slane %v390, 1
      %v393 = vor.u32 %v388, %v392
      %v395 = vshrl.u32 %v344, 16
      %v397 = vshll.u32 %v344, 16
      %v399 = vrot.slane %v397, 1
      %v400 = vor.u32 %v395, %v399
      %v409 = vunpack.c.l.b16 %v297
      %v410 = vunpack.c.l.b16 %v298
      %v411 = vunpack.c.l.b16 %v299
      %v412 = vunpack.c.l.b16 %v300
      %v413 = vunpack.c.l.b16 %v301
      %v414 = vunpack.c.l.b16 %v302
      %v415 = vunpack.c.l.b16 %v303
      %v416 = vunpack.c.l.b16 %v304
      %v417 = vpack.c.b16 %v322, %v409
      %v418 = vpack.c.b16 %v324, %v410
      %v419 = vpack.c.b16 %v326, %v411
      %v420 = vpack.c.b16 %v328, %v412
      %v421 = vpack.c.b16 %v330, %v413
      %v422 = vpack.c.b16 %v332, %v414
      %v423 = vpack.c.b16 %v334, %v415
      %v424 = vpack.c.b16 %v336, %v416
      %v425 = vrot.slane %v417, 1
      %v426 = vrot.slane %v418, 1
      %v427 = vrot.slane %v419, 1
      %v428 = vrot.slane %v420, 1
      %v429 = vrot.slane %v421, 1
      %v430 = vrot.slane %v422, 1
      %v431 = vrot.slane %v423, 1
      %v432 = vrot.slane %v424, 1
      %v433 = vunpack.c.l.b16 %v351
      %v434 = vunpack.c.l.b16 %v425
      %v435 = vunpack.c.l.b16 %v358
      %v436 = vunpack.c.l.b16 %v426
      %v437 = vunpack.c.l.b16 %v365
      %v438 = vunpack.c.l.b16 %v427
      %v439 = vunpack.c.l.b16 %v372
      %v440 = vunpack.c.l.b16 %v428
      %v441 = vunpack.c.l.b16 %v379
      %v442 = vunpack.c.l.b16 %v429
      %v443 = vunpack.c.l.b16 %v386
      %v444 = vunpack.c.l.b16 %v430
      %v445 = vunpack.c.l.b16 %v393
      %v446 = vunpack.c.l.b16 %v431
      %v447 = vunpack.c.l.b16 %v400
      %v448 = vunpack.c.l.b16 %v432
      %v449 = vld [vmem:[%s258] sm:$0xf]
      %v450 = vld [vmem:[%s258 + $0x4] sm:$0xf]
      %v451 = vld [vmem:[%s258 + $0x8] sm:$0xf]
      %v452 = vld [vmem:[%s258 + $0xc] sm:$0xf]
      %v453 = vld [vmem:[%s258 + $0x10] sm:$0xf]
      %v454 = vld [vmem:[%s258 + $0x14] sm:$0xf]
      %v455 = vld [vmem:[%s258 + $0x18] sm:$0xf]
      %v456 = vld [vmem:[%s258 + $0x1c] sm:$0xf]
      %v457 = vld [vmem:[%s258 + $0x20] sm:$0xf]
      %v458 = vld [vmem:[%s258 + $0x24] sm:$0xf]
      %v459 = vld [vmem:[%s258 + $0x28] sm:$0xf]
      %v460 = vld [vmem:[%s258 + $0x2c] sm:$0xf]
      %v461 = vld [vmem:[%s258 + $0x30] sm:$0xf]
      %v462 = vld [vmem:[%s258 + $0x34] sm:$0xf]
      %v463 = vld [vmem:[%s258 + $0x38] sm:$0xf]
      %v464 = vld [vmem:[%s258 + $0x3c] sm:$0xf]
      %v465 = vld [vmem:[%s258 + $0x40] sm:$0xf]
      %v466 = vld [vmem:[%s258 + $0x44] sm:$0xf]
      %v467 = vld [vmem:[%s258 + $0x48] sm:$0xf]
      %v468 = vld [vmem:[%s258 + $0x4c] sm:$0xf]
      %v469 = vld [vmem:[%s258 + $0x50] sm:$0xf]
      %v470 = vld [vmem:[%s258 + $0x54] sm:$0xf]
      %v471 = vld [vmem:[%s258 + $0x58] sm:$0xf]
      %v472 = vld [vmem:[%s258 + $0x5c] sm:$0xf]
      %v473 = vld [vmem:[%s258 + $0x60] sm:$0xf]
      %v474 = vld [vmem:[%s258 + $0x64] sm:$0xf]
      %v475 = vld [vmem:[%s258 + $0x68] sm:$0xf]
      %v476 = vld [vmem:[%s258 + $0x6c] sm:$0xf]
      %v477 = vld [vmem:[%s258 + $0x70] sm:$0xf]
      %v478 = vld [vmem:[%s258 + $0x74] sm:$0xf]
      %v479 = vld [vmem:[%s258 + $0x78] sm:$0xf]
      %v480 = vld [vmem:[%s258 + $0x7c] sm:$0xf]
      %v481 = vld [vmem:[%s258 + $0x80] sm:$0xf]
      %v482 = vld [vmem:[%s258 + $0x84] sm:$0xf]
      %v483 = vld [vmem:[%s258 + $0x88] sm:$0xf]
      %v484 = vld [vmem:[%s258 + $0x8c] sm:$0xf]
      %v485 = vld [vmem:[%s258 + $0x90] sm:$0xf]
      %v486 = vld [vmem:[%s258 + $0x94] sm:$0xf]
      %v487 = vld [vmem:[%s258 + $0x98] sm:$0xf]
      %v488 = vld [vmem:[%s258 + $0x9c] sm:$0xf]
      %v489 = vld [vmem:[%s258 + $0xa0] sm:$0xf]
      %v490 = vld [vmem:[%s258 + $0xa4] sm:$0xf]
      %v491 = vld [vmem:[%s258 + $0xa8] sm:$0xf]
      %v492 = vld [vmem:[%s258 + $0xac] sm:$0xf]
      %v493 = vld [vmem:[%s258 + $0xb0] sm:$0xf]
      %v494 = vld [vmem:[%s258 + $0xb4] sm:$0xf]
      %v495 = vld [vmem:[%s258 + $0xb8] sm:$0xf]
      %v496 = vld [vmem:[%s258 + $0xbc] sm:$0xf]
      %v497 = vpack.c.b16 %v323, %v321
      %v498 = vpack.c.b16 %v435, %v433
      %v499 = vpack.c.b16 %v436, %v434
      %v500 = vpack.c.b16 %v327, %v325
      %v501 = vpack.c.b16 %v439, %v437
      %v502 = vpack.c.b16 %v440, %v438
      %v503 = vpack.c.b16 %v331, %v329
      %v504 = vpack.c.b16 %v443, %v441
      %v505 = vpack.c.b16 %v444, %v442
      %v506 = vpack.c.b16 %v335, %v333
      %v507 = vpack.c.b16 %v447, %v445
      %v508 = vpack.c.b16 %v448, %v446
      %v569 = vunpack.c.l.b16 %v449
      %v570 = vunpack.c.l.b16 %v450
      %v571 = vunpack.c.l.b16 %v451
      %v572 = vunpack.c.l.b16 %v452
      %v573 = vunpack.c.l.b16 %v453
      %v574 = vunpack.c.l.b16 %v454
      %v575 = vunpack.c.l.b16 %v455
      %v576 = vunpack.c.l.b16 %v456
      %v577 = vunpack.c.l.b16 %v457
      %v578 = vunpack.c.l.b16 %v458
      %v579 = vunpack.c.l.b16 %v459
      %v580 = vunpack.c.l.b16 %v460
      %v581 = vunpack.c.l.b16 %v461
      %v582 = vunpack.c.l.b16 %v462
      %v583 = vunpack.c.l.b16 %v463
      %v584 = vunpack.c.l.b16 %v464
      %v585 = vunpack.c.l.b16 %v465
      %v586 = vunpack.c.l.b16 %v466
      %v587 = vunpack.c.l.b16 %v467
      %v588 = vunpack.c.l.b16 %v468
      %v589 = vunpack.c.l.b16 %v469
      %v590 = vunpack.c.l.b16 %v470
      %v591 = vunpack.c.l.b16 %v471
      %v592 = vunpack.c.l.b16 %v472
      %v593 = vunpack.c.l.b16 %v473
      %v594 = vunpack.c.l.b16 %v474
      %v595 = vunpack.c.l.b16 %v475
      %v596 = vunpack.c.l.b16 %v476
      %v597 = vunpack.c.l.b16 %v477
      %v598 = vunpack.c.l.b16 %v478
      %v599 = vunpack.c.l.b16 %v479
      %v600 = vunpack.c.l.b16 %v480
      %v601 = vunpack.c.l.b16 %v481
      %v602 = vunpack.c.l.b16 %v482
      %v603 = vunpack.c.l.b16 %v483
      %v604 = vunpack.c.l.b16 %v484
      %v605 = vunpack.c.l.b16 %v485
      %v606 = vunpack.c.l.b16 %v486
      %v607 = vunpack.c.l.b16 %v487
      %v608 = vunpack.c.l.b16 %v488
      %v609 = vunpack.c.l.b16 %v489
      %v610 = vunpack.c.l.b16 %v490
      %v611 = vunpack.c.l.b16 %v491
      %v612 = vunpack.c.l.b16 %v492
      %v613 = vunpack.c.l.b16 %v493
      %v614 = vunpack.c.l.b16 %v494
      %v615 = vunpack.c.l.b16 %v495
      %v616 = vunpack.c.l.b16 %v496
      %v617 = vpack.c.b16 %v570, %v569
      %v618 = vpack.c.b16 %v572, %v571
      %v619 = vpack.c.b16 %v574, %v573
      %v620 = vpack.c.b16 %v576, %v575
      %v621 = vpack.c.b16 %v578, %v577
      %v622 = vpack.c.b16 %v580, %v579
      %v623 = vpack.c.b16 %v582, %v581
      %v624 = vpack.c.b16 %v584, %v583
      %v625 = vpack.c.b16 %v586, %v585
      %v626 = vpack.c.b16 %v588, %v587
      %v627 = vpack.c.b16 %v590, %v589
      %v628 = vpack.c.b16 %v592, %v591
      %v629 = vpack.c.b16 %v594, %v593
      %v630 = vpack.c.b16 %v596, %v595
      %v631 = vpack.c.b16 %v598, %v597
      %v632 = vpack.c.b16 %v600, %v599
      %v633 = vpack.c.b16 %v602, %v601
      %v634 = vpack.c.b16 %v604, %v603
      %v635 = vpack.c.b16 %v606, %v605
      %v636 = vpack.c.b16 %v608, %v607
      %v637 = vpack.c.b16 %v610, %v609
      %v638 = vpack.c.b16 %v612, %v611
      %v639 = vpack.c.b16 %v614, %v613
      %v640 = vpack.c.b16 %v616, %v615
      %665 = vmatprep.subr.bf16.mxu0 0
      %666 = vmatpush1.bf16.msra.mxu0 %v617
      %667 = vmatprep.subr.bf16.mxu0 0
      %668 = vmatpush1.bf16.msra.mxu0 %v618
      %669 = vmatprep.subr.bf16.mxu0 0
      %670 = vmatpush1.bf16.msra.mxu0 %v619
      %671 = vmatprep.subr.bf16.mxu0 0
      %672 = vmatpush1.bf16.msra.mxu0 %v620
      %673 = vmatprep.subr.bf16.mxu0 0
      %674 = vmatpush1.bf16.msra.mxu0 %v621
      %675 = vmatprep.subr.bf16.mxu0 0
      %676 = vmatpush1.bf16.msra.mxu0 %v622
      %677 = vmatprep.subr.bf16.mxu0 0
      %678 = vmatpush1.bf16.msra.mxu0 %v623
      %679 = vmatprep.subr.bf16.mxu0 0
      %680 = vmatpush1.bf16.msra.mxu0 %v624
      %681 = vmatprep.subr.bf16.mxu0 0
      %682 = vmatpush1.bf16.msra.mxu0 %v625
      %683 = vmatprep.subr.bf16.mxu0 0
      %684 = vmatpush1.bf16.msra.mxu0 %v626
      %685 = vmatprep.subr.bf16.mxu0 0
      %686 = vmatpush1.bf16.msra.mxu0 %v627
      %687 = vmatprep.subr.bf16.mxu0 0
      %688 = vmatpush1.bf16.msra.mxu0 %v628
      %689 = vmatprep.subr.bf16.mxu0 0
      %690 = vmatpush1.bf16.msra.mxu0 %v629
      %691 = vmatprep.subr.bf16.mxu0 0
      %692 = vmatpush1.bf16.msra.mxu0 %v630
      %693 = vmatprep.subr.bf16.mxu0 0
      %694 = vmatpush1.bf16.msra.mxu0 %v631
      %695 = vmatprep.subr.bf16.mxu0 0
      %696 = vmatpush1.bf16.msra.mxu0 %v632
      %697 = vmatprep.mubr.bf16.mxu0 %v498
      %698 = vmatmul.mubr.bf16.gmra.mrb[0].mxu0 %v497
      %v699 = vpop.f32.mrb[0].mxu0
      %v700 = vadd.f32 0.0, %v699
      %v701 = vpop.f32.mrb[0].mxu0
      %v702 = vpop.f32.mrb[0].mxu0
      %v703 = vadd.f32 0.0, %v702
      %v704 = vpop.f32.mrb[0].mxu0
      %705 = vmatprep.mubr.bf16.mxu0 %v501
      %706 = vmatmul.mubr.bf16.gmra.mrb[0].mxu0 %v500
      %v707 = vpop.f32.mrb[0].mxu0
      %v708 = vadd.f32 0.0, %v707
      %v709 = vpop.f32.mrb[0].mxu0
      %v710 = vpop.f32.mrb[0].mxu0
      %v711 = vadd.f32 0.0, %v710
      %v712 = vpop.f32.mrb[0].mxu0
      %713 = vmatprep.mubr.bf16.mxu0 %v504
      %714 = vmatmul.mubr.bf16.gmra.mrb[0].mxu0 %v503
      %v715 = vpop.f32.mrb[0].mxu0
      %v716 = vadd.f32 0.0, %v715
      %v717 = vpop.f32.mrb[0].mxu0
      %v718 = vpop.f32.mrb[0].mxu0
      %v719 = vadd.f32 0.0, %v718
      %v720 = vpop.f32.mrb[0].mxu0
      %721 = vmatprep.mubr.bf16.mxu0 %v507
      %722 = vmatmul.mubr.bf16.gmra.mrb[0].mxu0 %v506
      %v723 = vpop.f32.mrb[0].mxu0
      %v724 = vadd.f32 0.0, %v723
      %v725 = vpop.f32.mrb[0].mxu0
      %v726 = vpop.f32.mrb[0].mxu0
      %v727 = vadd.f32 0.0, %v726
      %v728 = vpop.f32.mrb[0].mxu0
      %729 = vdwg.mxu0
      %730 = vmatprep.subr.bf16.mxu0 0
      %731 = vmatpush1.bf16.msra.mxu0 %v633
      %732 = vmatprep.subr.bf16.mxu0 0
      %733 = vmatpush1.bf16.msra.mxu0 %v634
      %734 = vmatprep.subr.bf16.mxu0 0
      %735 = vmatpush1.bf16.msra.mxu0 %v635
      %736 = vmatprep.subr.bf16.mxu0 0
      %737 = vmatpush1.bf16.msra.mxu0 %v636
      %738 = vmatprep.subr.bf16.mxu0 0
      %739 = vmatpush1.bf16.msra.mxu0 %v637
      %740 = vmatprep.subr.bf16.mxu0 0
      %741 = vmatpush1.bf16.msra.mxu0 %v638
      %742 = vmatprep.subr.bf16.mxu0 0
      %743 = vmatpush1.bf16.msra.mxu0 %v639
      %744 = vmatprep.subr.bf16.mxu0 0
      %745 = vmatpush1.bf16.msra.mxu0 %v640
      %746 = vmatprep.subr.bf16.mxu0 0
      %747 = vmatpush1.bf16.msra.mxu0 0
      %748 = vmatprep.subr.bf16.mxu0 0
      %749 = vmatpush1.bf16.msra.mxu0 0
      %750 = vmatprep.subr.bf16.mxu0 0
      %751 = vmatpush1.bf16.msra.mxu0 0
      %752 = vmatprep.subr.bf16.mxu0 0
      %753 = vmatpush1.bf16.msra.mxu0 0
      %754 = vmatprep.subr.bf16.mxu0 0
      %755 = vmatpush1.bf16.msra.mxu0 0
      %756 = vmatprep.subr.bf16.mxu0 0
      %757 = vmatpush1.bf16.msra.mxu0 0
      %758 = vmatprep.subr.bf16.mxu0 0
      %759 = vmatpush1.bf16.msra.mxu0 0
      %760 = vmatprep.subr.bf16.mxu0 0
      %761 = vmatpush1.bf16.msra.mxu0 0
      %762 = vmatprep.mubr.bf16.mxu0 0
      %763 = vmatmul.mubr.bf16.gmra.mrb[0].mxu0 %v499
      %v764 = vpop.f32.mrb[0].mxu0
      %v765 = vadd.f32 %v700, %v764
      %v766 = vpop.f32.mrb[0].mxu0
      %v767 = vpop.f32.mrb[0].mxu0
      %v768 = vadd.f32 %v703, %v767
      %v769 = vpop.f32.mrb[0].mxu0
      %770 = vmatprep.mubr.bf16.mxu0 0
      %771 = vmatmul.mubr.bf16.gmra.mrb[0].mxu0 %v502
      %v772 = vpop.f32.mrb[0].mxu0
      %v773 = vadd.f32 %v708, %v772
      %v774 = vpop.f32.mrb[0].mxu0
      %v775 = vpop.f32.mrb[0].mxu0
      %v776 = vadd.f32 %v711, %v775
      %v777 = vpop.f32.mrb[0].mxu0
      %778 = vmatprep.mubr.bf16.mxu0 0
      %779 = vmatmul.mubr.bf16.gmra.mrb[0].mxu0 %v505
      %v780 = vpop.f32.mrb[0].mxu0
      %v781 = vadd.f32 %v716, %v780
      %v782 = vpop.f32.mrb[0].mxu0
      %v783 = vpop.f32.mrb[0].mxu0
      %v784 = vadd.f32 %v719, %v783
      %v785 = vpop.f32.mrb[0].mxu0
      %786 = vmatprep.mubr.bf16.mxu0 0
      %787 = vmatmul.mubr.bf16.gmra.mrb[0].mxu0 %v508
      %v788 = vpop.f32.mrb[0].mxu0
      %v789 = vadd.f32 %v724, %v788
      %v790 = vpop.f32.mrb[0].mxu0
      %v791 = vpop.f32.mrb[0].mxu0
      %v792 = vadd.f32 %v727, %v791
      %v793 = vpop.f32.mrb[0].mxu0
      %794 = vdwg.mxu0
      %795 = vst [vmem:[#allocation2] sm:$0xff] %v765
      %796 = vst [vmem:[#allocation2 + $0x8] sm:$0xff] %v768
      %797 = vst [vmem:[#allocation2 + $0x10] sm:$0xff] %v773
      %798 = vst [vmem:[#allocation2 + $0x18] sm:$0xff] %v776
      %799 = vst [vmem:[#allocation2 + $0x20] sm:$0xff] %v781
      %800 = vst [vmem:[#allocation2 + $0x28] sm:$0xff] %v784
      %801 = vst [vmem:[#allocation2 + $0x30] sm:$0xff] %v789
      %802 = vst [vmem:[#allocation2 + $0x38] sm:$0xff] %v792
      %s803 = sadd.s32 %s277, 1
      %s804 = smul.u32 %s803, 2
      %s805 = smul.addr %s804, 4
      %s806 = scalar_lea.vmem %s254, %s805
      %v807 = vld [vmem:[%s806] sm:$0xf]
      %v808 = vld [vmem:[%s806 + $0x8] sm:$0xf]
      %v809 = vld [vmem:[%s806 + $0x10] sm:$0xf]
      %v810 = vld [vmem:[%s806 + $0x18] sm:$0xf]
      %v811 = vld [vmem:[%s806 + $0x20] sm:$0xf]
      %v812 = vld [vmem:[%s806 + $0x28] sm:$0xf]
      %v813 = vld [vmem:[%s806 + $0x30] sm:$0xf]
      %v814 = vld [vmem:[%s806 + $0x38] sm:$0xf]
      %v815 = vld [vmem:[%s806 + $0x4] sm:$0x1]
      %v816 = vld [vmem:[%s806 + $0xc] sm:$0x1]
      %v817 = vld [vmem:[%s806 + $0x14] sm:$0x1]
      %v818 = vld [vmem:[%s806 + $0x1c] sm:$0x1]
      %v819 = vld [vmem:[%s806 + $0x24] sm:$0x1]
      %v820 = vld [vmem:[%s806 + $0x2c] sm:$0x1]
      %v821 = vld [vmem:[%s806 + $0x34] sm:$0x1]
      %v822 = vld [vmem:[%s806 + $0x3c] sm:$0x1]
      %v823 = vld [vmem:[%s806] sm:$0xe]
      %v824 = vld [vmem:[%s806 + $0x8] sm:$0xe]
      %v825 = vld [vmem:[%s806 + $0x10] sm:$0xe]
      %v826 = vld [vmem:[%s806 + $0x18] sm:$0xe]
      %v827 = vld [vmem:[%s806 + $0x20] sm:$0xe]
      %v828 = vld [vmem:[%s806 + $0x28] sm:$0xe]
      %v829 = vld [vmem:[%s806 + $0x30] sm:$0xe]
      %v830 = vld [vmem:[%s806 + $0x38] sm:$0xe]
      %v847 = vunpack.c.l.b16 %v807
      %v848 = vunpack.c.l.b16 %v815
      %v849 = vunpack.c.l.b16 %v808
      %v850 = vunpack.c.l.b16 %v816
      %v851 = vunpack.c.l.b16 %v809
      %v852 = vunpack.c.l.b16 %v817
      %v853 = vunpack.c.l.b16 %v810
      %v854 = vunpack.c.l.b16 %v818
      %v855 = vunpack.c.l.b16 %v811
      %v856 = vunpack.c.l.b16 %v819
      %v857 = vunpack.c.l.b16 %v812
      %v858 = vunpack.c.l.b16 %v820
      %v859 = vunpack.c.l.b16 %v813
      %v860 = vunpack.c.l.b16 %v821
      %v861 = vunpack.c.l.b16 %v814
      %v862 = vunpack.c.l.b16 %v822
      %v863 = vpack.c.b16 %v848, %v847
      %v864 = vpack.c.b16 %v850, %v849
      %v865 = vpack.c.b16 %v852, %v851
      %v866 = vpack.c.b16 %v854, %v853
      %v867 = vpack.c.b16 %v856, %v855
      %v868 = vpack.c.b16 %v858, %v857
      %v869 = vpack.c.b16 %v860, %v859
      %v870 = vpack.c.b16 %v862, %v861
      %v872 = vshrl.u32 %v863, 16
      %v874 = vshll.u32 %v863, 16
      %v876 = vrot.slane %v874, 1
      %v877 = vor.u32 %v872, %v876
      %v879 = vshrl.u32 %v864, 16
      %v881 = vshll.u32 %v864, 16
      %v883 = vrot.slane %v881, 1
      %v884 = vor.u32 %v879, %v883
      %v886 = vshrl.u32 %v865, 16
      %v888 = vshll.u32 %v865, 16
      %v890 = vrot.slane %v888, 1
      %v891 = vor.u32 %v886, %v890
      %v893 = vshrl.u32 %v866, 16
      %v895 = vshll.u32 %v866, 16
      %v897 = vrot.slane %v895, 1
      %v898 = vor.u32 %v893, %v897
      %v900 = vshrl.u32 %v867, 16
      %v902 = vshll.u32 %v867, 16
      %v904 = vrot.slane %v902, 1
      %v905 = vor.u32 %v900, %v904
      %v907 = vshrl.u32 %v868, 16
      %v909 = vshll.u32 %v868, 16
      %v911 = vrot.slane %v909, 1
      %v912 = vor.u32 %v907, %v911
      %v914 = vshrl.u32 %v869, 16
      %v916 = vshll.u32 %v869, 16
      %v918 = vrot.slane %v916, 1
      %v919 = vor.u32 %v914, %v918
      %v921 = vshrl.u32 %v870, 16
      %v923 = vshll.u32 %v870, 16
      %v925 = vrot.slane %v923, 1
      %v926 = vor.u32 %v921, %v925
      %v935 = vunpack.c.l.b16 %v823
      %v936 = vunpack.c.l.b16 %v824
      %v937 = vunpack.c.l.b16 %v825
      %v938 = vunpack.c.l.b16 %v826
      %v939 = vunpack.c.l.b16 %v827
      %v940 = vunpack.c.l.b16 %v828
      %v941 = vunpack.c.l.b16 %v829
      %v942 = vunpack.c.l.b16 %v830
      %v943 = vpack.c.b16 %v848, %v935
      %v944 = vpack.c.b16 %v850, %v936
      %v945 = vpack.c.b16 %v852, %v937
      %v946 = vpack.c.b16 %v854, %v938
      %v947 = vpack.c.b16 %v856, %v939
      %v948 = vpack.c.b16 %v858, %v940
      %v949 = vpack.c.b16 %v860, %v941
      %v950 = vpack.c.b16 %v862, %v942
      %v951 = vrot.slane %v943, 1
      %v952 = vrot.slane %v944, 1
      %v953 = vrot.slane %v945, 1
      %v954 = vrot.slane %v946, 1
      %v955 = vrot.slane %v947, 1
      %v956 = vrot.slane %v948, 1
      %v957 = vrot.slane %v949, 1
      %v958 = vrot.slane %v950, 1
      %v959 = vunpack.c.l.b16 %v877
      %v960 = vunpack.c.l.b16 %v951
      %v961 = vunpack.c.l.b16 %v884
      %v962 = vunpack.c.l.b16 %v952
      %v963 = vunpack.c.l.b16 %v891
      %v964 = vunpack.c.l.b16 %v953
      %v965 = vunpack.c.l.b16 %v898
      %v966 = vunpack.c.l.b16 %v954
      %v967 = vunpack.c.l.b16 %v905
      %v968 = vunpack.c.l.b16 %v955
      %v969 = vunpack.c.l.b16 %v912
      %v970 = vunpack.c.l.b16 %v956
      %v971 = vunpack.c.l.b16 %v919
      %v972 = vunpack.c.l.b16 %v957
      %v973 = vunpack.c.l.b16 %v926
      %v974 = vunpack.c.l.b16 %v958
      %s975 = scalar_lea.vmem %s258, 192
      %v976 = vld [vmem:[%s975] sm:$0xf]
      %v977 = vld [vmem:[%s975 + $0x4] sm:$0xf]
      %v978 = vld [vmem:[%s975 + $0x8] sm:$0xf]
      %v979 = vld [vmem:[%s975 + $0xc] sm:$0xf]
      %v980 = vld [vmem:[%s975 + $0x10] sm:$0xf]
      %v981 = vld [vmem:[%s975 + $0x14] sm:$0xf]
      %v982 = vld [vmem:[%s975 + $0x18] sm:$0xf]
      %v983 = vld [vmem:[%s975 + $0x1c] sm:$0xf]
      %v984 = vld [vmem:[%s975 + $0x20] sm:$0xf]
      %v985 = vld [vmem:[%s975 + $0x24] sm:$0xf]
      %v986 = vld [vmem:[%s975 + $0x28] sm:$0xf]
      %v987 = vld [vmem:[%s975 + $0x2c] sm:$0xf]
      %v988 = vld [vmem:[%s975 + $0x30] sm:$0xf]
      %v989 = vld [vmem:[%s975 + $0x34] sm:$0xf]
      %v990 = vld [vmem:[%s975 + $0x38] sm:$0xf]
      %v991 = vld [vmem:[%s975 + $0x3c] sm:$0xf]
      %v992 = vld [vmem:[%s975 + $0x40] sm:$0xf]
      %v993 = vld [vmem:[%s975 + $0x44] sm:$0xf]
      %v994 = vld [vmem:[%s975 + $0x48] sm:$0xf]
      %v995 = vld [vmem:[%s975 + $0x4c] sm:$0xf]
      %v996 = vld [vmem:[%s975 + $0x50] sm:$0xf]
      %v997 = vld [vmem:[%s975 + $0x54] sm:$0xf]
      %v998 = vld [vmem:[%s975 + $0x58] sm:$0xf]
      %v999 = vld [vmem:[%s975 + $0x5c] sm:$0xf]
      %v1000 = vld [vmem:[%s975 + $0x60] sm:$0xf]
      %v1001 = vld [vmem:[%s975 + $0x64] sm:$0xf]
      %v1002 = vld [vmem:[%s975 + $0x68] sm:$0xf]
      %v1003 = vld [vmem:[%s975 + $0x6c] sm:$0xf]
      %v1004 = vld [vmem:[%s975 + $0x70] sm:$0xf]
      %v1005 = vld [vmem:[%s975 + $0x74] sm:$0xf]
      %v1006 = vld [vmem:[%s975 + $0x78] sm:$0xf]
      %v1007 = vld [vmem:[%s975 + $0x7c] sm:$0xf]
      %v1008 = vld [vmem:[%s975 + $0x80] sm:$0xf]
      %v1009 = vld [vmem:[%s975 + $0x84] sm:$0xf]
      %v1010 = vld [vmem:[%s975 + $0x88] sm:$0xf]
      %v1011 = vld [vmem:[%s975 + $0x8c] sm:$0xf]
      %v1012 = vld [vmem:[%s975 + $0x90] sm:$0xf]
      %v1013 = vld [vmem:[%s975 + $0x94] sm:$0xf]
      %v1014 = vld [vmem:[%s975 + $0x98] sm:$0xf]
      %v1015 = vld [vmem:[%s975 + $0x9c] sm:$0xf]
      %v1016 = vld [vmem:[%s975 + $0xa0] sm:$0xf]
      %v1017 = vld [vmem:[%s975 + $0xa4] sm:$0xf]
      %v1018 = vld [vmem:[%s975 + $0xa8] sm:$0xf]
      %v1019 = vld [vmem:[%s975 + $0xac] sm:$0xf]
      %v1020 = vld [vmem:[%s975 + $0xb0] sm:$0xf]
      %v1021 = vld [vmem:[%s975 + $0xb4] sm:$0xf]
      %v1022 = vld [vmem:[%s975 + $0xb8] sm:$0xf]
      %v1023 = vld [vmem:[%s975 + $0xbc] sm:$0xf]
      %v1024 = vpack.c.b16 %v849, %v847
      %v1025 = vpack.c.b16 %v961, %v959
      %v1026 = vpack.c.b16 %v962, %v960
      %v1027 = vpack.c.b16 %v853, %v851
      %v1028 = vpack.c.b16 %v965, %v963
      %v1029 = vpack.c.b16 %v966, %v964
      %v1030 = vpack.c.b16 %v857, %v855
      %v1031 = vpack.c.b16 %v969, %v967
      %v1032 = vpack.c.b16 %v970, %v968
      %v1033 = vpack.c.b16 %v861, %v859
      %v1034 = vpack.c.b16 %v973, %v971
      %v1035 = vpack.c.b16 %v974, %v972
      %v1096 = vunpack.c.l.b16 %v976
      %v1097 = vunpack.c.l.b16 %v977
      %v1098 = vunpack.c.l.b16 %v978
      %v1099 = vunpack.c.l.b16 %v979
      %v1100 = vunpack.c.l.b16 %v980
      %v1101 = vunpack.c.l.b16 %v981
      %v1102 = vunpack.c.l.b16 %v982
      %v1103 = vunpack.c.l.b16 %v983
      %v1104 = vunpack.c.l.b16 %v984
      %v1105 = vunpack.c.l.b16 %v985
      %v1106 = vunpack.c.l.b16 %v986
      %v1107 = vunpack.c.l.b16 %v987
      %v1108 = vunpack.c.l.b16 %v988
      %v1109 = vunpack.c.l.b16 %v989
      %v1110 = vunpack.c.l.b16 %v990
      %v1111 = vunpack.c.l.b16 %v991
      %v1112 = vunpack.c.l.b16 %v992
      %v1113 = vunpack.c.l.b16 %v993
      %v1114 = vunpack.c.l.b16 %v994
      %v1115 = vunpack.c.l.b16 %v995
      %v1116 = vunpack.c.l.b16 %v996
      %v1117 = vunpack.c.l.b16 %v997
      %v1118 = vunpack.c.l.b16 %v998
      %v1119 = vunpack.c.l.b16 %v999
      %v1120 = vunpack.c.l.b16 %v1000
      %v1121 = vunpack.c.l.b16 %v1001
      %v1122 = vunpack.c.l.b16 %v1002
      %v1123 = vunpack.c.l.b16 %v1003
      %v1124 = vunpack.c.l.b16 %v1004
      %v1125 = vunpack.c.l.b16 %v1005
      %v1126 = vunpack.c.l.b16 %v1006
      %v1127 = vunpack.c.l.b16 %v1007
      %v1128 = vunpack.c.l.b16 %v1008
      %v1129 = vunpack.c.l.b16 %v1009
      %v1130 = vunpack.c.l.b16 %v1010
      %v1131 = vunpack.c.l.b16 %v1011
      %v1132 = vunpack.c.l.b16 %v1012
      %v1133 = vunpack.c.l.b16 %v1013
      %v1134 = vunpack.c.l.b16 %v1014
      %v1135 = vunpack.c.l.b16 %v1015
      %v1136 = vunpack.c.l.b16 %v1016
      %v1137 = vunpack.c.l.b16 %v1017
      %v1138 = vunpack.c.l.b16 %v1018
      %v1139 = vunpack.c.l.b16 %v1019
      %v1140 = vunpack.c.l.b16 %v1020
      %v1141 = vunpack.c.l.b16 %v1021
      %v1142 = vunpack.c.l.b16 %v1022
      %v1143 = vunpack.c.l.b16 %v1023
      %v1144 = vpack.c.b16 %v1097, %v1096
      %v1145 = vpack.c.b16 %v1099, %v1098
      %v1146 = vpack.c.b16 %v1101, %v1100
      %v1147 = vpack.c.b16 %v1103, %v1102
      %v1148 = vpack.c.b16 %v1105, %v1104
      %v1149 = vpack.c.b16 %v1107, %v1106
      %v1150 = vpack.c.b16 %v1109, %v1108
      %v1151 = vpack.c.b16 %v1111, %v1110
      %v1152 = vpack.c.b16 %v1113, %v1112
      %v1153 = vpack.c.b16 %v1115, %v1114
      %v1154 = vpack.c.b16 %v1117, %v1116
      %v1155 = vpack.c.b16 %v1119, %v1118
      %v1156 = vpack.c.b16 %v1121, %v1120
      %v1157 = vpack.c.b16 %v1123, %v1122
      %v1158 = vpack.c.b16 %v1125, %v1124
      %v1159 = vpack.c.b16 %v1127, %v1126
      %v1160 = vpack.c.b16 %v1129, %v1128
      %v1161 = vpack.c.b16 %v1131, %v1130
      %v1162 = vpack.c.b16 %v1133, %v1132
      %v1163 = vpack.c.b16 %v1135, %v1134
      %v1164 = vpack.c.b16 %v1137, %v1136
      %v1165 = vpack.c.b16 %v1139, %v1138
      %v1166 = vpack.c.b16 %v1141, %v1140
      %v1167 = vpack.c.b16 %v1143, %v1142
      %1192 = vmatprep.subr.bf16.mxu0 0
      %1193 = vmatpush1.bf16.msra.mxu0 %v1144
      %1194 = vmatprep.subr.bf16.mxu0 0
      %1195 = vmatpush1.bf16.msra.mxu0 %v1145
      %1196 = vmatprep.subr.bf16.mxu0 0
      %1197 = vmatpush1.bf16.msra.mxu0 %v1146
      %1198 = vmatprep.subr.bf16.mxu0 0
      %1199 = vmatpush1.bf16.msra.mxu0 %v1147
      %1200 = vmatprep.subr.bf16.mxu0 0
      %1201 = vmatpush1.bf16.msra.mxu0 %v1148
      %1202 = vmatprep.subr.bf16.mxu0 0
      %1203 = vmatpush1.bf16.msra.mxu0 %v1149
      %1204 = vmatprep.subr.bf16.mxu0 0
      %1205 = vmatpush1.bf16.msra.mxu0 %v1150
      %1206 = vmatprep.subr.bf16.mxu0 0
      %1207 = vmatpush1.bf16.msra.mxu0 %v1151
      %1208 = vmatprep.subr.bf16.mxu0 0
      %1209 = vmatpush1.bf16.msra.mxu0 %v1152
      %1210 = vmatprep.subr.bf16.mxu0 0
      %1211 = vmatpush1.bf16.msra.mxu0 %v1153
      %1212 = vmatprep.subr.bf16.mxu0 0
      %1213 = vmatpush1.bf16.msra.mxu0 %v1154
      %1214 = vmatprep.subr.bf16.mxu0 0
      %1215 = vmatpush1.bf16.msra.mxu0 %v1155
      %1216 = vmatprep.subr.bf16.mxu0 0
      %1217 = vmatpush1.bf16.msra.mxu0 %v1156
      %1218 = vmatprep.subr.bf16.mxu0 0
      %1219 = vmatpush1.bf16.msra.mxu0 %v1157
      %1220 = vmatprep.subr.bf16.mxu0 0
      %1221 = vmatpush1.bf16.msra.mxu0 %v1158
      %1222 = vmatprep.subr.bf16.mxu0 0
      %1223 = vmatpush1.bf16.msra.mxu0 %v1159
      %1224 = vmatprep.mubr.bf16.mxu0 %v1025
      %1225 = vmatmul.mubr.bf16.gmra.mrb[0].mxu0 %v1024
      %v1226 = vpop.f32.mrb[0].mxu0
      %v1227 = vadd.f32 0.0, %v1226
      %v1228 = vpop.f32.mrb[0].mxu0
      %v1229 = vpop.f32.mrb[0].mxu0
      %v1230 = vadd.f32 0.0, %v1229
      %v1231 = vpop.f32.mrb[0].mxu0
      %1232 = vmatprep.mubr.bf16.mxu0 %v1028
      %1233 = vmatmul.mubr.bf16.gmra.mrb[0].mxu0 %v1027
      %v1234 = vpop.f32.mrb[0].mxu0
      %v1235 = vadd.f32 0.0, %v1234
      %v1236 = vpop.f32.mrb[0].mxu0
      %v1237 = vpop.f32.mrb[0].mxu0
      %v1238 = vadd.f32 0.0, %v1237
      %v1239 = vpop.f32.mrb[0].mxu0
      %1240 = vmatprep.mubr.bf16.mxu0 %v1031
      %1241 = vmatmul.mubr.bf16.gmra.mrb[0].mxu0 %v1030
      %v1242 = vpop.f32.mrb[0].mxu0
      %v1243 = vadd.f32 0.0, %v1242
      %v1244 = vpop.f32.mrb[0].mxu0
      %v1245 = vpop.f32.mrb[0].mxu0
      %v1246 = vadd.f32 0.0, %v1245
      %v1247 = vpop.f32.mrb[0].mxu0
      %1248 = vmatprep.mubr.bf16.mxu0 %v1034
      %1249 = vmatmul.mubr.bf16.gmra.mrb[0].mxu0 %v1033
      %v1250 = vpop.f32.mrb[0].mxu0
      %v1251 = vadd.f32 0.0, %v1250
      %v1252 = vpop.f32.mrb[0].mxu0
      %v1253 = vpop.f32.mrb[0].mxu0
      %v1254 = vadd.f32 0.0, %v1253
      %v1255 = vpop.f32.mrb[0].mxu0
      %1256 = vdwg.mxu0
      %1257 = vmatprep.subr.bf16.mxu0 0
      %1258 = vmatpush1.bf16.msra.mxu0 %v1160
      %1259 = vmatprep.subr.bf16.mxu0 0
      %1260 = vmatpush1.bf16.msra.mxu0 %v1161
      %1261 = vmatprep.subr.bf16.mxu0 0
      %1262 = vmatpush1.bf16.msra.mxu0 %v1162
      %1263 = vmatprep.subr.bf16.mxu0 0
      %1264 = vmatpush1.bf16.msra.mxu0 %v1163
      %1265 = vmatprep.subr.bf16.mxu0 0
      %1266 = vmatpush1.bf16.msra.mxu0 %v1164
      %1267 = vmatprep.subr.bf16.mxu0 0
      %1268 = vmatpush1.bf16.msra.mxu0 %v1165
      %1269 = vmatprep.subr.bf16.mxu0 0
      %1270 = vmatpush1.bf16.msra.mxu0 %v1166
      %1271 = vmatprep.subr.bf16.mxu0 0
      %1272 = vmatpush1.bf16.msra.mxu0 %v1167
      %1273 = vmatprep.subr.bf16.mxu0 0
      %1274 = vmatpush1.bf16.msra.mxu0 0
      %1275 = vmatprep.subr.bf16.mxu0 0
      %1276 = vmatpush1.bf16.msra.mxu0 0
      %1277 = vmatprep.subr.bf16.mxu0 0
      %1278 = vmatpush1.bf16.msra.mxu0 0
      %1279 = vmatprep.subr.bf16.mxu0 0
      %1280 = vmatpush1.bf16.msra.mxu0 0
      %1281 = vmatprep.subr.bf16.mxu0 0
      %1282 = vmatpush1.bf16.msra.mxu0 0
      %1283 = vmatprep.subr.bf16.mxu0 0
      %1284 = vmatpush1.bf16.msra.mxu0 0
      %1285 = vmatprep.subr.bf16.mxu0 0
      %1286 = vmatpush1.bf16.msra.mxu0 0
      %1287 = vmatprep.subr.bf16.mxu0 0
      %1288 = vmatpush1.bf16.msra.mxu0 0
      %1289 = vmatprep.mubr.bf16.mxu0 0
      %1290 = vmatmul.mubr.bf16.gmra.mrb[0].mxu0 %v1026
      %v1291 = vpop.f32.mrb[0].mxu0
      %v1292 = vadd.f32 %v1227, %v1291
      %v1293 = vpop.f32.mrb[0].mxu0
      %v1294 = vpop.f32.mrb[0].mxu0
      %v1295 = vadd.f32 %v1230, %v1294
      %v1296 = vpop.f32.mrb[0].mxu0
      %1297 = vmatprep.mubr.bf16.mxu0 0
      %1298 = vmatmul.mubr.bf16.gmra.mrb[0].mxu0 %v1029
      %v1299 = vpop.f32.mrb[0].mxu0
      %v1300 = vadd.f32 %v1235, %v1299
      %v1301 = vpop.f32.mrb[0].mxu0
      %v1302 = vpop.f32.mrb[0].mxu0
      %v1303 = vadd.f32 %v1238, %v1302
      %v1304 = vpop.f32.mrb[0].mxu0
      %1305 = vmatprep.mubr.bf16.mxu0 0
      %1306 = vmatmul.mubr.bf16.gmra.mrb[0].mxu0 %v1032
      %v1307 = vpop.f32.mrb[0].mxu0
      %v1308 = vadd.f32 %v1243, %v1307
      %v1309 = vpop.f32.mrb[0].mxu0
      %v1310 = vpop.f32.mrb[0].mxu0
      %v1311 = vadd.f32 %v1246, %v1310
      %v1312 = vpop.f32.mrb[0].mxu0
      %1313 = vmatprep.mubr.bf16.mxu0 0
      %1314 = vmatmul.mubr.bf16.gmra.mrb[0].mxu0 %v1035
      %v1315 = vpop.f32.mrb[0].mxu0
      %v1316 = vadd.f32 %v1251, %v1315
      %v1317 = vpop.f32.mrb[0].mxu0
      %v1318 = vpop.f32.mrb[0].mxu0
      %v1319 = vadd.f32 %v1254, %v1318
      %v1320 = vpop.f32.mrb[0].mxu0
      %1321 = vdwg.mxu0
      %v1322 = vld [vmem:[#allocation2] sm:$0xff]
      %v1323 = vld [vmem:[#allocation2 + $0x8] sm:$0xff]
      %v1324 = vld [vmem:[#allocation2 + $0x10] sm:$0xff]
      %v1325 = vld [vmem:[#allocation2 + $0x18] sm:$0xff]
      %v1326 = vld [vmem:[#allocation2 + $0x20] sm:$0xff]
      %v1327 = vld [vmem:[#allocation2 + $0x28] sm:$0xff]
      %v1328 = vld [vmem:[#allocation2 + $0x30] sm:$0xff]
      %v1329 = vld [vmem:[#allocation2 + $0x38] sm:$0xff]
      %v1330 = vadd.f32 %v1322, %v1292
      %v1331 = vadd.f32 %v1323, %v1295
      %v1332 = vadd.f32 %v1324, %v1300
      %v1333 = vadd.f32 %v1325, %v1303
      %v1334 = vadd.f32 %v1326, %v1308
      %v1335 = vadd.f32 %v1327, %v1311
      %v1336 = vadd.f32 %v1328, %v1316
      %v1337 = vadd.f32 %v1329, %v1319
      %1338 = vst [vmem:[#allocation2] sm:$0xff] %v1330
      %1339 = vst [vmem:[#allocation2 + $0x8] sm:$0xff] %v1331
      %1340 = vst [vmem:[#allocation2 + $0x10] sm:$0xff] %v1332
      %1341 = vst [vmem:[#allocation2 + $0x18] sm:$0xff] %v1333
      %1342 = vst [vmem:[#allocation2 + $0x20] sm:$0xff] %v1334
      %1343 = vst [vmem:[#allocation2 + $0x28] sm:$0xff] %v1335
      %1344 = vst [vmem:[#allocation2 + $0x30] sm:$0xff] %v1336
      %1345 = vst [vmem:[#allocation2 + $0x38] sm:$0xff] %v1337
      %s1346 = sadd.s32 %s277, 2
      %s1347 = smul.u32 %s1346, 2
      %s1348 = smul.addr %s1347, 4
      %s1349 = scalar_lea.vmem %s254, %s1348
      %v1350 = vld [vmem:[%s1349] sm:$0xf]
      %v1351 = vld [vmem:[%s1349 + $0x8] sm:$0xf]
      %v1352 = vld [vmem:[%s1349 + $0x10] sm:$0xf]
      %v1353 = vld [vmem:[%s1349 + $0x18] sm:$0xf]
      %v1354 = vld [vmem:[%s1349 + $0x20] sm:$0xf]
      %v1355 = vld [vmem:[%s1349 + $0x28] sm:$0xf]
      %v1356 = vld [vmem:[%s1349 + $0x30] sm:$0xf]
      %v1357 = vld [vmem:[%s1349 + $0x38] sm:$0xf]
      %v1358 = vld [vmem:[%s1349 + $0x4] sm:$0x1]
      %v1359 = vld [vmem:[%s1349 + $0xc] sm:$0x1]
      %v1360 = vld [vmem:[%s1349 + $0x14] sm:$0x1]
      %v1361 = vld [vmem:[%s1349 + $0x1c] sm:$0x1]
      %v1362 = vld [vmem:[%s1349 + $0x24] sm:$0x1]
      %v1363 = vld [vmem:[%s1349 + $0x2c] sm:$0x1]
      %v1364 = vld [vmem:[%s1349 + $0x34] sm:$0x1]
      %v1365 = vld [vmem:[%s1349 + $0x3c] sm:$0x1]
      %v1366 = vld [vmem:[%s1349] sm:$0xe]
      %v1367 = vld [vmem:[%s1349 + $0x8] sm:$0xe]
      %v1368 = vld [vmem:[%s1349 + $0x10] sm:$0xe]
      %v1369 = vld [vmem:[%s1349 + $0x18] sm:$0xe]
      %v1370 = vld [vmem:[%s1349 + $0x20] sm:$0xe]
      %v1371 = vld [vmem:[%s1349 + $0x28] sm:$0xe]
      %v1372 = vld [vmem:[%s1349 + $0x30] sm:$0xe]
      %v1373 = vld [vmem:[%s1349 + $0x38] sm:$0xe]
      %v1390 = vunpack.c.l.b16 %v1350
      %v1391 = vunpack.c.l.b16 %v1358
      %v1392 = vunpack.c.l.b16 %v1351
      %v1393 = vunpack.c.l.b16 %v1359
      %v1394 = vunpack.c.l.b16 %v1352
      %v1395 = vunpack.c.l.b16 %v1360
      %v1396 = vunpack.c.l.b16 %v1353
      %v1397 = vunpack.c.l.b16 %v1361
      %v1398 = vunpack.c.l.b16 %v1354
      %v1399 = vunpack.c.l.b16 %v1362
      %v1400 = vunpack.c.l.b16 %v1355
      %v1401 = vunpack.c.l.b16 %v1363
      %v1402 = vunpack.c.l.b16 %v1356
      %v1403 = vunpack.c.l.b16 %v1364
      %v1404 = vunpack.c.l.b16 %v1357
      %v1405 = vunpack.c.l.b16 %v1365
      %v1406 = vpack.c.b16 %v1391, %v1390
      %v1407 = vpack.c.b16 %v1393, %v1392
      %v1408 = vpack.c.b16 %v1395, %v1394
      %v1409 = vpack.c.b16 %v1397, %v1396
      %v1410 = vpack.c.b16 %v1399, %v1398
      %v1411 = vpack.c.b16 %v1401, %v1400
      %v1412 = vpack.c.b16 %v1403, %v1402
      %v1413 = vpack.c.b16 %v1405, %v1404
      %v1415 = vshrl.u32 %v1406, 16
      %v1417 = vshll.u32 %v1406, 16
      %v1419 = vrot.slane %v1417, 1
      %v1420 = vor.u32 %v1415, %v1419
      %v1422 = vshrl.u32 %v1407, 16
      %v1424 = vshll.u32 %v1407, 16
      %v1426 = vrot.slane %v1424, 1
      %v1427 = vor.u32 %v1422, %v1426
      %v1429 = vshrl.u32 %v1408, 16
      %v1431 = vshll.u32 %v1408, 16
      %v1433 = vrot.slane %v1431, 1
      %v1434 = vor.u32 %v1429, %v1433
      %v1436 = vshrl.u32 %v1409, 16
      %v1438 = vshll.u32 %v1409, 16
      %v1440 = vrot.slane %v1438, 1
      %v1441 = vor.u32 %v1436, %v1440
      %v1443 = vshrl.u32 %v1410, 16
      %v1445 = vshll.u32 %v1410, 16
      %v1447 = vrot.slane %v1445, 1
      %v1448 = vor.u32 %v1443, %v1447
      %v1450 = vshrl.u32 %v1411, 16
      %v1452 = vshll.u32 %v1411, 16
      %v1454 = vrot.slane %v1452, 1
      %v1455 = vor.u32 %v1450, %v1454
      %v1457 = vshrl.u32 %v1412, 16
      %v1459 = vshll.u32 %v1412, 16
      %v1461 = vrot.slane %v1459, 1
      %v1462 = vor.u32 %v1457, %v1461
      %v1464 = vshrl.u32 %v1413, 16
      %v1466 = vshll.u32 %v1413, 16
      %v1468 = vrot.slane %v1466, 1
      %v1469 = vor.u32 %v1464, %v1468
      %v1478 = vunpack.c.l.b16 %v1366
      %v1479 = vunpack.c.l.b16 %v1367
      %v1480 = vunpack.c.l.b16 %v1368
      %v1481 = vunpack.c.l.b16 %v1369
      %v1482 = vunpack.c.l.b16 %v1370
      %v1483 = vunpack.c.l.b16 %v1371
      %v1484 = vunpack.c.l.b16 %v1372
      %v1485 = vunpack.c.l.b16 %v1373
      %v1486 = vpack.c.b16 %v1391, %v1478
      %v1487 = vpack.c.b16 %v1393, %v1479
      %v1488 = vpack.c.b16 %v1395, %v1480
      %v1489 = vpack.c.b16 %v1397, %v1481
      %v1490 = vpack.c.b16 %v1399, %v1482
      %v1491 = vpack.c.b16 %v1401, %v1483
      %v1492 = vpack.c.b16 %v1403, %v1484
      %v1493 = vpack.c.b16 %v1405, %v1485
      %v1494 = vrot.slane %v1486, 1
      %v1495 = vrot.slane %v1487, 1
      %v1496 = vrot.slane %v1488, 1
      %v1497 = vrot.slane %v1489, 1
      %v1498 = vrot.slane %v1490, 1
      %v1499 = vrot.slane %v1491, 1
      %v1500 = vrot.slane %v1492, 1
      %v1501 = vrot.slane %v1493, 1
      %v1502 = vunpack.c.l.b16 %v1420
      %v1503 = vunpack.c.l.b16 %v1494
      %v1504 = vunpack.c.l.b16 %v1427
      %v1505 = vunpack.c.l.b16 %v1495
      %v1506 = vunpack.c.l.b16 %v1434
      %v1507 = vunpack.c.l.b16 %v1496
      %v1508 = vunpack.c.l.b16 %v1441
      %v1509 = vunpack.c.l.b16 %v1497
      %v1510 = vunpack.c.l.b16 %v1448
      %v1511 = vunpack.c.l.b16 %v1498
      %v1512 = vunpack.c.l.b16 %v1455
      %v1513 = vunpack.c.l.b16 %v1499
      %v1514 = vunpack.c.l.b16 %v1462
      %v1515 = vunpack.c.l.b16 %v1500
      %v1516 = vunpack.c.l.b16 %v1469
      %v1517 = vunpack.c.l.b16 %v1501
      %s1518 = scalar_lea.vmem %s258, 384
      %v1519 = vld [vmem:[%s1518] sm:$0xf]
      %v1520 = vld [vmem:[%s1518 + $0x4] sm:$0xf]
      %v1521 = vld [vmem:[%s1518 + $0x8] sm:$0xf]
      %v1522 = vld [vmem:[%s1518 + $0xc] sm:$0xf]
      %v1523 = vld [vmem:[%s1518 + $0x10] sm:$0xf]
      %v1524 = vld [vmem:[%s1518 + $0x14] sm:$0xf]
      %v1525 = vld [vmem:[%s1518 + $0x18] sm:$0xf]
      %v1526 = vld [vmem:[%s1518 + $0x1c] sm:$0xf]
      %v1527 = vld [vmem:[%s1518 + $0x20] sm:$0xf]
      %v1528 = vld [vmem:[%s1518 + $0x24] sm:$0xf]
      %v1529 = vld [vmem:[%s1518 + $0x28] sm:$0xf]
      %v1530 = vld [vmem:[%s1518 + $0x2c] sm:$0xf]
      %v1531 = vld [vmem:[%s1518 + $0x30] sm:$0xf]
      %v1532 = vld [vmem:[%s1518 + $0x34] sm:$0xf]
      %v1533 = vld [vmem:[%s1518 + $0x38] sm:$0xf]
      %v1534 = vld [vmem:[%s1518 + $0x3c] sm:$0xf]
      %v1535 = vld [vmem:[%s1518 + $0x40] sm:$0xf]
      %v1536 = vld [vmem:[%s1518 + $0x44] sm:$0xf]
      %v1537 = vld [vmem:[%s1518 + $0x48] sm:$0xf]
      %v1538 = vld [vmem:[%s1518 + $0x4c] sm:$0xf]
      %v1539 = vld [vmem:[%s1518 + $0x50] sm:$0xf]
      %v1540 = vld [vmem:[%s1518 + $0x54] sm:$0xf]
      %v1541 = vld [vmem:[%s1518 + $0x58] sm:$0xf]
      %v1542 = vld [vmem:[%s1518 + $0x5c] sm:$0xf]
      %v1543 = vld [vmem:[%s1518 + $0x60] sm:$0xf]
      %v1544 = vld [vmem:[%s1518 + $0x64] sm:$0xf]
      %v1545 = vld [vmem:[%s1518 + $0x68] sm:$0xf]
      %v1546 = vld [vmem:[%s1518 + $0x6c] sm:$0xf]
      %v1547 = vld [vmem:[%s1518 + $0x70] sm:$0xf]
      %v1548 = vld [vmem:[%s1518 + $0x74] sm:$0xf]
      %v1549 = vld [vmem:[%s1518 + $0x78] sm:$0xf]
      %v1550 = vld [vmem:[%s1518 + $0x7c] sm:$0xf]
      %v1551 = vld [vmem:[%s1518 + $0x80] sm:$0xf]
      %v1552 = vld [vmem:[%s1518 + $0x84] sm:$0xf]
      %v1553 = vld [vmem:[%s1518 + $0x88] sm:$0xf]
      %v1554 = vld [vmem:[%s1518 + $0x8c] sm:$0xf]
      %v1555 = vld [vmem:[%s1518 + $0x90] sm:$0xf]
      %v1556 = vld [vmem:[%s1518 + $0x94] sm:$0xf]
      %v1557 = vld [vmem:[%s1518 + $0x98] sm:$0xf]
      %v1558 = vld [vmem:[%s1518 + $0x9c] sm:$0xf]
      %v1559 = vld [vmem:[%s1518 + $0xa0] sm:$0xf]
      %v1560 = vld [vmem:[%s1518 + $0xa4] sm:$0xf]
      %v1561 = vld [vmem:[%s1518 + $0xa8] sm:$0xf]
      %v1562 = vld [vmem:[%s1518 + $0xac] sm:$0xf]
      %v1563 = vld [vmem:[%s1518 + $0xb0] sm:$0xf]
      %v1564 = vld [vmem:[%s1518 + $0xb4] sm:$0xf]
      %v1565 = vld [vmem:[%s1518 + $0xb8] sm:$0xf]
      %v1566 = vld [vmem:[%s1518 + $0xbc] sm:$0xf]
      %v1567 = vpack.c.b16 %v1392, %v1390
      %v1568 = vpack.c.b16 %v1504, %v1502
      %v1569 = vpack.c.b16 %v1505, %v1503
      %v1570 = vpack.c.b16 %v1396, %v1394
      %v1571 = vpack.c.b16 %v1508, %v1506
      %v1572 = vpack.c.b16 %v1509, %v1507
      %v1573 = vpack.c.b16 %v1400, %v1398
      %v1574 = vpack.c.b16 %v1512, %v1510
      %v1575 = vpack.c.b16 %v1513, %v1511
      %v1576 = vpack.c.b16 %v1404, %v1402
      %v1577 = vpack.c.b16 %v1516, %v1514
      %v1578 = vpack.c.b16 %v1517, %v1515
      %v1639 = vunpack.c.l.b16 %v1519
      %v1640 = vunpack.c.l.b16 %v1520
      %v1641 = vunpack.c.l.b16 %v1521
      %v1642 = vunpack.c.l.b16 %v1522
      %v1643 = vunpack.c.l.b16 %v1523
      %v1644 = vunpack.c.l.b16 %v1524
      %v1645 = vunpack.c.l.b16 %v1525
      %v1646 = vunpack.c.l.b16 %v1526
      %v1647 = vunpack.c.l.b16 %v1527
      %v1648 = vunpack.c.l.b16 %v1528
      %v1649 = vunpack.c.l.b16 %v1529
      %v1650 = vunpack.c.l.b16 %v1530
      %v1651 = vunpack.c.l.b16 %v1531
      %v1652 = vunpack.c.l.b16 %v1532
      %v1653 = vunpack.c.l.b16 %v1533
      %v1654 = vunpack.c.l.b16 %v1534
      %v1655 = vunpack.c.l.b16 %v1535
      %v1656 = vunpack.c.l.b16 %v1536
      %v1657 = vunpack.c.l.b16 %v1537
      %v1658 = vunpack.c.l.b16 %v1538
      %v1659 = vunpack.c.l.b16 %v1539
      %v1660 = vunpack.c.l.b16 %v1540
      %v1661 = vunpack.c.l.b16 %v1541
      %v1662 = vunpack.c.l.b16 %v1542
      %v1663 = vunpack.c.l.b16 %v1543
      %v1664 = vunpack.c.l.b16 %v1544
      %v1665 = vunpack.c.l.b16 %v1545
      %v1666 = vunpack.c.l.b16 %v1546
      %v1667 = vunpack.c.l.b16 %v1547
      %v1668 = vunpack.c.l.b16 %v1548
      %v1669 = vunpack.c.l.b16 %v1549
      %v1670 = vunpack.c.l.b16 %v1550
      %v1671 = vunpack.c.l.b16 %v1551
      %v1672 = vunpack.c.l.b16 %v1552
      %v1673 = vunpack.c.l.b16 %v1553
      %v1674 = vunpack.c.l.b16 %v1554
      %v1675 = vunpack.c.l.b16 %v1555
      %v1676 = vunpack.c.l.b16 %v1556
      %v1677 = vunpack.c.l.b16 %v1557
      %v1678 = vunpack.c.l.b16 %v1558
      %v1679 = vunpack.c.l.b16 %v1559
      %v1680 = vunpack.c.l.b16 %v1560
      %v1681 = vunpack.c.l.b16 %v1561
      %v1682 = vunpack.c.l.b16 %v1562
      %v1683 = vunpack.c.l.b16 %v1563
      %v1684 = vunpack.c.l.b16 %v1564
      %v1685 = vunpack.c.l.b16 %v1565
      %v1686 = vunpack.c.l.b16 %v1566
      %v1687 = vpack.c.b16 %v1640, %v1639
      %v1688 = vpack.c.b16 %v1642, %v1641
      %v1689 = vpack.c.b16 %v1644, %v1643
      %v1690 = vpack.c.b16 %v1646, %v1645
      %v1691 = vpack.c.b16 %v1648, %v1647
      %v1692 = vpack.c.b16 %v1650, %v1649
      %v1693 = vpack.c.b16 %v1652, %v1651
      %v1694 = vpack.c.b16 %v1654, %v1653
      %v1695 = vpack.c.b16 %v1656, %v1655
      %v1696 = vpack.c.b16 %v1658, %v1657
      %v1697 = vpack.c.b16 %v1660, %v1659
      %v1698 = vpack.c.b16 %v1662, %v1661
      %v1699 = vpack.c.b16 %v1664, %v1663
      %v1700 = vpack.c.b16 %v1666, %v1665
      %v1701 = vpack.c.b16 %v1668, %v1667
      %v1702 = vpack.c.b16 %v1670, %v1669
      %v1703 = vpack.c.b16 %v1672, %v1671
      %v1704 = vpack.c.b16 %v1674, %v1673
      %v1705 = vpack.c.b16 %v1676, %v1675
      %v1706 = vpack.c.b16 %v1678, %v1677
      %v1707 = vpack.c.b16 %v1680, %v1679
      %v1708 = vpack.c.b16 %v1682, %v1681
      %v1709 = vpack.c.b16 %v1684, %v1683
      %v1710 = vpack.c.b16 %v1686, %v1685
      %1735 = vmatprep.subr.bf16.mxu0 0
      %1736 = vmatpush1.bf16.msra.mxu0 %v1687
      %1737 = vmatprep.subr.bf16.mxu0 0
      %1738 = vmatpush1.bf16.msra.mxu0 %v1688
      %1739 = vmatprep.subr.bf16.mxu0 0
      %1740 = vmatpush1.bf16.msra.mxu0 %v1689
      %1741 = vmatprep.subr.bf16.mxu0 0
      %1742 = vmatpush1.bf16.msra.mxu0 %v1690
      %1743 = vmatprep.subr.bf16.mxu0 0
      %1744 = vmatpush1.bf16.msra.mxu0 %v1691
      %1745 = vmatprep.subr.bf16.mxu0 0
      %1746 = vmatpush1.bf16.msra.mxu0 %v1692
      %1747 = vmatprep.subr.bf16.mxu0 0
      %1748 = vmatpush1.bf16.msra.mxu0 %v1693
      %1749 = vmatprep.subr.bf16.mxu0 0
      %1750 = vmatpush1.bf16.msra.mxu0 %v1694
      %1751 = vmatprep.subr.bf16.mxu0 0
      %1752 = vmatpush1.bf16.msra.mxu0 %v1695
      %1753 = vmatprep.subr.bf16.mxu0 0
      %1754 = vmatpush1.bf16.msra.mxu0 %v1696
      %1755 = vmatprep.subr.bf16.mxu0 0
      %1756 = vmatpush1.bf16.msra.mxu0 %v1697
      %1757 = vmatprep.subr.bf16.mxu0 0
      %1758 = vmatpush1.bf16.msra.mxu0 %v1698
      %1759 = vmatprep.subr.bf16.mxu0 0
      %1760 = vmatpush1.bf16.msra.mxu0 %v1699
      %1761 = vmatprep.subr.bf16.mxu0 0
      %1762 = vmatpush1.bf16.msra.mxu0 %v1700
      %1763 = vmatprep.subr.bf16.mxu0 0
      %1764 = vmatpush1.bf16.msra.mxu0 %v1701
      %1765 = vmatprep.subr.bf16.mxu0 0
      %1766 = vmatpush1.bf16.msra.mxu0 %v1702
      %1767 = vmatprep.mubr.bf16.mxu0 %v1568
      %1768 = vmatmul.mubr.bf16.gmra.mrb[0].mxu0 %v1567
      %v1769 = vpop.f32.mrb[0].mxu0
      %v1770 = vadd.f32 0.0, %v1769
      %v1771 = vpop.f32.mrb[0].mxu0
      %v1772 = vpop.f32.mrb[0].mxu0
      %v1773 = vadd.f32 0.0, %v1772
      %v1774 = vpop.f32.mrb[0].mxu0
      %1775 = vmatprep.mubr.bf16.mxu0 %v1571
      %1776 = vmatmul.mubr.bf16.gmra.mrb[0].mxu0 %v1570
      %v1777 = vpop.f32.mrb[0].mxu0
      %v1778 = vadd.f32 0.0, %v1777
      %v1779 = vpop.f32.mrb[0].mxu0
      %v1780 = vpop.f32.mrb[0].mxu0
      %v1781 = vadd.f32 0.0, %v1780
      %v1782 = vpop.f32.mrb[0].mxu0
      %1783 = vmatprep.mubr.bf16.mxu0 %v1574
      %1784 = vmatmul.mubr.bf16.gmra.mrb[0].mxu0 %v1573
      %v1785 = vpop.f32.mrb[0].mxu0
      %v1786 = vadd.f32 0.0, %v1785
      %v1787 = vpop.f32.mrb[0].mxu0
      %v1788 = vpop.f32.mrb[0].mxu0
      %v1789 = vadd.f32 0.0, %v1788
      %v1790 = vpop.f32.mrb[0].mxu0
      %1791 = vmatprep.mubr.bf16.mxu0 %v1577
      %1792 = vmatmul.mubr.bf16.gmra.mrb[0].mxu0 %v1576
      %v1793 = vpop.f32.mrb[0].mxu0
      %v1794 = vadd.f32 0.0, %v1793
      %v1795 = vpop.f32.mrb[0].mxu0
      %v1796 = vpop.f32.mrb[0].mxu0
      %v1797 = vadd.f32 0.0, %v1796
      %v1798 = vpop.f32.mrb[0].mxu0
      %1799 = vdwg.mxu0
      %1800 = vmatprep.subr.bf16.mxu0 0
      %1801 = vmatpush1.bf16.msra.mxu0 %v1703
      %1802 = vmatprep.subr.bf16.mxu0 0
      %1803 = vmatpush1.bf16.msra.mxu0 %v1704
      %1804 = vmatprep.subr.bf16.mxu0 0
      %1805 = vmatpush1.bf16.msra.mxu0 %v1705
      %1806 = vmatprep.subr.bf16.mxu0 0
      %1807 = vmatpush1.bf16.msra.mxu0 %v1706
      %1808 = vmatprep.subr.bf16.mxu0 0
      %1809 = vmatpush1.bf16.msra.mxu0 %v1707
      %1810 = vmatprep.subr.bf16.mxu0 0
      %1811 = vmatpush1.bf16.msra.mxu0 %v1708
      %1812 = vmatprep.subr.bf16.mxu0 0
      %1813 = vmatpush1.bf16.msra.mxu0 %v1709
      %1814 = vmatprep.subr.bf16.mxu0 0
      %1815 = vmatpush1.bf16.msra.mxu0 %v1710
      %1816 = vmatprep.subr.bf16.mxu0 0
      %1817 = vmatpush1.bf16.msra.mxu0 0
      %1818 = vmatprep.subr.bf16.mxu0 0
      %1819 = vmatpush1.bf16.msra.mxu0 0
      %1820 = vmatprep.subr.bf16.mxu0 0
      %1821 = vmatpush1.bf16.msra.mxu0 0
      %1822 = vmatprep.subr.bf16.mxu0 0
      %1823 = vmatpush1.bf16.msra.mxu0 0
      %1824 = vmatprep.subr.bf16.mxu0 0
      %1825 = vmatpush1.bf16.msra.mxu0 0
      %1826 = vmatprep.subr.bf16.mxu0 0
      %1827 = vmatpush1.bf16.msra.mxu0 0
      %1828 = vmatprep.subr.bf16.mxu0 0
      %1829 = vmatpush1.bf16.msra.mxu0 0
      %1830 = vmatprep.subr.bf16.mxu0 0
      %1831 = vmatpush1.bf16.msra.mxu0 0
      %1832 = vmatprep.mubr.bf16.mxu0 0
      %1833 = vmatmul.mubr.bf16.gmra.mrb[0].mxu0 %v1569
      %v1834 = vpop.f32.mrb[0].mxu0
      %v1835 = vadd.f32 %v1770, %v1834
      %v1836 = vpop.f32.mrb[0].mxu0
      %v1837 = vpop.f32.mrb[0].mxu0
      %v1838 = vadd.f32 %v1773, %v1837
      %v1839 = vpop.f32.mrb[0].mxu0
      %1840 = vmatprep.mubr.bf16.mxu0 0
      %1841 = vmatmul.mubr.bf16.gmra.mrb[0].mxu0 %v1572
      %v1842 = vpop.f32.mrb[0].mxu0
      %v1843 = vadd.f32 %v1778, %v1842
      %v1844 = vpop.f32.mrb[0].mxu0
      %v1845 = vpop.f32.mrb[0].mxu0
      %v1846 = vadd.f32 %v1781, %v1845
      %v1847 = vpop.f32.mrb[0].mxu0
      %1848 = vmatprep.mubr.bf16.mxu0 0
      %1849 = vmatmul.mubr.bf16.gmra.mrb[0].mxu0 %v1575
      %v1850 = vpop.f32.mrb[0].mxu0
      %v1851 = vadd.f32 %v1786, %v1850
      %v1852 = vpop.f32.mrb[0].mxu0
      %v1853 = vpop.f32.mrb[0].mxu0
      %v1854 = vadd.f32 %v1789, %v1853
      %v1855 = vpop.f32.mrb[0].mxu0
      %1856 = vmatprep.mubr.bf16.mxu0 0
      %1857 = vmatmul.mubr.bf16.gmra.mrb[0].mxu0 %v1578
      %v1858 = vpop.f32.mrb[0].mxu0
      %v1859 = vadd.f32 %v1794, %v1858
      %v1860 = vpop.f32.mrb[0].mxu0
      %v1861 = vpop.f32.mrb[0].mxu0
      %v1862 = vadd.f32 %v1797, %v1861
      %v1863 = vpop.f32.mrb[0].mxu0
      %1864 = vdwg.mxu0
      %v1865 = vld [vmem:[#allocation2] sm:$0xff]
      %v1866 = vld [vmem:[#allocation2 + $0x8] sm:$0xff]
      %v1867 = vld [vmem:[#allocation2 + $0x10] sm:$0xff]
      %v1868 = vld [vmem:[#allocation2 + $0x18] sm:$0xff]
      %v1869 = vld [vmem:[#allocation2 + $0x20] sm:$0xff]
      %v1870 = vld [vmem:[#allocation2 + $0x28] sm:$0xff]
      %v1871 = vld [vmem:[#allocation2 + $0x30] sm:$0xff]
      %v1872 = vld [vmem:[#allocation2 + $0x38] sm:$0xff]
      %v1873 = vadd.f32 %v1865, %v1835
      %v1874 = vadd.f32 %v1866, %v1838
      %v1875 = vadd.f32 %v1867, %v1843
      %v1876 = vadd.f32 %v1868, %v1846
      %v1877 = vadd.f32 %v1869, %v1851
      %v1878 = vadd.f32 %v1870, %v1854
      %v1879 = vadd.f32 %v1871, %v1859
      %v1880 = vadd.f32 %v1872, %v1862
      %1881 = vst [vmem:[#allocation2] sm:$0xff] %v1873
      %1882 = vst [vmem:[#allocation2 + $0x8] sm:$0xff] %v1874
      %1883 = vst [vmem:[#allocation2 + $0x10] sm:$0xff] %v1875
      %1884 = vst [vmem:[#allocation2 + $0x18] sm:$0xff] %v1876
      %1885 = vst [vmem:[#allocation2 + $0x20] sm:$0xff] %v1877
      %1886 = vst [vmem:[#allocation2 + $0x28] sm:$0xff] %v1878
      %1887 = vst [vmem:[#allocation2 + $0x30] sm:$0xff] %v1879
      %1888 = vst [vmem:[#allocation2 + $0x38] sm:$0xff] %v1880
      %v1889 = vld [vmem:[#allocation2] sm:$0xff]
      %v1890 = vld [vmem:[#allocation2 + $0x8] sm:$0xff]
      %v1891 = vld [vmem:[#allocation2 + $0x10] sm:$0xff]
      %v1892 = vld [vmem:[#allocation2 + $0x18] sm:$0xff]
      %v1893 = vld [vmem:[#allocation2 + $0x20] sm:$0xff]
      %v1894 = vld [vmem:[#allocation2 + $0x28] sm:$0xff]
      %v1895 = vld [vmem:[#allocation2 + $0x30] sm:$0xff]
      %v1896 = vld [vmem:[#allocation2 + $0x38] sm:$0xff]
      %v1897 = vld [vmem:[%s261] sm:$0x1]
      %v1899 = vlaneseq
      %v1900 = vshrl.u32 %v1899, 7
      %v1901 = vsub.s32 0, %v1900
      %v1902 = vrot.slane %v1897, %v1901
      %v1904 = vmul.f32 %v1889, %v1902
      %v1905 = vmul.f32 %v1890, %v1902
      %v1906 = vmul.f32 %v1891, %v1902
      %v1907 = vmul.f32 %v1892, %v1902
      %v1908 = vmul.f32 %v1893, %v1902
      %v1909 = vmul.f32 %v1894, %v1902
      %v1910 = vmul.f32 %v1895, %v1902
      %v1911 = vmul.f32 %v1896, %v1902
      %v1912 = vld [vmem:[%s264] sm:$0x1]
      %v1914 = vlaneseq
      %v1915 = vshrl.u32 %v1914, 7
      %v1916 = vsub.s32 0, %v1915
      %v1917 = vrot.slane %v1912, %v1916
      %v1919 = vadd.f32 %v1904, %v1917
      %v1920 = vadd.f32 %v1905, %v1917
      %v1921 = vadd.f32 %v1906, %v1917
      %v1922 = vadd.f32 %v1907, %v1917
      %v1923 = vadd.f32 %v1908, %v1917
      %v1924 = vadd.f32 %v1909, %v1917
      %v1925 = vadd.f32 %v1910, %v1917
      %v1926 = vadd.f32 %v1911, %v1917
      %v1927 = vmax.f32 %v1919, 0.0
      %v1928 = vmax.f32 %v1920, 0.0
      %v1929 = vmax.f32 %v1921, 0.0
      %v1930 = vmax.f32 %v1922, 0.0
      %v1931 = vmax.f32 %v1923, 0.0
      %v1932 = vmax.f32 %v1924, 0.0
      %v1933 = vmax.f32 %v1925, 0.0
      %v1934 = vmax.f32 %v1926, 0.0
      %v1935 = vpack.c.bf16 %v1928, %v1927
      %v1936 = vpack.c.bf16 %v1930, %v1929
      %v1937 = vpack.c.bf16 %v1932, %v1931
      %v1938 = vpack.c.bf16 %v1934, %v1933
      %v1943 = vunpack.c.l.b16 %v1935
      %v1944 = vunpack.c.h.b16 %v1935
      %v1945 = vunpack.c.l.b16 %v1936
      %v1946 = vunpack.c.h.b16 %v1936
      %v1947 = vunpack.c.l.b16 %v1937
      %v1948 = vunpack.c.h.b16 %v1937
      %v1949 = vunpack.c.l.b16 %v1938
      %v1950 = vunpack.c.h.b16 %v1938
      %v1951 = vpack.c.b16 %v1943, %v1943
      %v1952 = vpack.c.b16 %v1944, %v1944
      %v1953 = vpack.c.b16 %v1945, %v1945
      %v1954 = vpack.c.b16 %v1946, %v1946
      %v1955 = vpack.c.b16 %v1947, %v1947
      %v1956 = vpack.c.b16 %v1948, %v1948
      %v1957 = vpack.c.b16 %v1949, %v1949
      %v1958 = vpack.c.b16 %v1950, %v1950
      %1967 = vst [vmem:[%s273] sm:$0xf] %v1951
      %1968 = vst [vmem:[%s273 + $0x4] sm:$0xf] %v1952
      %1969 = vst [vmem:[%s273 + $0x8] sm:$0xf] %v1953
      %1970 = vst [vmem:[%s273 + $0xc] sm:$0xf] %v1954
      %1971 = vst [vmem:[%s273 + $0x10] sm:$0xf] %v1955
      %1972 = vst [vmem:[%s273 + $0x14] sm:$0xf] %v1956
      %1973 = vst [vmem:[%s273 + $0x18] sm:$0xf] %v1957
      %1974 = vst [vmem:[%s273 + $0x1c] sm:$0xf] %v1958
      %s1975 = sadd.s32 %s20, %s21
      %s1976 = smul.u32 8, %s1975
      %p1977 = scmp.lt.s32.totalorder %s1976, 15
      %s1978 = scalar_select %p1977, %s1976, 15
      %p1979 = scmp.lt.s32.totalorder %s22, 0
      %s1980 = scalar_select %p1979, %s22, 0
      %s1981 = sadd.s32 %s1980, %s1978
      %s1982 = smul.addr %s1981, 4
      %s1983 = scalar_lea.vmem %s4, %s1982
      // Predicated region
      $region37: #{bottleneck_forward.6} parent=35 // pred_check
        %p1984 = pneg %p160
      $region38: #{bottleneck_forward.6} parent=35 // pred_check_branch
        %1986 = sbr.rel (%p1984) target = $region40
      $region39: #{bottleneck_forward.6} parent=35 // pred_region
        %s1987 = sadd.s32 %s20, %s21
        %s1988 = smul.u32 8, %s1987
      $region40: #{bottleneck_forward.6} parent=35 // pred_fallthru
        _
    $region36: #{bottleneck_forward.6} parent=5 // pred_fallthru
      _
    %p1989 = scmp.le.s32.totalorder 2, %s10
    // Predicated region
    $region41: #{bottleneck_forward.6} parent=5 // pred_check
      %p1990 = pneg %p1989
    $region42: #{bottleneck_forward.6} parent=5 // pred_check_branch
      %1992 = sbr.rel (%p1990) target = $region44
    $region43: #{bottleneck_forward.6} parent=5 // pred_region
      %s1993 = ssub.s32 %s10, 2
      // Predicated region
      $region45: #{bottleneck_forward.6} parent=43 // pred_check
        %p1994 = pneg %p166
      $region46: #{bottleneck_forward.6} parent=43 // pred_check_branch
        %1996 = sbr.rel (%p1994) target = $region48
      $region47: #{bottleneck_forward.6} parent=43 // pred_region
        %s1997 = sadd.s32 %s23, %s24
        %s1998 = smul.u32 8, %s1997
        %p1999 = scmp.lt.s32.totalorder %s1998, 15
        %s2000 = scalar_select %p1999, %s1998, 15
        %p2001 = scmp.lt.s32.totalorder %s25, 0
        %s2002 = scalar_select %p2001, %s25, 0
        %s2003 = sadd.s32 %s2002, %s2000
        %s2004 = smul.addr %s2003, 4
        %s2005 = scalar_lea.vmem %s4, %s2004
      $region48: #{bottleneck_forward.6} parent=43 // pred_fallthru
        _
    $region44: #{bottleneck_forward.6} parent=5 // pred_fallthru
      _
  $region6: #{bottleneck_forward.6} parent=0 // loop_footer
    %s14 = sadd.s32 1, %s10
  $region7: #{bottleneck_forward.6} parent=0 // loop_footer_branch
    %9 = sbr.rel target = $region3
  $region8: #{bottleneck_forward.6} parent=0 // loop_exit
    _

// kernel: bottleneck_forward.9
$region0: #{bottleneck_forward.9}
  #allocation0 [shape = 'u32[]', space=smem, size = 0x4, offset = 0x4, fixed_abs, tag = 'smem constant byte address 0x4 - core index']
  #allocation1 [shape = 'u32[144,128]{1,0:T(1,128)}', space=vmem, size = 0x12000, scoped, tag = 'internal scratch']
  %s0 = inlined_call_operand.vmem [shape: bf16[2,64,128], index: 0, kind: input, shape index: {}]
  %s1 = inlined_call_operand.vmem [shape: f32[2,64,128], index: 1, kind: input, shape index: {}]
  %s2 = inlined_call_operand.vmem [shape: f32[2,1,128], index: 2, kind: input, shape index: {}]
  %s3 = inlined_call_operand.vmem [shape: bf16[2,64,128], index: 3, kind: output, shape index: {}]
  %s4 = sld [smem:[#allocation0]]
  $region45: #{bottleneck_forward.9} parent=0
    _
  %s6 = ssub.s32 1, %s4
  %s7 = scalar_select 0, %s6, %s4
  loop: start=0, step=1, limit=4
  $region2: #{bottleneck_forward.9} parent=0 // loop_pre_header
    _
  $region3: #{bottleneck_forward.9} parent=0 // loop_header
    %s9 = sphi 0, %s13
    %p10 = scmp.ge.s32.totalorder %s9, 4
    %s16 = sphi 0, %s28
    %s17 = sphi 0, %s24
    %s18 = sphi 0, %s16
    %s19 = sphi 0, %s17
    %s20 = sphi 0, %s18
    %s21 = sphi 0, %s19
    %s33 = sphi 0, %s35
    %s36 = sphi 0, %s33
    %s37 = sphi 0, %s36
    %s53 = sphi 0, %s37
    %s61 = sphi 0, %s63
    %s64 = sphi 0, %s61
    %s65 = sphi 0, %s64
    %s81 = sphi 0, %s65
    %s87 = sphi 0, %s89
    %s90 = sphi 0, %s87
    %s91 = sphi 0, %s90
    %s107 = sphi 0, %s91
    %s115 = sphi 0, %s117
    %s118 = sphi 0, %s115
    %s119 = sphi 0, %s118
    %s135 = sphi 0, %s119
  $region4: #{bottleneck_forward.9} parent=0 // loop_header_branch
    %12 = sbr.rel (%p10) target = $region8
  $region5: #{bottleneck_forward.9} parent=0 // loop_body
    %s14 = ssub.s32 %s9, 1
    %s15 = ssub.s32 %s9, 2
    %s22 = sadd.s32 1, %s17
    %p23 = scmp.ge.s32.totalorder %s22, 1
    %s24 = scalar_select %p23, 0, %s22
    %s25 = sadd.s32 1, %s16
    %s26 = scalar_select %p23, %s25, %s16
    %p27 = scmp.ge.s32.totalorder %s26, 2
    %s28 = scalar_select %p27, 0, %s26
    %s29 = ssub.s32 %s16, %s28
    %s30 = ssub.s32 %s17, %s24
    %s31 = sor.u32 %s29, %s30
    %p32 = scmp.eq.s32.totalorder %s31, 0
    %s34 = sadd.s32 %s33, 1
    %s35 = scalar_select %p32, %s33, %s34
    %p38 = pneg %p32
    %p39 = scmp.eq.s32.totalorder %s9, 1
    %p40 = por %p38, %p39
    %p41 = scmp.ne.s32.totalorder %s33, %s36
    %p42 = scmp.eq.s32.totalorder %s9, 0
    %p43 = por %p41, %p42
    %p44 = scmp.ne.s32.totalorder %s33, %s36
    %p45 = scmp.eq.s32.totalorder %s14, 1
    %p46 = por %p44, %p45
    %p47 = scmp.ne.s32.totalorder %s36, %s37
    %p48 = scmp.eq.s32.totalorder %s14, 0
    %p49 = por %p47, %p48
    %p50 = scmp.ne.s32.totalorder %s36, %s37
    %p51 = scmp.eq.s32.totalorder %s15, 1
    %p52 = por %p50, %p51
    %p54 = scmp.ne.s32.totalorder %s37, %s53
    %p55 = scmp.eq.s32.totalorder %s15, 0
    %p56 = por %p54, %p55
    %s57 = ssub.s32 %s16, %s28
    %s58 = ssub.s32 %s17, %s24
    %s59 = sor.u32 %s57, %s58
    %p60 = scmp.eq.s32.totalorder %s59, 0
    %s62 = sadd.s32 %s61, 1
    %s63 = scalar_select %p60, %s61, %s62
    %p66 = pneg %p60
    %p67 = scmp.eq.s32.totalorder %s9, 1
    %p68 = por %p66, %p67
    %p69 = scmp.ne.s32.totalorder %s61, %s64
    %p70 = scmp.eq.s32.totalorder %s9, 0
    %p71 = por %p69, %p70
    %p72 = scmp.ne.s32.totalorder %s61, %s64
    %p73 = scmp.eq.s32.totalorder %s14, 1
    %p74 = por %p72, %p73
    %p75 = scmp.ne.s32.totalorder %s64, %s65
    %p76 = scmp.eq.s32.totalorder %s14, 0
    %p77 = por %p75, %p76
    %p78 = scmp.ne.s32.totalorder %s64, %s65
    %p79 = scmp.eq.s32.totalorder %s15, 1
    %p80 = por %p78, %p79
    %p82 = scmp.ne.s32.totalorder %s65, %s81
    %p83 = scmp.eq.s32.totalorder %s15, 0
    %p84 = por %p82, %p83
    %s85 = ssub.s32 %s16, %s28
    %p86 = scmp.eq.s32.totalorder %s85, 0
    %s88 = sadd.s32 %s87, 1
    %s89 = scalar_select %p86, %s87, %s88
    %p92 = pneg %p86
    %p93 = scmp.eq.s32.totalorder %s9, 1
    %p94 = por %p92, %p93
    %p95 = scmp.ne.s32.totalorder %s87, %s90
    %p96 = scmp.eq.s32.totalorder %s9, 0
    %p97 = por %p95, %p96
    %p98 = scmp.ne.s32.totalorder %s87, %s90
    %p99 = scmp.eq.s32.totalorder %s14, 1
    %p100 = por %p98, %p99
    %p101 = scmp.ne.s32.totalorder %s90, %s91
    %p102 = scmp.eq.s32.totalorder %s14, 0
    %p103 = por %p101, %p102
    %p104 = scmp.ne.s32.totalorder %s90, %s91
    %p105 = scmp.eq.s32.totalorder %s15, 1
    %p106 = por %p104, %p105
    %p108 = scmp.ne.s32.totalorder %s91, %s107
    %p109 = scmp.eq.s32.totalorder %s15, 0
    %p110 = por %p108, %p109
    %s111 = ssub.s32 %s16, %s28
    %s112 = ssub.s32 %s17, %s24
    %s113 = sor.u32 %s111, %s112
    %p114 = scmp.eq.s32.totalorder %s113, 0
    %s116 = sadd.s32 %s115, 1
    %s117 = scalar_select %p114, %s115, %s116
    %p120 = pneg %p114
    %p121 = scmp.eq.s32.totalorder %s9, 1
    %p122 = por %p120, %p121
    %p123 = scmp.ne.s32.totalorder %s115, %s118
    %p124 = scmp.eq.s32.totalorder %s9, 0
    %p125 = por %p123, %p124
    %p126 = scmp.ne.s32.totalorder %s115, %s118
    %p127 = scmp.eq.s32.totalorder %s14, 1
    %p128 = por %p126, %p127
    %p129 = scmp.ne.s32.totalorder %s118, %s119
    %p130 = scmp.eq.s32.totalorder %s14, 0
    %p131 = por %p129, %p130
    %p132 = scmp.ne.s32.totalorder %s118, %s119
    %p133 = scmp.eq.s32.totalorder %s15, 1
    %p134 = por %p132, %p133
    %p136 = scmp.ne.s32.totalorder %s119, %s135
    %p137 = scmp.eq.s32.totalorder %s15, 0
    %p138 = por %p136, %p137
    %p139 = scmp.le.s32.totalorder 1, %s9
    %p140 = scmp.lt.s32.totalorder %s9, 3
    %p141 = pnand %p139, %p140
    %p142 = pneg %p141
    // Predicated region
    $region9: #{bottleneck_forward.9} parent=5 // pred_check
      _
    $region10: #{bottleneck_forward.9} parent=5 // pred_check_branch
      %144 = sbr.rel (%p141) target = $region12
    $region11: #{bottleneck_forward.9} parent=5 // pred_region
      %s145 = ssub.s32 %s9, 1
    $region12: #{bottleneck_forward.9} parent=5 // pred_fallthru
      _
    %p146 = scmp.lt.s32.totalorder %s9, 2
    // Predicated region
    $region13: #{bottleneck_forward.9} parent=5 // pred_check
      %p147 = pneg %p146
    $region14: #{bottleneck_forward.9} parent=5 // pred_check_branch
      %149 = sbr.rel (%p147) target = $region16
    $region15: #{bottleneck_forward.9} parent=5 // pred_region
      // Predicated region
      $region17: #{bottleneck_forward.9} parent=15 // pred_check
        %p150 = pneg %p43
      $region18: #{bottleneck_forward.9} parent=15 // pred_check_branch
        %152 = sbr.rel (%p150) target = $region20
      $region19: #{bottleneck_forward.9} parent=15 // pred_region
        %s153 = smul.u32 8, %s17
        %p154 = scmp.lt.s32.totalorder %s16, 1
        %s155 = scalar_select %p154, %s16, 1
        %p156 = scmp.lt.s32.totalorder %s153, 7
        %s157 = scalar_select %p156, %s153, 7
        %s158 = smul.addr %s155, 8
        %s159 = sadd.s32 %s157, %s158
        %s160 = smul.addr %s159, 4
        %s161 = scalar_lea.vmem %s0, %s160
        %s162 = smul.u32 8, %s17
      $region20: #{bottleneck_forward.9} parent=15 // pred_fallthru
        _
      // Predicated region
      $region21: #{bottleneck_forward.9} parent=15 // pred_check
        %p163 = pneg %p71
      $region22: #{bottleneck_forward.9} parent=15 // pred_check_branch
        %165 = sbr.rel (%p163) target = $region24
      $region23: #{bottleneck_forward.9} parent=15 // pred_region
        %s166 = smul.u32 8, %s17
        %p167 = scmp.lt.s32.totalorder %s16, 1
        %s168 = scalar_select %p167, %s16, 1
        %p169 = scmp.lt.s32.totalorder %s166, 7
        %s170 = scalar_select %p169, %s166, 7
        %s171 = smul.addr %s168, 8
        %s172 = sadd.s32 %s170, %s171
        %s173 = smul.addr %s172, 8
        %s174 = scalar_lea.vmem %s1, %s173
        %s175 = smul.u32 8, %s17
      $region24: #{bottleneck_forward.9} parent=15 // pred_fallthru
        _
      // Predicated region
      $region25: #{bottleneck_forward.9} parent=15 // pred_check
        %p176 = pneg %p97
      $region26: #{bottleneck_forward.9} parent=15 // pred_check_branch
        %178 = sbr.rel (%p176) target = $region28
      $region27: #{bottleneck_forward.9} parent=15 // pred_region
        %p179 = scmp.lt.s32.totalorder %s16, 1
        %s180 = scalar_select %p179, %s16, 1
        %s181 = scalar_lea.vmem %s2, %s180
      $region28: #{bottleneck_forward.9} parent=15 // pred_fallthru
        _
    $region16: #{bottleneck_forward.9} parent=5 // pred_fallthru
      _
    %p182 = scmp.le.s32.totalorder 1, %s9
    %p183 = scmp.lt.s32.totalorder %s9, 3
    %p184 = pnand %p182, %p183
    %p185 = pneg %p184
    // Predicated region
    $region29: #{bottleneck_forward.9} parent=5 // pred_check
      _
    $region30: #{bottleneck_forward.9} parent=5 // pred_check_branch
      %187 = sbr.rel (%p184) target = $region32
    $region31: #{bottleneck_forward.9} parent=5 // pred_region
      %s188 = ssub.s32 %s9, 1
      %s189 = smul.u32 8, %s19
      %p190 = scmp.lt.s32.totalorder %s18, 1
      %s191 = scalar_select %p190, %s18, 1
      %p192 = scmp.lt.s32.totalorder %s189, 7
      %s193 = scalar_select %p192, %s189, 7
      %s194 = smul.addr %s191, 8
      %s195 = sadd.s32 %s193, %s194
      %s196 = smul.addr %s195, 4
      %s197 = scalar_lea.vmem %s0, %s196
      %p198 = pneg %p49
      %p199 = pneg %p46
      %s200 = smul.u32 8, %s19
      %p201 = scmp.lt.s32.totalorder %s18, 1
      %s202 = scalar_select %p201, %s18, 1
      %p203 = scmp.lt.s32.totalorder %s200, 7
      %s204 = scalar_select %p203, %s200, 7
      %s205 = smul.addr %s202, 8
      %s206 = sadd.s32 %s204, %s205
      %s207 = smul.addr %s206, 8
      %s208 = scalar_lea.vmem %s1, %s207
      %p209 = pneg %p77
      %p210 = pneg %p74
      %p211 = scmp.lt.s32.totalorder %s18, 1
      %s212 = scalar_select %p211, %s18, 1
      %s213 = scalar_lea.vmem %s2, %s212
      %p214 = pneg %p103
      %p215 = pneg %p100
      %p216 = pneg %p131
      %p217 = pneg %p128
      %s218 = smul.u32 8, %s19
      %p219 = scmp.lt.s32.totalorder %s18, 1
      %s220 = scalar_select %p219, %s18, 1
      %p221 = scmp.lt.s32.totalorder %s218, 7
      %s222 = scalar_select %p221, %s218, 7
      %s223 = smul.addr %s220, 8
      %s224 = sadd.s32 %s222, %s223
      %s225 = smul.addr %s224, 4
      %s226 = scalar_lea.vmem %s3, %s225
      %s227 = smul.u32 8, %s19
      %p228 = scmp.lt.s32.totalorder %s18, 1
      %s229 = scalar_select %p228, %s18, 1
      %p230 = scmp.lt.s32.totalorder %s227, 7
      %s231 = scalar_select %p230, %s227, 7
      %s232 = smul.addr %s229, 8
      %s233 = sadd.s32 %s231, %s232
      %s234 = smul.addr %s233, 4
      %s235 = scalar_lea.vmem %s0, %s234
      %s236 = smul.u32 8, %s19
      %s237 = smul.u32 8, %s19
      %p238 = scmp.lt.s32.totalorder %s18, 1
      %s239 = scalar_select %p238, %s18, 1
      %p240 = scmp.lt.s32.totalorder %s237, 7
      %s241 = scalar_select %p240, %s237, 7
      %s242 = smul.addr %s239, 8
      %s243 = sadd.s32 %s241, %s242
      %s244 = smul.addr %s243, 8
      %s245 = scalar_lea.vmem %s1, %s244
      %s246 = smul.u32 8, %s19
      %p247 = scmp.lt.s32.totalorder %s18, 1
      %s248 = scalar_select %p247, %s18, 1
      %s249 = scalar_lea.vmem %s2, %s248
      %s250 = smul.u32 8, %s19
      %p251 = scmp.lt.s32.totalorder %s18, 1
      %s252 = scalar_select %p251, %s18, 1
      %p253 = scmp.lt.s32.totalorder %s250, 7
      %s254 = scalar_select %p253, %s250, 7
      %s255 = smul.addr %s252, 8
      %s256 = sadd.s32 %s254, %s255
      %s257 = smul.addr %s256, 4
      %s258 = scalar_lea.vmem %s3, %s257
      %s259 = smul.u32 8, %s19
      %v260 = vld [vmem:[%s235] sm:$0xf]
      %v261 = vld [vmem:[%s235 + $0x4] sm:$0xf]
      %v262 = vld [vmem:[%s235 + $0x8] sm:$0xf]
      %v263 = vld [vmem:[%s235 + $0xc] sm:$0xf]
      %v264 = vld [vmem:[%s235 + $0x10] sm:$0xf]
      %v265 = vld [vmem:[%s235 + $0x14] sm:$0xf]
      %v266 = vld [vmem:[%s235 + $0x18] sm:$0xf]
      %v267 = vld [vmem:[%s235 + $0x1c] sm:$0xf]
      %v268 = vunpack.c.l.bf16 %v260
      %v269 = vunpack.c.l.bf16 %v261
      %v270 = vunpack.c.l.bf16 %v262
      %v271 = vunpack.c.l.bf16 %v263
      %v272 = vunpack.c.l.bf16 %v264
      %v273 = vunpack.c.l.bf16 %v265
      %v274 = vunpack.c.l.bf16 %v266
      %v275 = vunpack.c.l.bf16 %v267
      %v276 = vld [vmem:[%s249] sm:$0x1]
      %v278 = vlaneseq
      %v279 = vshrl.u32 %v278, 7
      %v280 = vsub.s32 0, %v279
      %v281 = vrot.slane %v276, %v280
      %v283 = vmul.f32 %v268, %v281
      %v284 = vmul.f32 %v269, %v281
      %v285 = vmul.f32 %v270, %v281
      %v286 = vmul.f32 %v271, %v281
      %v287 = vmul.f32 %v272, %v281
      %v288 = vmul.f32 %v273, %v281
      %v289 = vmul.f32 %v274, %v281
      %v290 = vmul.f32 %v275, %v281
      %v291 = vld [vmem:[%s245] sm:$0xff]
      %v292 = vld [vmem:[%s245 + $0x8] sm:$0xff]
      %v293 = vld [vmem:[%s245 + $0x10] sm:$0xff]
      %v294 = vld [vmem:[%s245 + $0x18] sm:$0xff]
      %v295 = vld [vmem:[%s245 + $0x20] sm:$0xff]
      %v296 = vld [vmem:[%s245 + $0x28] sm:$0xff]
      %v297 = vld [vmem:[%s245 + $0x30] sm:$0xff]
      %v298 = vld [vmem:[%s245 + $0x38] sm:$0xff]
      %v299 = vadd.f32 %v283, %v291
      %v300 = vadd.f32 %v284, %v292
      %v301 = vadd.f32 %v285, %v293
      %v302 = vadd.f32 %v286, %v294
      %v303 = vadd.f32 %v287, %v295
      %v304 = vadd.f32 %v288, %v296
      %v305 = vadd.f32 %v289, %v297
      %v306 = vadd.f32 %v290, %v298
      %v307 = vmax.f32 %v299, 0.0
      %v308 = vmax.f32 %v300, 0.0
      %v309 = vmax.f32 %v301, 0.0
      %v310 = vmax.f32 %v302, 0.0
      %v311 = vmax.f32 %v303, 0.0
      %v312 = vmax.f32 %v304, 0.0
      %v313 = vmax.f32 %v305, 0.0
      %v314 = vmax.f32 %v306, 0.0
      %v315 = vpack.c.bf16 %v308, %v307
      %v316 = vpack.c.bf16 %v310, %v309
      %v317 = vpack.c.bf16 %v312, %v311
      %v318 = vpack.c.bf16 %v314, %v313
      %v323 = vunpack.c.l.b16 %v315
      %v324 = vunpack.c.h.b16 %v315
      %v325 = vunpack.c.l.b16 %v316
      %v326 = vunpack.c.h.b16 %v316
      %v327 = vunpack.c.l.b16 %v317
      %v328 = vunpack.c.h.b16 %v317
      %v329 = vunpack.c.l.b16 %v318
      %v330 = vunpack.c.h.b16 %v318
      %v331 = vpack.c.b16 %v323, %v323
      %v332 = vpack.c.b16 %v324, %v324
      %v333 = vpack.c.b16 %v325, %v325
      %v334 = vpack.c.b16 %v326, %v326
      %v335 = vpack.c.b16 %v327, %v327
      %v336 = vpack.c.b16 %v328, %v328
      %v337 = vpack.c.b16 %v329, %v329
      %v338 = vpack.c.b16 %v330, %v330
      %347 = vst [vmem:[%s258] sm:$0xf] %v331
      %348 = vst [vmem:[%s258 + $0x4] sm:$0xf] %v332
      %349 = vst [vmem:[%s258 + $0x8] sm:$0xf] %v333
      %350 = vst [vmem:[%s258 + $0xc] sm:$0xf] %v334
      %351 = vst [vmem:[%s258 + $0x10] sm:$0xf] %v335
      %352 = vst [vmem:[%s258 + $0x14] sm:$0xf] %v336
      %353 = vst [vmem:[%s258 + $0x18] sm:$0xf] %v337
      %354 = vst [vmem:[%s258 + $0x1c] sm:$0xf] %v338
      %s355 = smul.u32 8, %s19
      %p356 = scmp.lt.s32.totalorder %s18, 1
      %s357 = scalar_select %p356, %s18, 1
      %p358 = scmp.lt.s32.totalorder %s355, 7
      %s359 = scalar_select %p358, %s355, 7
      %s360 = smul.addr %s357, 8
      %s361 = sadd.s32 %s359, %s360
      %s362 = smul.addr %s361, 4
      %s363 = scalar_lea.vmem %s3, %s362
      // Predicated region
      $region33: #{bottleneck_forward.9} parent=31 // pred_check
        %p364 = pneg %p128
      $region34: #{bottleneck_forward.9} parent=31 // pred_check_branch
        %366 = sbr.rel (%p364) target = $region36
      $region35: #{bottleneck_forward.9} parent=31 // pred_region
        %s367 = smul.u32 8, %s19
      $region36: #{bottleneck_forward.9} parent=31 // pred_fallthru
        _
    $region32: #{bottleneck_forward.9} parent=5 // pred_fallthru
      _
    %p368 = scmp.le.s32.totalorder 2, %s9
    // Predicated region
    $region37: #{bottleneck_forward.9} parent=5 // pred_check
      %p369 = pneg %p368
    $region38: #{bottleneck_forward.9} parent=5 // pred_check_branch
      %371 = sbr.rel (%p369) target = $region40
    $region39: #{bottleneck_forward.9} parent=5 // pred_region
      %s372 = ssub.s32 %s9, 2
      // Predicated region
      $region41: #{bottleneck_forward.9} parent=39 // pred_check
        %p373 = pneg %p134
      $region42: #{bottleneck_forward.9} parent=39 // pred_check_branch
        %375 = sbr.rel (%p373) target = $region44
      $region43: #{bottleneck_forward.9} parent=39 // pred_region
        %s376 = smul.u32 8, %s21
        %p377 = scmp.lt.s32.totalorder %s20, 1
        %s378 = scalar_select %p377, %s20, 1
        %p379 = scmp.lt.s32.totalorder %s376, 7
        %s380 = scalar_select %p379, %s376, 7
        %s381 = smul.addr %s378, 8
        %s382 = sadd.s32 %s380, %s381
        %s383 = smul.addr %s382, 4
        %s384 = scalar_lea.vmem %s3, %s383
      $region44: #{bottleneck_forward.9} parent=39 // pred_fallthru
        _
    $region40: #{bottleneck_forward.9} parent=5 // pred_fallthru
      _
  $region6: #{bottleneck_forward.9} parent=0 // loop_footer
    %s13 = sadd.s32 1, %s9
  $region7: #{bottleneck_forward.9} parent=0 // loop_footer_branch
    %8 = sbr.rel target = $region3
  $region8: #{bottleneck_forward.9} parent=0 // loop_exit
    _

</llo_original>
